<compile_context>
chip_gen: v7x
topology: tpu7x:2x2x1
jax: 0.10.0
libtpu: 0.0.40
codegen_flags: <defaults>
</compile_context>

<pallas_src>
import math
import functools

import jax
import jax.numpy as jnp
from jax.experimental import pallas as pl
from jax.experimental.pallas import tpu as pltpu


# ----------------------------- fused decoder-layer kernel -------------------

def _decoder_layer_kernel(
    dec_ref, enc_ref, smask_ref, emask_ref,
    wqkv1_ref, bqkv1_ref, wo1_ref, bo1_ref,
    wq2_ref, bq2_ref, wkv2_ref, bkv2_ref, wo2_ref, bo2_ref,
    w1_ref, b1_ref, w2_ref, b2_ref,
    out_ref, satt_ref, eatt_ref,
    *, n_heads, qkv_dim):
    bf16 = jnp.bfloat16
    D = qkv_dim
    H = n_heads
    HD = H * D
    scale = 1.0 / math.sqrt(qkv_dim)

    def matmul(a, w_bf16):
        # bf16 MXU operands, f32 accumulation.
        return jnp.dot(a.astype(bf16), w_bf16, preferred_element_type=jnp.float32)

    def attention(q_all, k_all, v_all, mask):
        """q_all: (Lq, H*D); k_all, v_all: (Lk, H*D); mask: (Lq, Lk) float (1.0 = masked).
        Returns ctx (Lq, H*D) head-major and att packed (Lq, H*Lk)."""
        ctx_cols = []
        att_cols = []
        for h in range(H):                       # static unroll over heads
            qh = q_all[:, h * D:(h + 1) * D]
            kh = k_all[:, h * D:(h + 1) * D]
            vh = v_all[:, h * D:(h + 1) * D]
            scores = jax.lax.dot_general(
                qh.astype(bf16), kh.astype(bf16),
                dimension_numbers=(((1,), (1,)), ((), ())),
                preferred_element_type=jnp.float32) * scale
            scores = jnp.where(mask > 0.5, -1000000000.0, scores)
            m = jnp.max(scores, axis=-1, keepdims=True)      # f32 softmax
            e = jnp.exp(scores - m)
            s = jnp.sum(e, axis=-1, keepdims=True)
            att = e * pl.reciprocal(s, approx=True)          # EUP reciprocal
            ctx = jnp.dot(att.astype(bf16), vh.astype(bf16),
                          preferred_element_type=jnp.float32)
            ctx_cols.append(ctx)
            att_cols.append(att)
        return jnp.concatenate(ctx_cols, axis=1), jnp.concatenate(att_cols, axis=1)

    def add_ln(y, residual):
        # fresh nn.LayerNorm: gamma=1, beta=0, eps=1e-5; dropout = identity
        z = y + residual
        mean = jnp.mean(z, axis=-1, keepdims=True)
        var = jnp.mean((z - mean) ** 2, axis=-1, keepdims=True)
        return (z - mean) * jax.lax.rsqrt(var + 1e-5)

    x = dec_ref[0]            # (Lq, E)
    enc = enc_ref[0]          # (Lk, ENC)
    smask = smask_ref[0]      # (Lq, Lq)
    emask = emask_ref[0]      # (Lq, Lk)

    # ---------------- self attention (fused QKV) ----------------
    qkv = matmul(x, wqkv1_ref[...]) + bqkv1_ref[...]          # (Lq, 3*H*D)
    q1 = qkv[:, 0:HD]
    k1 = qkv[:, HD:2 * HD]
    v1 = qkv[:, 2 * HD:3 * HD]
    ctx1, att1 = attention(q1, k1, v1, smask)                 # (Lq, HD), (Lq, H*Lq)
    o1 = matmul(ctx1, wo1_ref[...]) + bo1_ref[...]            # (Lq, E)
    x1 = add_ln(o1, x)

    # ---------------- cross attention (Q separate, fused KV) ----------------
    q2 = matmul(x1, wq2_ref[...]) + bq2_ref[...]              # (Lq, H*D)
    kv2 = matmul(enc, wkv2_ref[...]) + bkv2_ref[...]          # (Lk, 2*H*D)
    k2 = kv2[:, 0:HD]
    v2 = kv2[:, HD:2 * HD]
    ctx2, att2 = attention(q2, k2, v2, emask)                 # (Lq, HD), (Lq, H*Lk)
    o2 = matmul(ctx2, wo2_ref[...]) + bo2_ref[...]
    x2 = add_ln(o2, x1)

    # ---------------- position-wise FFN (Conv1d k=1 == Linear) ----------------
    hdn = jnp.maximum(matmul(x2, w1_ref[...]) + b1_ref[...], 0.0)
    y = matmul(hdn, w2_ref[...]) + b2_ref[...]

    out_ref[0] = add_ln(y, x2)
    satt_ref[0] = att1        # lane-packed (Lq, H*Lq), single dense store
    eatt_ref[0] = att2        # lane-packed (Lq, H*Lk), single dense store


# ----------------------------- wrapper ------------------------------------

def _full_spec(shape):
    zeros = (0,) * len(shape)
    return pl.BlockSpec(shape, lambda b: zeros)


def _batch_spec(shape):
    zeros = (0,) * len(shape)
    return pl.BlockSpec((1,) + shape, lambda b: (b,) + zeros)


def decoder_layer(dec_input, enc_output, dec_self_att_mask, dec_enc_att_mask,
                  kparams, n_heads, qkv_dim):
    """Fused decoder layer. Returns (out, self_att, dec_enc_att) with PyTorch layouts."""
    B, Lq, E = dec_input.shape
    Lk, ENC = enc_output.shape[1], enc_output.shape[2]

    kernel = functools.partial(_decoder_layer_kernel, n_heads=n_heads, qkv_dim=qkv_dim)

    weight_keys = ["wqkv1", "bqkv1", "wo1", "bo1",
                   "wq2", "bq2", "wkv2", "bkv2", "wo2", "bo2",
                   "w1", "b1", "w2", "b2"]
    weight_args = [kparams[k] for k in weight_keys]

    out, satt, eatt = pl.pallas_call(
        kernel,
        out_shape=(jax.ShapeDtypeStruct((B, Lq, E), jnp.float32),
                   jax.ShapeDtypeStruct((B, Lq, n_heads * Lq), jnp.float32),
                   jax.ShapeDtypeStruct((B, Lq, n_heads * Lk), jnp.float32)),
        grid=(B,),
        in_specs=[_batch_spec((Lq, E)),
                  _batch_spec((Lk, ENC)),
                  _batch_spec((Lq, Lq)),
                  _batch_spec((Lq, Lk))]
                 + [_full_spec(w.shape) for w in weight_args],
        out_specs=(_batch_spec((Lq, E)),
                   _batch_spec((Lq, n_heads * Lq)),
                   _batch_spec((Lq, n_heads * Lk))),
        compiler_params=pltpu.CompilerParams(
            dimension_semantics=("parallel",)),   # v7x: both TCs take a batch half
    )(dec_input,
      enc_output,
      dec_self_att_mask.astype(jnp.float32),
      dec_enc_att_mask.astype(jnp.float32),
      *weight_args)

    # Unpack lane-packed attention probs to PyTorch layout (B, H, Lq, Lk).
    self_att = satt.reshape(B, Lq, n_heads, Lq).transpose(0, 2, 1, 3)
    dec_enc_att = eatt.reshape(B, Lq, n_heads, Lk).transpose(0, 2, 1, 3)
    return out, self_att, dec_enc_att


# ----------------------------- param prep (one-time, outside call path) -----

def prepare_params(params, n_heads, qkv_dim):
    """Convert PyTorch-layout params (W: (Dout, Din), b: (Dout,)) into the fused,
    pre-transposed, bf16 weight layout consumed by the kernel."""
    del n_heads, qkv_dim
    sa, ca, ffn = params["dec_att"], params["dec_enc_att"], params["ffn"]

    def t(w):   # (Dout, Din) -> (Din, Dout), bf16 MXU operand
        return jnp.asarray(w).T.astype(jnp.bfloat16)

    def row(b):  # (Dout,) -> (1, Dout) f32
        return jnp.asarray(b, jnp.float32).reshape(1, -1)

    return {
        # self attention: fused QKV projection
        "wqkv1": jnp.concatenate([t(sa["wq"]), t(sa["wk"]), t(sa["wv"])], axis=1),
        "bqkv1": jnp.concatenate([row(sa["bq"]), row(sa["bk"]), row(sa["bv"])], axis=1),
        "wo1": t(sa["wo"]), "bo1": row(sa["bo"]),
        # cross attention: Q separate (different input dim), fused KV
        "wq2": t(ca["wq"]), "bq2": row(ca["bq"]),
        "wkv2": jnp.concatenate([t(ca["wk"]), t(ca["wv"])], axis=1),
        "bkv2": jnp.concatenate([row(ca["bk"]), row(ca["bv"])], axis=1),
        "wo2": t(ca["wo"]), "bo2": row(ca["bo"]),
        # FFN (Conv1d kernel_size=1 == per-position Linear)
        "w1": t(ffn["w1"]), "b1": row(ffn["b1"]),
        "w2": t(ffn["w2"]), "b2": row(ffn["b2"]),
    }


def init_mha_params(key, q_dim, k_dim, qkv_dim, n_heads):
    ks = jax.random.split(key, 8)
    d = qkv_dim * n_heads
    scale = 0.05
    return {
        "wq": jax.random.normal(ks[0], (d, q_dim), jnp.float32) * scale,
        "bq": jax.random.normal(ks[1], (d,), jnp.float32) * scale,
        "wk": jax.random.normal(ks[2], (d, k_dim), jnp.float32) * scale,
        "bk": jax.random.normal(ks[3], (d,), jnp.float32) * scale,
        "wv": jax.random.normal(ks[4], (d, k_dim), jnp.float32) * scale,
        "bv": jax.random.normal(ks[5], (d,), jnp.float32) * scale,
        "wo": jax.random.normal(ks[6], (q_dim, d), jnp.float32) * scale,
        "bo": jax.random.normal(ks[7], (q_dim,), jnp.float32) * scale,
    }


if __name__ == "__main__":
    # Small shapes consistent with the module structure
    # (enc feature dim / d_ff shrunk from 2048 for a small synthetic run).
    B = 2          # batch
    Lq = 16        # max_len (decoder sequence)
    Lk = 32        # num_pixels (encoder sequence)
    E = 64         # embed_dim
    ENC = 128      # encoder feature dim (stand-in for 2048, att_method='pixel')
    H = 4          # n_heads
    QKV = 64       # qkv_dim (hard-coded in DecoderLayer)
    DFF = 128      # d_ff (stand-in for 2048)

    key = jax.random.PRNGKey(0)
    k_in, k_enc, k_p1, k_p2, k_f1, k_f2, k_f3, k_f4 = jax.random.split(key, 8)

    dec_input = jax.random.normal(k_in, (B, Lq, E), jnp.float32)
    enc_output = jax.random.normal(k_enc, (B, Lk, ENC), jnp.float32)

    # boolean masks: True = masked (filled with -1e9), like torch masked_fill_
    causal = jnp.triu(jnp.ones((Lq, Lq), dtype=bool), k=1)
    dec_self_att_mask = jnp.broadcast_to(causal, (B, Lq, Lq))
    pad = jnp.arange(Lk) >= (Lk - 4)                     # last 4 encoder keys padded
    dec_enc_att_mask = jnp.broadcast_to(pad[None, None, :], (B, Lq, Lk))

    torch_layout_params = {
        "dec_att": init_mha_params(k_p1, q_dim=E, k_dim=E, qkv_dim=QKV, n_heads=H),
        "dec_enc_att": init_mha_params(k_p2, q_dim=E, k_dim=ENC, qkv_dim=QKV, n_heads=H),
        "ffn": {
            "w1": jax.random.normal(k_f1, (DFF, E), jnp.float32) * 0.05,  # conv1 (k=1)
            "b1": jax.random.normal(k_f2, (DFF,), jnp.float32) * 0.05,
            "w2": jax.random.normal(k_f3, (E, DFF), jnp.float32) * 0.05,  # conv2 (k=1)
            "b2": jax.random.normal(k_f4, (E,), jnp.float32) * 0.05,
        },
    }

    # One-time weight prep (transpose / fuse QKV / bf16) hoisted out of the call path.
    kparams = prepare_params(torch_layout_params, n_heads=H, qkv_dim=QKV)

    out, self_att, dec_enc_att = decoder_layer(
        dec_input, enc_output, dec_self_att_mask, dec_enc_att_mask,
        kparams, n_heads=H, qkv_dim=QKV)

    jax.block_until_ready((out, self_att, dec_enc_att))
    assert out.shape == (B, Lq, E)
    assert self_att.shape == (B, H, Lq, Lq)
    assert dec_enc_att.shape == (B, H, Lq, Lk)
    assert bool(jnp.isfinite(out).all())
    assert bool(jnp.isfinite(self_att).all())
    assert bool(jnp.isfinite(dec_enc_att).all())
    print("KERNEL_OK")
</pallas_src>

<mosaic_0001>
module attributes {stable_mosaic.version = 11 : i64} {
  func.func @_decoder_layer_kernel(%arg0: i32, %arg1: memref<1x16x64xf32, #tpu.memory_space<vmem>>, %arg2: memref<1x32x128xf32, #tpu.memory_space<vmem>>, %arg3: memref<1x16x16xf32, #tpu.memory_space<vmem>>, %arg4: memref<1x16x32xf32, #tpu.memory_space<vmem>>, %arg5: memref<64x768xbf16, #tpu.memory_space<vmem>>, %arg6: memref<1x768xf32, #tpu.memory_space<vmem>>, %arg7: memref<256x64xbf16, #tpu.memory_space<vmem>>, %arg8: memref<1x64xf32, #tpu.memory_space<vmem>>, %arg9: memref<64x256xbf16, #tpu.memory_space<vmem>>, %arg10: memref<1x256xf32, #tpu.memory_space<vmem>>, %arg11: memref<128x512xbf16, #tpu.memory_space<vmem>>, %arg12: memref<1x512xf32, #tpu.memory_space<vmem>>, %arg13: memref<256x64xbf16, #tpu.memory_space<vmem>>, %arg14: memref<1x64xf32, #tpu.memory_space<vmem>>, %arg15: memref<64x128xbf16, #tpu.memory_space<vmem>>, %arg16: memref<1x128xf32, #tpu.memory_space<vmem>>, %arg17: memref<128x64xbf16, #tpu.memory_space<vmem>>, %arg18: memref<1x64xf32, #tpu.memory_space<vmem>>, %arg19: memref<1x16x64xf32, #tpu.memory_space<vmem>>, %arg20: memref<1x16x64xf32, #tpu.memory_space<vmem>>, %arg21: memref<1x16x128xf32, #tpu.memory_space<vmem>>) attributes {dimension_semantics = [#tpu.dimension_semantics<parallel>], iteration_bounds = array<i64: 2>, scalar_prefetch = 0 : i64, scratch_operands = 0 : i64, tpu.core_type = #tpu.core_type<tc>, window_params = [{transform_indices = @transform_0, window_bounds = array<i64: 1, 16, 64>}, {transform_indices = @transform_1, window_bounds = array<i64: 1, 32, 128>}, {transform_indices = @transform_2, window_bounds = array<i64: 1, 16, 16>}, {transform_indices = @transform_3, window_bounds = array<i64: 1, 16, 32>}, {pipeline_mode = #tpu.pipeline_mode<synchronous>, transform_indices = @transform_4, window_bounds = array<i64: 64, 768>}, {pipeline_mode = #tpu.pipeline_mode<synchronous>, transform_indices = @transform_5, window_bounds = array<i64: 1, 768>}, {pipeline_mode = #tpu.pipeline_mode<synchronous>, transform_indices = @transform_6, window_bounds = array<i64: 256, 64>}, {pipeline_mode = #tpu.pipeline_mode<synchronous>, transform_indices = @transform_7, window_bounds = array<i64: 1, 64>}, {pipeline_mode = #tpu.pipeline_mode<synchronous>, transform_indices = @transform_8, window_bounds = array<i64: 64, 256>}, {pipeline_mode = #tpu.pipeline_mode<synchronous>, transform_indices = @transform_9, window_bounds = array<i64: 1, 256>}, {pipeline_mode = #tpu.pipeline_mode<synchronous>, transform_indices = @transform_10, window_bounds = array<i64: 128, 512>}, {pipeline_mode = #tpu.pipeline_mode<synchronous>, transform_indices = @transform_11, window_bounds = array<i64: 1, 512>}, {pipeline_mode = #tpu.pipeline_mode<synchronous>, transform_indices = @transform_12, window_bounds = array<i64: 256, 64>}, {pipeline_mode = #tpu.pipeline_mode<synchronous>, transform_indices = @transform_13, window_bounds = array<i64: 1, 64>}, {pipeline_mode = #tpu.pipeline_mode<synchronous>, transform_indices = @transform_14, window_bounds = array<i64: 64, 128>}, {pipeline_mode = #tpu.pipeline_mode<synchronous>, transform_indices = @transform_15, window_bounds = array<i64: 1, 128>}, {pipeline_mode = #tpu.pipeline_mode<synchronous>, transform_indices = @transform_16, window_bounds = array<i64: 128, 64>}, {pipeline_mode = #tpu.pipeline_mode<synchronous>, transform_indices = @transform_17, window_bounds = array<i64: 1, 64>}, {transform_indices = @transform_18, window_bounds = array<i64: 1, 16, 64>}, {transform_indices = @transform_19, window_bounds = array<i64: 1, 16, 64>}, {transform_indices = @transform_20, window_bounds = array<i64: 1, 16, 128>}]} {
    %c0 = arith.constant 0 : index
    %c0_0 = arith.constant 0 : index
    %c0_1 = arith.constant 0 : index
    %0 = vector.load %arg1[%c0, %c0_0, %c0_1] : memref<1x16x64xf32, #tpu.memory_space<vmem>>, vector<1x16x64xf32>
    %1 = vector.shape_cast %0 : vector<1x16x64xf32> to vector<16x64xf32>
    %c0_2 = arith.constant 0 : index
    %c0_3 = arith.constant 0 : index
    %c0_4 = arith.constant 0 : index
    %2 = vector.load %arg2[%c0_2, %c0_3, %c0_4] : memref<1x32x128xf32, #tpu.memory_space<vmem>>, vector<1x32x128xf32>
    %3 = vector.shape_cast %2 : vector<1x32x128xf32> to vector<32x128xf32>
    %c0_5 = arith.constant 0 : index
    %c0_6 = arith.constant 0 : index
    %c0_7 = arith.constant 0 : index
    %4 = vector.load %arg3[%c0_5, %c0_6, %c0_7] : memref<1x16x16xf32, #tpu.memory_space<vmem>>, vector<1x16x16xf32>
    %5 = vector.shape_cast %4 : vector<1x16x16xf32> to vector<16x16xf32>
    %c0_8 = arith.constant 0 : index
    %c0_9 = arith.constant 0 : index
    %c0_10 = arith.constant 0 : index
    %6 = vector.load %arg4[%c0_8, %c0_9, %c0_10] : memref<1x16x32xf32, #tpu.memory_space<vmem>>, vector<1x16x32xf32>
    %7 = vector.shape_cast %6 : vector<1x16x32xf32> to vector<16x32xf32>
    %c0_11 = arith.constant 0 : index
    %c0_12 = arith.constant 0 : index
    %8 = vector.load %arg5[%c0_11, %c0_12] : memref<64x768xbf16, #tpu.memory_space<vmem>>, vector<64x768xbf16>
    %9 = arith.truncf %1 : vector<16x64xf32> to vector<16x64xbf16>
    %cst = arith.constant dense<0.000000e+00> : vector<16x768xf32>
    %10 = tpu.matmul %9, %8, %cst {dimension_numbers = #tpu.dot_dimension_numbers<[1], [0], [0], [1], [0, 0, 1, 1], [], []>} : vector<16x64xbf16>, vector<64x768xbf16>, vector<16x768xf32> -> vector<16x768xf32>
    %c0_13 = arith.constant 0 : index
    %c0_14 = arith.constant 0 : index
    %11 = vector.load %arg6[%c0_13, %c0_14] : memref<1x768xf32, #tpu.memory_space<vmem>>, vector<1x768xf32>
    %12 = vector.broadcast %11 : vector<1x768xf32> to vector<16x768xf32>
    %13 = arith.addf %10, %12 : vector<16x768xf32>
    %14 = vector.extract_strided_slice %13 {offsets = [0, 0], sizes = [16, 256], strides = [1, 1]} : vector<16x768xf32> to vector<16x256xf32>
    %15 = vector.extract_strided_slice %13 {offsets = [0, 256], sizes = [16, 256], strides = [1, 1]} : vector<16x768xf32> to vector<16x256xf32>
    %16 = vector.extract_strided_slice %13 {offsets = [0, 512], sizes = [16, 256], strides = [1, 1]} : vector<16x768xf32> to vector<16x256xf32>
    %17 = vector.extract_strided_slice %14 {offsets = [0, 0], sizes = [16, 64], strides = [1, 1]} : vector<16x256xf32> to vector<16x64xf32>
    %18 = vector.extract_strided_slice %15 {offsets = [0, 0], sizes = [16, 64], strides = [1, 1]} : vector<16x256xf32> to vector<16x64xf32>
    %19 = vector.extract_strided_slice %16 {offsets = [0, 0], sizes = [16, 64], strides = [1, 1]} : vector<16x256xf32> to vector<16x64xf32>
    %20 = arith.truncf %17 : vector<16x64xf32> to vector<16x64xbf16>
    %21 = arith.truncf %18 : vector<16x64xf32> to vector<16x64xbf16>
    %cst_15 = arith.constant dense<0.000000e+00> : vector<16x16xf32>
    %22 = tpu.matmul %20, %21, %cst_15 {dimension_numbers = #tpu.dot_dimension_numbers<[1], [1], [0], [0], [0, 0, 1, 0], [], []>} : vector<16x64xbf16>, vector<16x64xbf16>, vector<16x16xf32> -> vector<16x16xf32>
    %cst_16 = arith.constant 1.250000e-01 : f32
    %23 = vector.broadcast %cst_16 : f32 to vector<16x16xf32>
    %24 = arith.mulf %22, %23 : vector<16x16xf32>
    %cst_17 = arith.constant 5.000000e-01 : f32
    %25 = vector.broadcast %cst_17 : f32 to vector<16x16xf32>
    %26 = arith.cmpf ogt, %5, %25 : vector<16x16xf32>
    %cst_18 = arith.constant -1.000000e+09 : f32
    %27 = vector.broadcast %cst_18 : f32 to vector<16x16xf32>
    %28 = arith.select %26, %27, %24 : vector<16x16xi1>, vector<16x16xf32>
    %cst_19 = arith.constant dense<0xFF800000> : vector<16xf32>
    %29 = vector.multi_reduction <maximumf>, %28, %cst_19 [1] : vector<16x16xf32> to vector<16xf32>
    %30 = vector.shape_cast %29 : vector<16xf32> to vector<16x1xf32>
    %31 = vector.broadcast %30 : vector<16x1xf32> to vector<16x16xf32>
    %32 = arith.subf %28, %31 : vector<16x16xf32>
    %33 = math.exp %32 : vector<16x16xf32>
    %cst_20 = arith.constant dense<0.000000e+00> : vector<16xf32>
    %34 = vector.multi_reduction <add>, %33, %cst_20 [1] : vector<16x16xf32> to vector<16xf32>
    %35 = vector.shape_cast %34 : vector<16xf32> to vector<16x1xf32>
    %36 = tpu.reciprocal %35 {approx = true} : vector<16x1xf32> -> vector<16x1xf32>
    %37 = vector.broadcast %36 : vector<16x1xf32> to vector<16x16xf32>
    %38 = arith.mulf %33, %37 : vector<16x16xf32>
    %39 = arith.truncf %38 : vector<16x16xf32> to vector<16x16xbf16>
    %40 = arith.truncf %19 : vector<16x64xf32> to vector<16x64xbf16>
    %cst_21 = arith.constant dense<0.000000e+00> : vector<16x64xf32>
    %41 = tpu.matmul %39, %40, %cst_21 {dimension_numbers = #tpu.dot_dimension_numbers<[1], [0], [0], [1], [0, 0, 1, 1], [], []>} : vector<16x16xbf16>, vector<16x64xbf16>, vector<16x64xf32> -> vector<16x64xf32>
    %42 = vector.extract_strided_slice %14 {offsets = [0, 64], sizes = [16, 64], strides = [1, 1]} : vector<16x256xf32> to vector<16x64xf32>
    %43 = vector.extract_strided_slice %15 {offsets = [0, 64], sizes = [16, 64], strides = [1, 1]} : vector<16x256xf32> to vector<16x64xf32>
    %44 = vector.extract_strided_slice %16 {offsets = [0, 64], sizes = [16, 64], strides = [1, 1]} : vector<16x256xf32> to vector<16x64xf32>
    %45 = arith.truncf %42 : vector<16x64xf32> to vector<16x64xbf16>
    %46 = arith.truncf %43 : vector<16x64xf32> to vector<16x64xbf16>
    %cst_22 = arith.constant dense<0.000000e+00> : vector<16x16xf32>
    %47 = tpu.matmul %45, %46, %cst_22 {dimension_numbers = #tpu.dot_dimension_numbers<[1], [1], [0], [0], [0, 0, 1, 0], [], []>} : vector<16x64xbf16>, vector<16x64xbf16>, vector<16x16xf32> -> vector<16x16xf32>
    %cst_23 = arith.constant 1.250000e-01 : f32
    %48 = vector.broadcast %cst_23 : f32 to vector<16x16xf32>
    %49 = arith.mulf %47, %48 : vector<16x16xf32>
    %cst_24 = arith.constant 5.000000e-01 : f32
    %50 = vector.broadcast %cst_24 : f32 to vector<16x16xf32>
    %51 = arith.cmpf ogt, %5, %50 : vector<16x16xf32>
    %cst_25 = arith.constant -1.000000e+09 : f32
    %52 = vector.broadcast %cst_25 : f32 to vector<16x16xf32>
    %53 = arith.select %51, %52, %49 : vector<16x16xi1>, vector<16x16xf32>
    %cst_26 = arith.constant dense<0xFF800000> : vector<16xf32>
    %54 = vector.multi_reduction <maximumf>, %53, %cst_26 [1] : vector<16x16xf32> to vector<16xf32>
    %55 = vector.shape_cast %54 : vector<16xf32> to vector<16x1xf32>
    %56 = vector.broadcast %55 : vector<16x1xf32> to vector<16x16xf32>
    %57 = arith.subf %53, %56 : vector<16x16xf32>
    %58 = math.exp %57 : vector<16x16xf32>
    %cst_27 = arith.constant dense<0.000000e+00> : vector<16xf32>
    %59 = vector.multi_reduction <add>, %58, %cst_27 [1] : vector<16x16xf32> to vector<16xf32>
    %60 = vector.shape_cast %59 : vector<16xf32> to vector<16x1xf32>
    %61 = tpu.reciprocal %60 {approx = true} : vector<16x1xf32> -> vector<16x1xf32>
    %62 = vector.broadcast %61 : vector<16x1xf32> to vector<16x16xf32>
    %63 = arith.mulf %58, %62 : vector<16x16xf32>
    %64 = arith.truncf %63 : vector<16x16xf32> to vector<16x16xbf16>
    %65 = arith.truncf %44 : vector<16x64xf32> to vector<16x64xbf16>
    %cst_28 = arith.constant dense<0.000000e+00> : vector<16x64xf32>
    %66 = tpu.matmul %64, %65, %cst_28 {dimension_numbers = #tpu.dot_dimension_numbers<[1], [0], [0], [1], [0, 0, 1, 1], [], []>} : vector<16x16xbf16>, vector<16x64xbf16>, vector<16x64xf32> -> vector<16x64xf32>
    %67 = vector.extract_strided_slice %14 {offsets = [0, 128], sizes = [16, 64], strides = [1, 1]} : vector<16x256xf32> to vector<16x64xf32>
    %68 = vector.extract_strided_slice %15 {offsets = [0, 128], sizes = [16, 64], strides = [1, 1]} : vector<16x256xf32> to vector<16x64xf32>
    %69 = vector.extract_strided_slice %16 {offsets = [0, 128], sizes = [16, 64], strides = [1, 1]} : vector<16x256xf32> to vector<16x64xf32>
    %70 = arith.truncf %67 : vector<16x64xf32> to vector<16x64xbf16>
    %71 = arith.truncf %68 : vector<16x64xf32> to vector<16x64xbf16>
    %cst_29 = arith.constant dense<0.000000e+00> : vector<16x16xf32>
    %72 = tpu.matmul %70, %71, %cst_29 {dimension_numbers = #tpu.dot_dimension_numbers<[1], [1], [0], [0], [0, 0, 1, 0], [], []>} : vector<16x64xbf16>, vector<16x64xbf16>, vector<16x16xf32> -> vector<16x16xf32>
    %cst_30 = arith.constant 1.250000e-01 : f32
    %73 = vector.broadcast %cst_30 : f32 to vector<16x16xf32>
    %74 = arith.mulf %72, %73 : vector<16x16xf32>
    %cst_31 = arith.constant 5.000000e-01 : f32
    %75 = vector.broadcast %cst_31 : f32 to vector<16x16xf32>
    %76 = arith.cmpf ogt, %5, %75 : vector<16x16xf32>
    %cst_32 = arith.constant -1.000000e+09 : f32
    %77 = vector.broadcast %cst_32 : f32 to vector<16x16xf32>
    %78 = arith.select %76, %77, %74 : vector<16x16xi1>, vector<16x16xf32>
    %cst_33 = arith.constant dense<0xFF800000> : vector<16xf32>
    %79 = vector.multi_reduction <maximumf>, %78, %cst_33 [1] : vector<16x16xf32> to vector<16xf32>
    %80 = vector.shape_cast %79 : vector<16xf32> to vector<16x1xf32>
    %81 = vector.broadcast %80 : vector<16x1xf32> to vector<16x16xf32>
    %82 = arith.subf %78, %81 : vector<16x16xf32>
    %83 = math.exp %82 : vector<16x16xf32>
    %cst_34 = arith.constant dense<0.000000e+00> : vector<16xf32>
    %84 = vector.multi_reduction <add>, %83, %cst_34 [1] : vector<16x16xf32> to vector<16xf32>
    %85 = vector.shape_cast %84 : vector<16xf32> to vector<16x1xf32>
    %86 = tpu.reciprocal %85 {approx = true} : vector<16x1xf32> -> vector<16x1xf32>
    %87 = vector.broadcast %86 : vector<16x1xf32> to vector<16x16xf32>
    %88 = arith.mulf %83, %87 : vector<16x16xf32>
    %89 = arith.truncf %88 : vector<16x16xf32> to vector<16x16xbf16>
    %90 = arith.truncf %69 : vector<16x64xf32> to vector<16x64xbf16>
    %cst_35 = arith.constant dense<0.000000e+00> : vector<16x64xf32>
    %91 = tpu.matmul %89, %90, %cst_35 {dimension_numbers = #tpu.dot_dimension_numbers<[1], [0], [0], [1], [0, 0, 1, 1], [], []>} : vector<16x16xbf16>, vector<16x64xbf16>, vector<16x64xf32> -> vector<16x64xf32>
    %92 = vector.extract_strided_slice %14 {offsets = [0, 192], sizes = [16, 64], strides = [1, 1]} : vector<16x256xf32> to vector<16x64xf32>
    %93 = vector.extract_strided_slice %15 {offsets = [0, 192], sizes = [16, 64], strides = [1, 1]} : vector<16x256xf32> to vector<16x64xf32>
    %94 = vector.extract_strided_slice %16 {offsets = [0, 192], sizes = [16, 64], strides = [1, 1]} : vector<16x256xf32> to vector<16x64xf32>
    %95 = arith.truncf %92 : vector<16x64xf32> to vector<16x64xbf16>
    %96 = arith.truncf %93 : vector<16x64xf32> to vector<16x64xbf16>
    %cst_36 = arith.constant dense<0.000000e+00> : vector<16x16xf32>
    %97 = tpu.matmul %95, %96, %cst_36 {dimension_numbers = #tpu.dot_dimension_numbers<[1], [1], [0], [0], [0, 0, 1, 0], [], []>} : vector<16x64xbf16>, vector<16x64xbf16>, vector<16x16xf32> -> vector<16x16xf32>
    %cst_37 = arith.constant 1.250000e-01 : f32
    %98 = vector.broadcast %cst_37 : f32 to vector<16x16xf32>
    %99 = arith.mulf %97, %98 : vector<16x16xf32>
    %cst_38 = arith.constant 5.000000e-01 : f32
    %100 = vector.broadcast %cst_38 : f32 to vector<16x16xf32>
    %101 = arith.cmpf ogt, %5, %100 : vector<16x16xf32>
    %cst_39 = arith.constant -1.000000e+09 : f32
    %102 = vector.broadcast %cst_39 : f32 to vector<16x16xf32>
    %103 = arith.select %101, %102, %99 : vector<16x16xi1>, vector<16x16xf32>
    %cst_40 = arith.constant dense<0xFF800000> : vector<16xf32>
    %104 = vector.multi_reduction <maximumf>, %103, %cst_40 [1] : vector<16x16xf32> to vector<16xf32>
    %105 = vector.shape_cast %104 : vector<16xf32> to vector<16x1xf32>
    %106 = vector.broadcast %105 : vector<16x1xf32> to vector<16x16xf32>
    %107 = arith.subf %103, %106 : vector<16x16xf32>
    %108 = math.exp %107 : vector<16x16xf32>
    %cst_41 = arith.constant dense<0.000000e+00> : vector<16xf32>
    %109 = vector.multi_reduction <add>, %108, %cst_41 [1] : vector<16x16xf32> to vector<16xf32>
    %110 = vector.shape_cast %109 : vector<16xf32> to vector<16x1xf32>
    %111 = tpu.reciprocal %110 {approx = true} : vector<16x1xf32> -> vector<16x1xf32>
    %112 = vector.broadcast %111 : vector<16x1xf32> to vector<16x16xf32>
    %113 = arith.mulf %108, %112 : vector<16x16xf32>
    %114 = arith.truncf %113 : vector<16x16xf32> to vector<16x16xbf16>
    %115 = arith.truncf %94 : vector<16x64xf32> to vector<16x64xbf16>
    %cst_42 = arith.constant dense<0.000000e+00> : vector<16x64xf32>
    %116 = tpu.matmul %114, %115, %cst_42 {dimension_numbers = #tpu.dot_dimension_numbers<[1], [0], [0], [1], [0, 0, 1, 1], [], []>} : vector<16x16xbf16>, vector<16x64xbf16>, vector<16x64xf32> -> vector<16x64xf32>
    %117 = tpu.concatenate %41, %66, %91, %116 in 1 : vector<16x64xf32>, vector<16x64xf32>, vector<16x64xf32>, vector<16x64xf32> -> vector<16x256xf32>
    %118 = tpu.concatenate %38, %63, %88, %113 in 1 : vector<16x16xf32>, vector<16x16xf32>, vector<16x16xf32>, vector<16x16xf32> -> vector<16x64xf32>
    %c0_43 = arith.constant 0 : index
    %c0_44 = arith.constant 0 : index
    %119 = vector.load %arg7[%c0_43, %c0_44] : memref<256x64xbf16, #tpu.memory_space<vmem>>, vector<256x64xbf16>
    %120 = arith.truncf %117 : vector<16x256xf32> to vector<16x256xbf16>
    %cst_45 = arith.constant dense<0.000000e+00> : vector<16x64xf32>
    %121 = tpu.matmul %120, %119, %cst_45 {dimension_numbers = #tpu.dot_dimension_numbers<[1], [0], [0], [1], [0, 0, 1, 1], [], []>} : vector<16x256xbf16>, vector<256x64xbf16>, vector<16x64xf32> -> vector<16x64xf32>
    %c0_46 = arith.constant 0 : index
    %c0_47 = arith.constant 0 : index
    %122 = vector.load %arg8[%c0_46, %c0_47] : memref<1x64xf32, #tpu.memory_space<vmem>>, vector<1x64xf32>
    %123 = vector.broadcast %122 : vector<1x64xf32> to vector<16x64xf32>
    %124 = arith.addf %121, %123 : vector<16x64xf32>
    %125 = arith.addf %124, %1 : vector<16x64xf32>
    %cst_48 = arith.constant dense<0.000000e+00> : vector<16xf32>
    %126 = vector.multi_reduction <add>, %125, %cst_48 [1] : vector<16x64xf32> to vector<16xf32>
    %127 = vector.shape_cast %126 : vector<16xf32> to vector<16x1xf32>
    %cst_49 = arith.constant 6.400000e+01 : f32
    %128 = vector.broadcast %cst_49 : f32 to vector<16x1xf32>
    %129 = arith.divf %127, %128 : vector<16x1xf32>
    %130 = vector.broadcast %129 : vector<16x1xf32> to vector<16x64xf32>
    %131 = arith.subf %125, %130 : vector<16x64xf32>
    %132 = arith.mulf %131, %131 : vector<16x64xf32>
    %cst_50 = arith.constant dense<0.000000e+00> : vector<16xf32>
    %133 = vector.multi_reduction <add>, %132, %cst_50 [1] : vector<16x64xf32> to vector<16xf32>
    %134 = vector.shape_cast %133 : vector<16xf32> to vector<16x1xf32>
    %cst_51 = arith.constant 6.400000e+01 : f32
    %135 = vector.broadcast %cst_51 : f32 to vector<16x1xf32>
    %136 = arith.divf %134, %135 : vector<16x1xf32>
    %137 = vector.broadcast %129 : vector<16x1xf32> to vector<16x64xf32>
    %138 = arith.subf %125, %137 : vector<16x64xf32>
    %cst_52 = arith.constant 9.99999974E-6 : f32
    %139 = vector.broadcast %cst_52 : f32 to vector<16x1xf32>
    %140 = arith.addf %136, %139 : vector<16x1xf32>
    %141 = math.rsqrt %140 : vector<16x1xf32>
    %142 = vector.broadcast %141 : vector<16x1xf32> to vector<16x64xf32>
    %143 = arith.mulf %138, %142 : vector<16x64xf32>
    %c0_53 = arith.constant 0 : index
    %c0_54 = arith.constant 0 : index
    %144 = vector.load %arg9[%c0_53, %c0_54] : memref<64x256xbf16, #tpu.memory_space<vmem>>, vector<64x256xbf16>
    %145 = arith.truncf %143 : vector<16x64xf32> to vector<16x64xbf16>
    %cst_55 = arith.constant dense<0.000000e+00> : vector<16x256xf32>
    %146 = tpu.matmul %145, %144, %cst_55 {dimension_numbers = #tpu.dot_dimension_numbers<[1], [0], [0], [1], [0, 0, 1, 1], [], []>} : vector<16x64xbf16>, vector<64x256xbf16>, vector<16x256xf32> -> vector<16x256xf32>
    %c0_56 = arith.constant 0 : index
    %c0_57 = arith.constant 0 : index
    %147 = vector.load %arg10[%c0_56, %c0_57] : memref<1x256xf32, #tpu.memory_space<vmem>>, vector<1x256xf32>
    %148 = vector.broadcast %147 : vector<1x256xf32> to vector<16x256xf32>
    %149 = arith.addf %146, %148 : vector<16x256xf32>
    %c0_58 = arith.constant 0 : index
    %c0_59 = arith.constant 0 : index
    %150 = vector.load %arg11[%c0_58, %c0_59] : memref<128x512xbf16, #tpu.memory_space<vmem>>, vector<128x512xbf16>
    %151 = arith.truncf %3 : vector<32x128xf32> to vector<32x128xbf16>
    %cst_60 = arith.constant dense<0.000000e+00> : vector<32x512xf32>
    %152 = tpu.matmul %151, %150, %cst_60 {dimension_numbers = #tpu.dot_dimension_numbers<[1], [0], [0], [1], [0, 0, 1, 1], [], []>} : vector<32x128xbf16>, vector<128x512xbf16>, vector<32x512xf32> -> vector<32x512xf32>
    %c0_61 = arith.constant 0 : index
    %c0_62 = arith.constant 0 : index
    %153 = vector.load %arg12[%c0_61, %c0_62] : memref<1x512xf32, #tpu.memory_space<vmem>>, vector<1x512xf32>
    %154 = vector.broadcast %153 : vector<1x512xf32> to vector<32x512xf32>
    %155 = arith.addf %152, %154 : vector<32x512xf32>
    %156 = vector.extract_strided_slice %155 {offsets = [0, 0], sizes = [32, 256], strides = [1, 1]} : vector<32x512xf32> to vector<32x256xf32>
    %157 = vector.extract_strided_slice %155 {offsets = [0, 256], sizes = [32, 256], strides = [1, 1]} : vector<32x512xf32> to vector<32x256xf32>
    %158 = vector.extract_strided_slice %149 {offsets = [0, 0], sizes = [16, 64], strides = [1, 1]} : vector<16x256xf32> to vector<16x64xf32>
    %159 = vector.extract_strided_slice %156 {offsets = [0, 0], sizes = [32, 64], strides = [1, 1]} : vector<32x256xf32> to vector<32x64xf32>
    %160 = vector.extract_strided_slice %157 {offsets = [0, 0], sizes = [32, 64], strides = [1, 1]} : vector<32x256xf32> to vector<32x64xf32>
    %161 = arith.truncf %158 : vector<16x64xf32> to vector<16x64xbf16>
    %162 = arith.truncf %159 : vector<32x64xf32> to vector<32x64xbf16>
    %cst_63 = arith.constant dense<0.000000e+00> : vector<16x32xf32>
    %163 = tpu.matmul %161, %162, %cst_63 {dimension_numbers = #tpu.dot_dimension_numbers<[1], [1], [0], [0], [0, 0, 1, 0], [], []>} : vector<16x64xbf16>, vector<32x64xbf16>, vector<16x32xf32> -> vector<16x32xf32>
    %cst_64 = arith.constant 1.250000e-01 : f32
    %164 = vector.broadcast %cst_64 : f32 to vector<16x32xf32>
    %165 = arith.mulf %163, %164 : vector<16x32xf32>
    %cst_65 = arith.constant 5.000000e-01 : f32
    %166 = vector.broadcast %cst_65 : f32 to vector<16x32xf32>
    %167 = arith.cmpf ogt, %7, %166 : vector<16x32xf32>
    %cst_66 = arith.constant -1.000000e+09 : f32
    %168 = vector.broadcast %cst_66 : f32 to vector<16x32xf32>
    %169 = arith.select %167, %168, %165 : vector<16x32xi1>, vector<16x32xf32>
    %cst_67 = arith.constant dense<0xFF800000> : vector<16xf32>
    %170 = vector.multi_reduction <maximumf>, %169, %cst_67 [1] : vector<16x32xf32> to vector<16xf32>
    %171 = vector.shape_cast %170 : vector<16xf32> to vector<16x1xf32>
    %172 = vector.broadcast %171 : vector<16x1xf32> to vector<16x32xf32>
    %173 = arith.subf %169, %172 : vector<16x32xf32>
    %174 = math.exp %173 : vector<16x32xf32>
    %cst_68 = arith.constant dense<0.000000e+00> : vector<16xf32>
    %175 = vector.multi_reduction <add>, %174, %cst_68 [1] : vector<16x32xf32> to vector<16xf32>
    %176 = vector.shape_cast %175 : vector<16xf32> to vector<16x1xf32>
    %177 = tpu.reciprocal %176 {approx = true} : vector<16x1xf32> -> vector<16x1xf32>
    %178 = vector.broadcast %177 : vector<16x1xf32> to vector<16x32xf32>
    %179 = arith.mulf %174, %178 : vector<16x32xf32>
    %180 = arith.truncf %179 : vector<16x32xf32> to vector<16x32xbf16>
    %181 = arith.truncf %160 : vector<32x64xf32> to vector<32x64xbf16>
    %cst_69 = arith.constant dense<0.000000e+00> : vector<16x64xf32>
    %182 = tpu.matmul %180, %181, %cst_69 {dimension_numbers = #tpu.dot_dimension_numbers<[1], [0], [0], [1], [0, 0, 1, 1], [], []>} : vector<16x32xbf16>, vector<32x64xbf16>, vector<16x64xf32> -> vector<16x64xf32>
    %183 = vector.extract_strided_slice %149 {offsets = [0, 64], sizes = [16, 64], strides = [1, 1]} : vector<16x256xf32> to vector<16x64xf32>
    %184 = vector.extract_strided_slice %156 {offsets = [0, 64], sizes = [32, 64], strides = [1, 1]} : vector<32x256xf32> to vector<32x64xf32>
    %185 = vector.extract_strided_slice %157 {offsets = [0, 64], sizes = [32, 64], strides = [1, 1]} : vector<32x256xf32> to vector<32x64xf32>
    %186 = arith.truncf %183 : vector<16x64xf32> to vector<16x64xbf16>
    %187 = arith.truncf %184 : vector<32x64xf32> to vector<32x64xbf16>
    %cst_70 = arith.constant dense<0.000000e+00> : vector<16x32xf32>
    %188 = tpu.matmul %186, %187, %cst_70 {dimension_numbers = #tpu.dot_dimension_numbers<[1], [1], [0], [0], [0, 0, 1, 0], [], []>} : vector<16x64xbf16>, vector<32x64xbf16>, vector<16x32xf32> -> vector<16x32xf32>
    %cst_71 = arith.constant 1.250000e-01 : f32
    %189 = vector.broadcast %cst_71 : f32 to vector<16x32xf32>
    %190 = arith.mulf %188, %189 : vector<16x32xf32>
    %cst_72 = arith.constant 5.000000e-01 : f32
    %191 = vector.broadcast %cst_72 : f32 to vector<16x32xf32>
    %192 = arith.cmpf ogt, %7, %191 : vector<16x32xf32>
    %cst_73 = arith.constant -1.000000e+09 : f32
    %193 = vector.broadcast %cst_73 : f32 to vector<16x32xf32>
    %194 = arith.select %192, %193, %190 : vector<16x32xi1>, vector<16x32xf32>
    %cst_74 = arith.constant dense<0xFF800000> : vector<16xf32>
    %195 = vector.multi_reduction <maximumf>, %194, %cst_74 [1] : vector<16x32xf32> to vector<16xf32>
    %196 = vector.shape_cast %195 : vector<16xf32> to vector<16x1xf32>
    %197 = vector.broadcast %196 : vector<16x1xf32> to vector<16x32xf32>
    %198 = arith.subf %194, %197 : vector<16x32xf32>
    %199 = math.exp %198 : vector<16x32xf32>
    %cst_75 = arith.constant dense<0.000000e+00> : vector<16xf32>
    %200 = vector.multi_reduction <add>, %199, %cst_75 [1] : vector<16x32xf32> to vector<16xf32>
    %201 = vector.shape_cast %200 : vector<16xf32> to vector<16x1xf32>
    %202 = tpu.reciprocal %201 {approx = true} : vector<16x1xf32> -> vector<16x1xf32>
    %203 = vector.broadcast %202 : vector<16x1xf32> to vector<16x32xf32>
    %204 = arith.mulf %199, %203 : vector<16x32xf32>
    %205 = arith.truncf %204 : vector<16x32xf32> to vector<16x32xbf16>
    %206 = arith.truncf %185 : vector<32x64xf32> to vector<32x64xbf16>
    %cst_76 = arith.constant dense<0.000000e+00> : vector<16x64xf32>
    %207 = tpu.matmul %205, %206, %cst_76 {dimension_numbers = #tpu.dot_dimension_numbers<[1], [0], [0], [1], [0, 0, 1, 1], [], []>} : vector<16x32xbf16>, vector<32x64xbf16>, vector<16x64xf32> -> vector<16x64xf32>
    %208 = vector.extract_strided_slice %149 {offsets = [0, 128], sizes = [16, 64], strides = [1, 1]} : vector<16x256xf32> to vector<16x64xf32>
    %209 = vector.extract_strided_slice %156 {offsets = [0, 128], sizes = [32, 64], strides = [1, 1]} : vector<32x256xf32> to vector<32x64xf32>
    %210 = vector.extract_strided_slice %157 {offsets = [0, 128], sizes = [32, 64], strides = [1, 1]} : vector<32x256xf32> to vector<32x64xf32>
    %211 = arith.truncf %208 : vector<16x64xf32> to vector<16x64xbf16>
    %212 = arith.truncf %209 : vector<32x64xf32> to vector<32x64xbf16>
    %cst_77 = arith.constant dense<0.000000e+00> : vector<16x32xf32>
    %213 = tpu.matmul %211, %212, %cst_77 {dimension_numbers = #tpu.dot_dimension_numbers<[1], [1], [0], [0], [0, 0, 1, 0], [], []>} : vector<16x64xbf16>, vector<32x64xbf16>, vector<16x32xf32> -> vector<16x32xf32>
    %cst_78 = arith.constant 1.250000e-01 : f32
    %214 = vector.broadcast %cst_78 : f32 to vector<16x32xf32>
    %215 = arith.mulf %213, %214 : vector<16x32xf32>
    %cst_79 = arith.constant 5.000000e-01 : f32
    %216 = vector.broadcast %cst_79 : f32 to vector<16x32xf32>
    %217 = arith.cmpf ogt, %7, %216 : vector<16x32xf32>
    %cst_80 = arith.constant -1.000000e+09 : f32
    %218 = vector.broadcast %cst_80 : f32 to vector<16x32xf32>
    %219 = arith.select %217, %218, %215 : vector<16x32xi1>, vector<16x32xf32>
    %cst_81 = arith.constant dense<0xFF800000> : vector<16xf32>
    %220 = vector.multi_reduction <maximumf>, %219, %cst_81 [1] : vector<16x32xf32> to vector<16xf32>
    %221 = vector.shape_cast %220 : vector<16xf32> to vector<16x1xf32>
    %222 = vector.broadcast %221 : vector<16x1xf32> to vector<16x32xf32>
    %223 = arith.subf %219, %222 : vector<16x32xf32>
    %224 = math.exp %223 : vector<16x32xf32>
    %cst_82 = arith.constant dense<0.000000e+00> : vector<16xf32>
    %225 = vector.multi_reduction <add>, %224, %cst_82 [1] : vector<16x32xf32> to vector<16xf32>
    %226 = vector.shape_cast %225 : vector<16xf32> to vector<16x1xf32>
    %227 = tpu.reciprocal %226 {approx = true} : vector<16x1xf32> -> vector<16x1xf32>
    %228 = vector.broadcast %227 : vector<16x1xf32> to vector<16x32xf32>
    %229 = arith.mulf %224, %228 : vector<16x32xf32>
    %230 = arith.truncf %229 : vector<16x32xf32> to vector<16x32xbf16>
    %231 = arith.truncf %210 : vector<32x64xf32> to vector<32x64xbf16>
    %cst_83 = arith.constant dense<0.000000e+00> : vector<16x64xf32>
    %232 = tpu.matmul %230, %231, %cst_83 {dimension_numbers = #tpu.dot_dimension_numbers<[1], [0], [0], [1], [0, 0, 1, 1], [], []>} : vector<16x32xbf16>, vector<32x64xbf16>, vector<16x64xf32> -> vector<16x64xf32>
    %233 = vector.extract_strided_slice %149 {offsets = [0, 192], sizes = [16, 64], strides = [1, 1]} : vector<16x256xf32> to vector<16x64xf32>
    %234 = vector.extract_strided_slice %156 {offsets = [0, 192], sizes = [32, 64], strides = [1, 1]} : vector<32x256xf32> to vector<32x64xf32>
    %235 = vector.extract_strided_slice %157 {offsets = [0, 192], sizes = [32, 64], strides = [1, 1]} : vector<32x256xf32> to vector<32x64xf32>
    %236 = arith.truncf %233 : vector<16x64xf32> to vector<16x64xbf16>
    %237 = arith.truncf %234 : vector<32x64xf32> to vector<32x64xbf16>
    %cst_84 = arith.constant dense<0.000000e+00> : vector<16x32xf32>
    %238 = tpu.matmul %236, %237, %cst_84 {dimension_numbers = #tpu.dot_dimension_numbers<[1], [1], [0], [0], [0, 0, 1, 0], [], []>} : vector<16x64xbf16>, vector<32x64xbf16>, vector<16x32xf32> -> vector<16x32xf32>
    %cst_85 = arith.constant 1.250000e-01 : f32
    %239 = vector.broadcast %cst_85 : f32 to vector<16x32xf32>
    %240 = arith.mulf %238, %239 : vector<16x32xf32>
    %cst_86 = arith.constant 5.000000e-01 : f32
    %241 = vector.broadcast %cst_86 : f32 to vector<16x32xf32>
    %242 = arith.cmpf ogt, %7, %241 : vector<16x32xf32>
    %cst_87 = arith.constant -1.000000e+09 : f32
    %243 = vector.broadcast %cst_87 : f32 to vector<16x32xf32>
    %244 = arith.select %242, %243, %240 : vector<16x32xi1>, vector<16x32xf32>
    %cst_88 = arith.constant dense<0xFF800000> : vector<16xf32>
    %245 = vector.multi_reduction <maximumf>, %244, %cst_88 [1] : vector<16x32xf32> to vector<16xf32>
    %246 = vector.shape_cast %245 : vector<16xf32> to vector<16x1xf32>
    %247 = vector.broadcast %246 : vector<16x1xf32> to vector<16x32xf32>
    %248 = arith.subf %244, %247 : vector<16x32xf32>
    %249 = math.exp %248 : vector<16x32xf32>
    %cst_89 = arith.constant dense<0.000000e+00> : vector<16xf32>
    %250 = vector.multi_reduction <add>, %249, %cst_89 [1] : vector<16x32xf32> to vector<16xf32>
    %251 = vector.shape_cast %250 : vector<16xf32> to vector<16x1xf32>
    %252 = tpu.reciprocal %251 {approx = true} : vector<16x1xf32> -> vector<16x1xf32>
    %253 = vector.broadcast %252 : vector<16x1xf32> to vector<16x32xf32>
    %254 = arith.mulf %249, %253 : vector<16x32xf32>
    %255 = arith.truncf %254 : vector<16x32xf32> to vector<16x32xbf16>
    %256 = arith.truncf %235 : vector<32x64xf32> to vector<32x64xbf16>
    %cst_90 = arith.constant dense<0.000000e+00> : vector<16x64xf32>
    %257 = tpu.matmul %255, %256, %cst_90 {dimension_numbers = #tpu.dot_dimension_numbers<[1], [0], [0], [1], [0, 0, 1, 1], [], []>} : vector<16x32xbf16>, vector<32x64xbf16>, vector<16x64xf32> -> vector<16x64xf32>
    %258 = tpu.concatenate %182, %207, %232, %257 in 1 : vector<16x64xf32>, vector<16x64xf32>, vector<16x64xf32>, vector<16x64xf32> -> vector<16x256xf32>
    %259 = tpu.concatenate %179, %204, %229, %254 in 1 : vector<16x32xf32>, vector<16x32xf32>, vector<16x32xf32>, vector<16x32xf32> -> vector<16x128xf32>
    %c0_91 = arith.constant 0 : index
    %c0_92 = arith.constant 0 : index
    %260 = vector.load %arg13[%c0_91, %c0_92] : memref<256x64xbf16, #tpu.memory_space<vmem>>, vector<256x64xbf16>
    %261 = arith.truncf %258 : vector<16x256xf32> to vector<16x256xbf16>
    %cst_93 = arith.constant dense<0.000000e+00> : vector<16x64xf32>
    %262 = tpu.matmul %261, %260, %cst_93 {dimension_numbers = #tpu.dot_dimension_numbers<[1], [0], [0], [1], [0, 0, 1, 1], [], []>} : vector<16x256xbf16>, vector<256x64xbf16>, vector<16x64xf32> -> vector<16x64xf32>
    %c0_94 = arith.constant 0 : index
    %c0_95 = arith.constant 0 : index
    %263 = vector.load %arg14[%c0_94, %c0_95] : memref<1x64xf32, #tpu.memory_space<vmem>>, vector<1x64xf32>
    %264 = vector.broadcast %263 : vector<1x64xf32> to vector<16x64xf32>
    %265 = arith.addf %262, %264 : vector<16x64xf32>
    %266 = arith.addf %265, %143 : vector<16x64xf32>
    %cst_96 = arith.constant dense<0.000000e+00> : vector<16xf32>
    %267 = vector.multi_reduction <add>, %266, %cst_96 [1] : vector<16x64xf32> to vector<16xf32>
    %268 = vector.shape_cast %267 : vector<16xf32> to vector<16x1xf32>
    %cst_97 = arith.constant 6.400000e+01 : f32
    %269 = vector.broadcast %cst_97 : f32 to vector<16x1xf32>
    %270 = arith.divf %268, %269 : vector<16x1xf32>
    %271 = vector.broadcast %270 : vector<16x1xf32> to vector<16x64xf32>
    %272 = arith.subf %266, %271 : vector<16x64xf32>
    %273 = arith.mulf %272, %272 : vector<16x64xf32>
    %cst_98 = arith.constant dense<0.000000e+00> : vector<16xf32>
    %274 = vector.multi_reduction <add>, %273, %cst_98 [1] : vector<16x64xf32> to vector<16xf32>
    %275 = vector.shape_cast %274 : vector<16xf32> to vector<16x1xf32>
    %cst_99 = arith.constant 6.400000e+01 : f32
    %276 = vector.broadcast %cst_99 : f32 to vector<16x1xf32>
    %277 = arith.divf %275, %276 : vector<16x1xf32>
    %278 = vector.broadcast %270 : vector<16x1xf32> to vector<16x64xf32>
    %279 = arith.subf %266, %278 : vector<16x64xf32>
    %cst_100 = arith.constant 9.99999974E-6 : f32
    %280 = vector.broadcast %cst_100 : f32 to vector<16x1xf32>
    %281 = arith.addf %277, %280 : vector<16x1xf32>
    %282 = math.rsqrt %281 : vector<16x1xf32>
    %283 = vector.broadcast %282 : vector<16x1xf32> to vector<16x64xf32>
    %284 = arith.mulf %279, %283 : vector<16x64xf32>
    %c0_101 = arith.constant 0 : index
    %c0_102 = arith.constant 0 : index
    %285 = vector.load %arg15[%c0_101, %c0_102] : memref<64x128xbf16, #tpu.memory_space<vmem>>, vector<64x128xbf16>
    %286 = arith.truncf %284 : vector<16x64xf32> to vector<16x64xbf16>
    %cst_103 = arith.constant dense<0.000000e+00> : vector<16x128xf32>
    %287 = tpu.matmul %286, %285, %cst_103 {dimension_numbers = #tpu.dot_dimension_numbers<[1], [0], [0], [1], [0, 0, 1, 1], [], []>} : vector<16x64xbf16>, vector<64x128xbf16>, vector<16x128xf32> -> vector<16x128xf32>
    %c0_104 = arith.constant 0 : index
    %c0_105 = arith.constant 0 : index
    %288 = vector.load %arg16[%c0_104, %c0_105] : memref<1x128xf32, #tpu.memory_space<vmem>>, vector<1x128xf32>
    %289 = vector.broadcast %288 : vector<1x128xf32> to vector<16x128xf32>
    %290 = arith.addf %287, %289 : vector<16x128xf32>
    %cst_106 = arith.constant 0.000000e+00 : f32
    %291 = vector.broadcast %cst_106 : f32 to vector<16x128xf32>
    %292 = arith.maximumf %290, %291 : vector<16x128xf32>
    %c0_107 = arith.constant 0 : index
    %c0_108 = arith.constant 0 : index
    %293 = vector.load %arg17[%c0_107, %c0_108] : memref<128x64xbf16, #tpu.memory_space<vmem>>, vector<128x64xbf16>
    %294 = arith.truncf %292 : vector<16x128xf32> to vector<16x128xbf16>
    %cst_109 = arith.constant dense<0.000000e+00> : vector<16x64xf32>
    %295 = tpu.matmul %294, %293, %cst_109 {dimension_numbers = #tpu.dot_dimension_numbers<[1], [0], [0], [1], [0, 0, 1, 1], [], []>} : vector<16x128xbf16>, vector<128x64xbf16>, vector<16x64xf32> -> vector<16x64xf32>
    %c0_110 = arith.constant 0 : index
    %c0_111 = arith.constant 0 : index
    %296 = vector.load %arg18[%c0_110, %c0_111] : memref<1x64xf32, #tpu.memory_space<vmem>>, vector<1x64xf32>
    %297 = vector.broadcast %296 : vector<1x64xf32> to vector<16x64xf32>
    %298 = arith.addf %295, %297 : vector<16x64xf32>
    %299 = arith.addf %298, %284 : vector<16x64xf32>
    %cst_112 = arith.constant dense<0.000000e+00> : vector<16xf32>
    %300 = vector.multi_reduction <add>, %299, %cst_112 [1] : vector<16x64xf32> to vector<16xf32>
    %301 = vector.shape_cast %300 : vector<16xf32> to vector<16x1xf32>
    %cst_113 = arith.constant 6.400000e+01 : f32
    %302 = vector.broadcast %cst_113 : f32 to vector<16x1xf32>
    %303 = arith.divf %301, %302 : vector<16x1xf32>
    %304 = vector.broadcast %303 : vector<16x1xf32> to vector<16x64xf32>
    %305 = arith.subf %299, %304 : vector<16x64xf32>
    %306 = arith.mulf %305, %305 : vector<16x64xf32>
    %cst_114 = arith.constant dense<0.000000e+00> : vector<16xf32>
    %307 = vector.multi_reduction <add>, %306, %cst_114 [1] : vector<16x64xf32> to vector<16xf32>
    %308 = vector.shape_cast %307 : vector<16xf32> to vector<16x1xf32>
    %cst_115 = arith.constant 6.400000e+01 : f32
    %309 = vector.broadcast %cst_115 : f32 to vector<16x1xf32>
    %310 = arith.divf %308, %309 : vector<16x1xf32>
    %311 = vector.broadcast %303 : vector<16x1xf32> to vector<16x64xf32>
    %312 = arith.subf %299, %311 : vector<16x64xf32>
    %cst_116 = arith.constant 9.99999974E-6 : f32
    %313 = vector.broadcast %cst_116 : f32 to vector<16x1xf32>
    %314 = arith.addf %310, %313 : vector<16x1xf32>
    %315 = math.rsqrt %314 : vector<16x1xf32>
    %316 = vector.broadcast %315 : vector<16x1xf32> to vector<16x64xf32>
    %317 = arith.mulf %312, %316 : vector<16x64xf32>
    %c0_117 = arith.constant 0 : index
    %c0_118 = arith.constant 0 : index
    %c0_119 = arith.constant 0 : index
    %318 = vector.load %arg19[%c0_117, %c0_118, %c0_119] : memref<1x16x64xf32, #tpu.memory_space<vmem>>, vector<1x16x64xf32>
    %319 = vector.shape_cast %318 : vector<1x16x64xf32> to vector<16x64xf32>
    %320 = vector.shape_cast %317 : vector<16x64xf32> to vector<1x16x64xf32>
    tpu.vector_store %arg19[%c0_117, %c0_118, %c0_119], %320 {strides = array<i32>} : memref<1x16x64xf32, #tpu.memory_space<vmem>>, vector<1x16x64xf32>,
    %c0_120 = arith.constant 0 : index
    %c0_121 = arith.constant 0 : index
    %c0_122 = arith.constant 0 : index
    %321 = vector.load %arg20[%c0_120, %c0_121, %c0_122] : memref<1x16x64xf32, #tpu.memory_space<vmem>>, vector<1x16x64xf32>
    %322 = vector.shape_cast %321 : vector<1x16x64xf32> to vector<16x64xf32>
    %323 = vector.shape_cast %118 : vector<16x64xf32> to vector<1x16x64xf32>
    tpu.vector_store %arg20[%c0_120, %c0_121, %c0_122], %323 {strides = array<i32>} : memref<1x16x64xf32, #tpu.memory_space<vmem>>, vector<1x16x64xf32>,
    %c0_123 = arith.constant 0 : index
    %c0_124 = arith.constant 0 : index
    %c0_125 = arith.constant 0 : index
    %324 = vector.load %arg21[%c0_123, %c0_124, %c0_125] : memref<1x16x128xf32, #tpu.memory_space<vmem>>, vector<1x16x128xf32>
    %325 = vector.shape_cast %324 : vector<1x16x128xf32> to vector<16x128xf32>
    %326 = vector.shape_cast %259 : vector<16x128xf32> to vector<1x16x128xf32>
    tpu.vector_store %arg21[%c0_123, %c0_124, %c0_125], %326 {strides = array<i32>} : memref<1x16x128xf32, #tpu.memory_space<vmem>>, vector<1x16x128xf32>,
    return
  }
  func.func @transform_0(%arg0: i32) -> (i32, i32, i32) {
    %c0_i32 = arith.constant 0 : i32
    %c0_i32_0 = arith.constant 0 : i32
    %c0_i32_1 = arith.constant 0 : i32
    return %arg0, %c0_i32, %c0_i32_0 : i32, i32, i32
  }
  func.func @transform_1(%arg0: i32) -> (i32, i32, i32) {
    %c0_i32 = arith.constant 0 : i32
    %c0_i32_0 = arith.constant 0 : i32
    %c0_i32_1 = arith.constant 0 : i32
    return %arg0, %c0_i32, %c0_i32_0 : i32, i32, i32
  }
  func.func @transform_2(%arg0: i32) -> (i32, i32, i32) {
    %c0_i32 = arith.constant 0 : i32
    %c0_i32_0 = arith.constant 0 : i32
    %c0_i32_1 = arith.constant 0 : i32
    return %arg0, %c0_i32, %c0_i32_0 : i32, i32, i32
  }
  func.func @transform_3(%arg0: i32) -> (i32, i32, i32) {
    %c0_i32 = arith.constant 0 : i32
    %c0_i32_0 = arith.constant 0 : i32
    %c0_i32_1 = arith.constant 0 : i32
    return %arg0, %c0_i32, %c0_i32_0 : i32, i32, i32
  }
  func.func @transform_4(%arg0: i32) -> (i32, i32) {
    %c0_i32 = arith.constant 0 : i32
    %c0_i32_0 = arith.constant 0 : i32
    %c0_i32_1 = arith.constant 0 : i32
    return %c0_i32, %c0_i32_0 : i32, i32
  }
  func.func @transform_5(%arg0: i32) -> (i32, i32) {
    %c0_i32 = arith.constant 0 : i32
    %c0_i32_0 = arith.constant 0 : i32
    %c0_i32_1 = arith.constant 0 : i32
    return %c0_i32, %c0_i32_0 : i32, i32
  }
  func.func @transform_6(%arg0: i32) -> (i32, i32) {
    %c0_i32 = arith.constant 0 : i32
    %c0_i32_0 = arith.constant 0 : i32
    %c0_i32_1 = arith.constant 0 : i32
    return %c0_i32, %c0_i32_0 : i32, i32
  }
  func.func @transform_7(%arg0: i32) -> (i32, i32) {
    %c0_i32 = arith.constant 0 : i32
    %c0_i32_0 = arith.constant 0 : i32
    %c0_i32_1 = arith.constant 0 : i32
    return %c0_i32, %c0_i32_0 : i32, i32
  }
  func.func @transform_8(%arg0: i32) -> (i32, i32) {
    %c0_i32 = arith.constant 0 : i32
    %c0_i32_0 = arith.constant 0 : i32
    %c0_i32_1 = arith.constant 0 : i32
    return %c0_i32, %c0_i32_0 : i32, i32
  }
  func.func @transform_9(%arg0: i32) -> (i32, i32) {
    %c0_i32 = arith.constant 0 : i32
    %c0_i32_0 = arith.constant 0 : i32
    %c0_i32_1 = arith.constant 0 : i32
    return %c0_i32, %c0_i32_0 : i32, i32
  }
  func.func @transform_10(%arg0: i32) -> (i32, i32) {
    %c0_i32 = arith.constant 0 : i32
    %c0_i32_0 = arith.constant 0 : i32
    %c0_i32_1 = arith.constant 0 : i32
    return %c0_i32, %c0_i32_0 : i32, i32
  }
  func.func @transform_11(%arg0: i32) -> (i32, i32) {
    %c0_i32 = arith.constant 0 : i32
    %c0_i32_0 = arith.constant 0 : i32
    %c0_i32_1 = arith.constant 0 : i32
    return %c0_i32, %c0_i32_0 : i32, i32
  }
  func.func @transform_12(%arg0: i32) -> (i32, i32) {
    %c0_i32 = arith.constant 0 : i32
    %c0_i32_0 = arith.constant 0 : i32
    %c0_i32_1 = arith.constant 0 : i32
    return %c0_i32, %c0_i32_0 : i32, i32
  }
  func.func @transform_13(%arg0: i32) -> (i32, i32) {
    %c0_i32 = arith.constant 0 : i32
    %c0_i32_0 = arith.constant 0 : i32
    %c0_i32_1 = arith.constant 0 : i32
    return %c0_i32, %c0_i32_0 : i32, i32
  }
  func.func @transform_14(%arg0: i32) -> (i32, i32) {
    %c0_i32 = arith.constant 0 : i32
    %c0_i32_0 = arith.constant 0 : i32
    %c0_i32_1 = arith.constant 0 : i32
    return %c0_i32, %c0_i32_0 : i32, i32
  }
  func.func @transform_15(%arg0: i32) -> (i32, i32) {
    %c0_i32 = arith.constant 0 : i32
    %c0_i32_0 = arith.constant 0 : i32
    %c0_i32_1 = arith.constant 0 : i32
    return %c0_i32, %c0_i32_0 : i32, i32
  }
  func.func @transform_16(%arg0: i32) -> (i32, i32) {
    %c0_i32 = arith.constant 0 : i32
    %c0_i32_0 = arith.constant 0 : i32
    %c0_i32_1 = arith.constant 0 : i32
    return %c0_i32, %c0_i32_0 : i32, i32
  }
  func.func @transform_17(%arg0: i32) -> (i32, i32) {
    %c0_i32 = arith.constant 0 : i32
    %c0_i32_0 = arith.constant 0 : i32
    %c0_i32_1 = arith.constant 0 : i32
    return %c0_i32, %c0_i32_0 : i32, i32
  }
  func.func @transform_18(%arg0: i32) -> (i32, i32, i32) {
    %c0_i32 = arith.constant 0 : i32
    %c0_i32_0 = arith.constant 0 : i32
    %c0_i32_1 = arith.constant 0 : i32
    return %arg0, %c0_i32, %c0_i32_0 : i32, i32, i32
  }
  func.func @transform_19(%arg0: i32) -> (i32, i32, i32) {
    %c0_i32 = arith.constant 0 : i32
    %c0_i32_0 = arith.constant 0 : i32
    %c0_i32_1 = arith.constant 0 : i32
    return %arg0, %c0_i32, %c0_i32_0 : i32, i32, i32
  }
  func.func @transform_20(%arg0: i32) -> (i32, i32, i32) {
    %c0_i32 = arith.constant 0 : i32
    %c0_i32_0 = arith.constant 0 : i32
    %c0_i32_1 = arith.constant 0 : i32
    return %arg0, %c0_i32, %c0_i32_0 : i32, i32, i32
  }
}

</mosaic_0001>

<llo_original>
// kernel: tpu_custom_call.1
$region0: #{tpu_custom_call.1}
  #allocation0 [shape = 'u32[]', space=smem, size = 0x4, offset = 0x4, fixed_abs, tag = 'smem constant byte address 0x4 - core index']
  #allocation1 [shape = 'u32[144,128]{1,0:T(1,128)}', space=vmem, size = 0x12000, scoped, tag = 'internal scratch']
  %s0 = inlined_call_operand.hbm [shape: f32[2,16,64], index: 0, kind: input, shape index: {}]
  %s1 = inlined_call_operand.hbm [shape: f32[2,32,128], index: 1, kind: input, shape index: {}]
  %s2 = inlined_call_operand.hbm [shape: f32[2,16,16], index: 2, kind: input, shape index: {}]
  %s3 = inlined_call_operand.hbm [shape: f32[2,16,32], index: 3, kind: input, shape index: {}]
  %s4 = inlined_call_operand.vmem [shape: bf16[64,768], index: 4, kind: input, shape index: {}]
  %s5 = inlined_call_operand.hbm [shape: f32[1,768], index: 5, kind: input, shape index: {}]
  %s6 = inlined_call_operand.vmem [shape: bf16[256,64], index: 6, kind: input, shape index: {}]
  %s7 = inlined_call_operand.vmem [shape: f32[1,64], index: 7, kind: input, shape index: {}]
  %s8 = inlined_call_operand.hbm [shape: bf16[64,256], index: 8, kind: input, shape index: {}]
  %s9 = inlined_call_operand.hbm [shape: f32[1,256], index: 9, kind: input, shape index: {}]
  %s10 = inlined_call_operand.vmem [shape: bf16[128,512], index: 10, kind: input, shape index: {}]
  %s11 = inlined_call_operand.vmem [shape: f32[1,512], index: 11, kind: input, shape index: {}]
  %s12 = inlined_call_operand.vmem [shape: bf16[256,64], index: 12, kind: input, shape index: {}]
  %s13 = inlined_call_operand.vmem [shape: f32[1,64], index: 13, kind: input, shape index: {}]
  %s14 = inlined_call_operand.hbm [shape: bf16[64,128], index: 14, kind: input, shape index: {}]
  %s15 = inlined_call_operand.vmem [shape: f32[1,128], index: 15, kind: input, shape index: {}]
  %s16 = inlined_call_operand.vmem [shape: bf16[128,64], index: 16, kind: input, shape index: {}]
  %s17 = inlined_call_operand.vmem [shape: f32[1,64], index: 17, kind: input, shape index: {}]
  %s18 = inlined_call_operand.hbm [shape: f32[2,16,64], index: 18, kind: output, shape index: {0}]
  %s19 = inlined_call_operand.hbm [shape: f32[2,16,64], index: 19, kind: output, shape index: {1}]
  %s20 = inlined_call_operand.hbm [shape: f32[2,16,128], index: 20, kind: output, shape index: {2}]
  %21 = xla_tuple %s18, %s19, %s20
  %s22 = sld [smem:[#allocation0]]
  $region153: #{tpu_custom_call.1} parent=0
    _
  %s24 = ssub.s32 1, %s22
  %s25 = scalar_select 0, %s24, %s22
  $region1: #{tpu_custom_call.1} parent=0
    #allocation2 [shape = 'u8[16384]{0}', space=vmem, size = 0x4000, scoped, tag = 'input window, operand 0']
    #allocation3 [shape = 's32[2]{0}', space=sflag, size = 0x8, scoped, tag = 'scoped memory for tpu_custom_call.1']
    #allocation4 [shape = 's32[2]{0}', space=sflag, size = 0x8, scoped, tag = 'scoped memory for tpu_custom_call.1']
    #allocation5 [shape = 'u8[32768]{0}', space=vmem, size = 0x8000, scoped, tag = 'input window, operand 1']
    #allocation6 [shape = 's32[2]{0}', space=sflag, size = 0x8, scoped, tag = 'scoped memory for tpu_custom_call.1']
    #allocation7 [shape = 'u8[16384]{0}', space=vmem, size = 0x4000, scoped, tag = 'input window, operand 2']
    #allocation8 [shape = 'u8[16384]{0}', space=vmem, size = 0x4000, scoped, tag = 'input window, operand 3']
    #allocation9 [shape = 's32[2]{0}', space=sflag, size = 0x8, scoped, tag = 'scoped memory for tpu_custom_call.1']
    #allocation10 [shape = 'u8[3072]{0}', space=vmem, size = 0xc00, scoped, tag = 'input window, operand 5, single buffered']
    #allocation11 [shape = 'u8[32768]{0}', space=vmem, size = 0x8000, scoped, tag = 'input window, operand 8, single buffered']
    #allocation12 [shape = 's32[1]{0}', space=sflag, size = 0x4, scoped, tag = 'scoped memory for tpu_custom_call.1']
    #allocation13 [shape = 'u8[1024]{0}', space=vmem, size = 0x400, scoped, tag = 'input window, operand 9, single buffered']
    #allocation14 [shape = 'u8[16384]{0}', space=vmem, size = 0x4000, scoped, tag = 'input window, operand 14, single buffered']
    #allocation15 [shape = 's32[1]{0}', space=sflag, size = 0x4, scoped, tag = 'scoped memory for tpu_custom_call.1']
    #allocation16 [shape = 'u8[16384]{0}', space=vmem, size = 0x4000, scoped, tag = 'output window, operand 0']
    #allocation17 [shape = 'u8[16384]{0}', space=vmem, size = 0x4000, scoped, tag = 'output window, operand 1']
    #allocation18 [shape = 's32[2]{0}', space=sflag, size = 0x8, scoped, tag = 'scoped memory for tpu_custom_call.1']
    #allocation19 [shape = 'u8[16384]{0}', space=vmem, size = 0x4000, scoped, tag = 'output window, operand 2']
    %26 = vsyncpa [#allocation3], 0
    %s27 = scalar_lea.sflag [#allocation3], 1
    %28 = vsyncpa %s27, 0
    %29 = vsyncpa [#allocation6], 0
    %s30 = scalar_lea.sflag [#allocation6], 1
    %31 = vsyncpa %s30, 0
    %32 = vsyncpa [#allocation9], 0
    %s33 = scalar_lea.sflag [#allocation9], 1
    %34 = vsyncpa %s33, 0
    %35 = vsyncpa [#allocation12], 0
    %36 = vsyncpa [#allocation15], 0
    %37 = vsyncpa [#allocation4], 0
    %s38 = scalar_lea.sflag [#allocation4], 1
    %39 = vsyncpa %s38, 0
    %40 = vsyncpa [#allocation18], 0
    %s41 = scalar_lea.sflag [#allocation18], 1
    %42 = vsyncpa %s41, 0
    loop: start=0, step=1, limit=4
    $region2: #{tpu_custom_call.1} parent=1 // loop_pre_header
      _
    $region3: #{tpu_custom_call.1} parent=1 // loop_header
      %s44 = sphi 0, %s48
      %p45 = scmp.ge.s32.totalorder %s44, 4
      %s54 = sphi 0, %s56
      %s57 = sphi 0, %s54
      %s58 = sphi 0, %s57
      %s74 = sphi 0, %s58
      %s80 = sphi 0, %s82
      %s83 = sphi 0, %s80
      %s84 = sphi 0, %s83
      %s100 = sphi 0, %s84
      %s106 = sphi 0, %s108
      %s109 = sphi 0, %s106
      %s110 = sphi 0, %s109
      %s126 = sphi 0, %s110
      %s132 = sphi 0, %s134
      %s135 = sphi 0, %s132
      %s136 = sphi 0, %s135
      %s152 = sphi 0, %s136
      %s156 = sphi 0, %s156
      %s158 = sphi 0, %s156
      %s159 = sphi 0, %s158
      %s173 = sphi 0, %s159
      %s177 = sphi 0, %s177
      %s179 = sphi 0, %s177
      %s180 = sphi 0, %s179
      %s194 = sphi 0, %s180
      %s198 = sphi 0, %s198
      %s200 = sphi 0, %s198
      %s201 = sphi 0, %s200
      %s215 = sphi 0, %s201
      %s219 = sphi 0, %s219
      %s221 = sphi 0, %s219
      %s222 = sphi 0, %s221
      %s236 = sphi 0, %s222
      %s240 = sphi 0, %s240
      %s242 = sphi 0, %s240
      %s243 = sphi 0, %s242
      %s257 = sphi 0, %s243
      %s261 = sphi 0, %s261
      %s263 = sphi 0, %s261
      %s264 = sphi 0, %s263
      %s278 = sphi 0, %s264
      %s282 = sphi 0, %s282
      %s284 = sphi 0, %s282
      %s285 = sphi 0, %s284
      %s299 = sphi 0, %s285
      %s303 = sphi 0, %s303
      %s305 = sphi 0, %s303
      %s306 = sphi 0, %s305
      %s320 = sphi 0, %s306
      %s324 = sphi 0, %s324
      %s326 = sphi 0, %s324
      %s327 = sphi 0, %s326
      %s341 = sphi 0, %s327
      %s345 = sphi 0, %s345
      %s347 = sphi 0, %s345
      %s348 = sphi 0, %s347
      %s362 = sphi 0, %s348
      %s366 = sphi 0, %s366
      %s368 = sphi 0, %s366
      %s369 = sphi 0, %s368
      %s383 = sphi 0, %s369
      %s387 = sphi 0, %s387
      %s389 = sphi 0, %s387
      %s390 = sphi 0, %s389
      %s404 = sphi 0, %s390
      %s408 = sphi 0, %s408
      %s410 = sphi 0, %s408
      %s411 = sphi 0, %s410
      %s425 = sphi 0, %s411
      %s429 = sphi 0, %s429
      %s431 = sphi 0, %s429
      %s432 = sphi 0, %s431
      %s446 = sphi 0, %s432
      %s452 = sphi 0, %s454
      %s455 = sphi 0, %s452
      %s456 = sphi 0, %s455
      %s472 = sphi 0, %s456
      %s478 = sphi 0, %s480
      %s481 = sphi 0, %s478
      %s482 = sphi 0, %s481
      %s498 = sphi 0, %s482
      %s504 = sphi 0, %s506
      %s507 = sphi 0, %s504
      %s508 = sphi 0, %s507
      %s524 = sphi 0, %s508
    $region4: #{tpu_custom_call.1} parent=1 // loop_header_branch
      %47 = sbr.rel (%p45) target = $region8
    $region5: #{tpu_custom_call.1} parent=1 // loop_body
      %s49 = ssub.s32 %s44, 1
      %s50 = ssub.s32 %s44, 2
      %s51 = sadd.s32 %s44, 1
      %s52 = ssub.s32 %s44, %s51
      %p53 = scmp.eq.s32.totalorder %s52, 0
      %s55 = sadd.s32 %s54, 1
      %s56 = scalar_select %p53, %s54, %s55
      %p59 = pneg %p53
      %p60 = scmp.eq.s32.totalorder %s44, 1
      %p61 = por %p59, %p60
      %p62 = scmp.ne.s32.totalorder %s54, %s57
      %p63 = scmp.eq.s32.totalorder %s44, 0
      %p64 = por %p62, %p63
      %p65 = scmp.ne.s32.totalorder %s54, %s57
      %p66 = scmp.eq.s32.totalorder %s49, 1
      %p67 = por %p65, %p66
      %p68 = scmp.ne.s32.totalorder %s57, %s58
      %p69 = scmp.eq.s32.totalorder %s49, 0
      %p70 = por %p68, %p69
      %p71 = scmp.ne.s32.totalorder %s57, %s58
      %p72 = scmp.eq.s32.totalorder %s50, 1
      %p73 = por %p71, %p72
      %p75 = scmp.ne.s32.totalorder %s58, %s74
      %p76 = scmp.eq.s32.totalorder %s50, 0
      %p77 = por %p75, %p76
      %s78 = ssub.s32 %s44, %s51
      %p79 = scmp.eq.s32.totalorder %s78, 0
      %s81 = sadd.s32 %s80, 1
      %s82 = scalar_select %p79, %s80, %s81
      %p85 = pneg %p79
      %p86 = scmp.eq.s32.totalorder %s44, 1
      %p87 = por %p85, %p86
      %p88 = scmp.ne.s32.totalorder %s80, %s83
      %p89 = scmp.eq.s32.totalorder %s44, 0
      %p90 = por %p88, %p89
      %p91 = scmp.ne.s32.totalorder %s80, %s83
      %p92 = scmp.eq.s32.totalorder %s49, 1
      %p93 = por %p91, %p92
      %p94 = scmp.ne.s32.totalorder %s83, %s84
      %p95 = scmp.eq.s32.totalorder %s49, 0
      %p96 = por %p94, %p95
      %p97 = scmp.ne.s32.totalorder %s83, %s84
      %p98 = scmp.eq.s32.totalorder %s50, 1
      %p99 = por %p97, %p98
      %p101 = scmp.ne.s32.totalorder %s84, %s100
      %p102 = scmp.eq.s32.totalorder %s50, 0
      %p103 = por %p101, %p102
      %s104 = ssub.s32 %s44, %s51
      %p105 = scmp.eq.s32.totalorder %s104, 0
      %s107 = sadd.s32 %s106, 1
      %s108 = scalar_select %p105, %s106, %s107
      %p111 = pneg %p105
      %p112 = scmp.eq.s32.totalorder %s44, 1
      %p113 = por %p111, %p112
      %p114 = scmp.ne.s32.totalorder %s106, %s109
      %p115 = scmp.eq.s32.totalorder %s44, 0
      %p116 = por %p114, %p115
      %p117 = scmp.ne.s32.totalorder %s106, %s109
      %p118 = scmp.eq.s32.totalorder %s49, 1
      %p119 = por %p117, %p118
      %p120 = scmp.ne.s32.totalorder %s109, %s110
      %p121 = scmp.eq.s32.totalorder %s49, 0
      %p122 = por %p120, %p121
      %p123 = scmp.ne.s32.totalorder %s109, %s110
      %p124 = scmp.eq.s32.totalorder %s50, 1
      %p125 = por %p123, %p124
      %p127 = scmp.ne.s32.totalorder %s110, %s126
      %p128 = scmp.eq.s32.totalorder %s50, 0
      %p129 = por %p127, %p128
      %s130 = ssub.s32 %s44, %s51
      %p131 = scmp.eq.s32.totalorder %s130, 0
      %s133 = sadd.s32 %s132, 1
      %s134 = scalar_select %p131, %s132, %s133
      %p137 = pneg %p131
      %p138 = scmp.eq.s32.totalorder %s44, 1
      %p139 = por %p137, %p138
      %p140 = scmp.ne.s32.totalorder %s132, %s135
      %p141 = scmp.eq.s32.totalorder %s44, 0
      %p142 = por %p140, %p141
      %p143 = scmp.ne.s32.totalorder %s132, %s135
      %p144 = scmp.eq.s32.totalorder %s49, 1
      %p145 = por %p143, %p144
      %p146 = scmp.ne.s32.totalorder %s135, %s136
      %p147 = scmp.eq.s32.totalorder %s49, 0
      %p148 = por %p146, %p147
      %p149 = scmp.ne.s32.totalorder %s135, %s136
      %p150 = scmp.eq.s32.totalorder %s50, 1
      %p151 = por %p149, %p150
      %p153 = scmp.ne.s32.totalorder %s136, %s152
      %p154 = scmp.eq.s32.totalorder %s50, 0
      %p155 = por %p153, %p154
      %s157 = sadd.s32 %s156, 1
      %p160 = scmp.eq.s32.totalorder %s44, 1
      %p161 = scmp.ne.s32.totalorder %s156, %s158
      %p162 = scmp.eq.s32.totalorder %s44, 0
      %p163 = por %p161, %p162
      %p164 = scmp.ne.s32.totalorder %s156, %s158
      %p165 = scmp.eq.s32.totalorder %s49, 1
      %p166 = por %p164, %p165
      %p167 = scmp.ne.s32.totalorder %s158, %s159
      %p168 = scmp.eq.s32.totalorder %s49, 0
      %p169 = por %p167, %p168
      %p170 = scmp.ne.s32.totalorder %s158, %s159
      %p171 = scmp.eq.s32.totalorder %s50, 1
      %p172 = por %p170, %p171
      %p174 = scmp.ne.s32.totalorder %s159, %s173
      %p175 = scmp.eq.s32.totalorder %s50, 0
      %p176 = por %p174, %p175
      %s178 = sadd.s32 %s177, 1
      %p181 = scmp.eq.s32.totalorder %s44, 1
      %p182 = scmp.ne.s32.totalorder %s177, %s179
      %p183 = scmp.eq.s32.totalorder %s44, 0
      %p184 = por %p182, %p183
      %p185 = scmp.ne.s32.totalorder %s177, %s179
      %p186 = scmp.eq.s32.totalorder %s49, 1
      %p187 = por %p185, %p186
      %p188 = scmp.ne.s32.totalorder %s179, %s180
      %p189 = scmp.eq.s32.totalorder %s49, 0
      %p190 = por %p188, %p189
      %p191 = scmp.ne.s32.totalorder %s179, %s180
      %p192 = scmp.eq.s32.totalorder %s50, 1
      %p193 = por %p191, %p192
      %p195 = scmp.ne.s32.totalorder %s180, %s194
      %p196 = scmp.eq.s32.totalorder %s50, 0
      %p197 = por %p195, %p196
      %s199 = sadd.s32 %s198, 1
      %p202 = scmp.eq.s32.totalorder %s44, 1
      %p203 = scmp.ne.s32.totalorder %s198, %s200
      %p204 = scmp.eq.s32.totalorder %s44, 0
      %p205 = por %p203, %p204
      %p206 = scmp.ne.s32.totalorder %s198, %s200
      %p207 = scmp.eq.s32.totalorder %s49, 1
      %p208 = por %p206, %p207
      %p209 = scmp.ne.s32.totalorder %s200, %s201
      %p210 = scmp.eq.s32.totalorder %s49, 0
      %p211 = por %p209, %p210
      %p212 = scmp.ne.s32.totalorder %s200, %s201
      %p213 = scmp.eq.s32.totalorder %s50, 1
      %p214 = por %p212, %p213
      %p216 = scmp.ne.s32.totalorder %s201, %s215
      %p217 = scmp.eq.s32.totalorder %s50, 0
      %p218 = por %p216, %p217
      %s220 = sadd.s32 %s219, 1
      %p223 = scmp.eq.s32.totalorder %s44, 1
      %p224 = scmp.ne.s32.totalorder %s219, %s221
      %p225 = scmp.eq.s32.totalorder %s44, 0
      %p226 = por %p224, %p225
      %p227 = scmp.ne.s32.totalorder %s219, %s221
      %p228 = scmp.eq.s32.totalorder %s49, 1
      %p229 = por %p227, %p228
      %p230 = scmp.ne.s32.totalorder %s221, %s222
      %p231 = scmp.eq.s32.totalorder %s49, 0
      %p232 = por %p230, %p231
      %p233 = scmp.ne.s32.totalorder %s221, %s222
      %p234 = scmp.eq.s32.totalorder %s50, 1
      %p235 = por %p233, %p234
      %p237 = scmp.ne.s32.totalorder %s222, %s236
      %p238 = scmp.eq.s32.totalorder %s50, 0
      %p239 = por %p237, %p238
      %s241 = sadd.s32 %s240, 1
      %p244 = scmp.eq.s32.totalorder %s44, 1
      %p245 = scmp.ne.s32.totalorder %s240, %s242
      %p246 = scmp.eq.s32.totalorder %s44, 0
      %p247 = por %p245, %p246
      %p248 = scmp.ne.s32.totalorder %s240, %s242
      %p249 = scmp.eq.s32.totalorder %s49, 1
      %p250 = por %p248, %p249
      %p251 = scmp.ne.s32.totalorder %s242, %s243
      %p252 = scmp.eq.s32.totalorder %s49, 0
      %p253 = por %p251, %p252
      %p254 = scmp.ne.s32.totalorder %s242, %s243
      %p255 = scmp.eq.s32.totalorder %s50, 1
      %p256 = por %p254, %p255
      %p258 = scmp.ne.s32.totalorder %s243, %s257
      %p259 = scmp.eq.s32.totalorder %s50, 0
      %p260 = por %p258, %p259
      %s262 = sadd.s32 %s261, 1
      %p265 = scmp.eq.s32.totalorder %s44, 1
      %p266 = scmp.ne.s32.totalorder %s261, %s263
      %p267 = scmp.eq.s32.totalorder %s44, 0
      %p268 = por %p266, %p267
      %p269 = scmp.ne.s32.totalorder %s261, %s263
      %p270 = scmp.eq.s32.totalorder %s49, 1
      %p271 = por %p269, %p270
      %p272 = scmp.ne.s32.totalorder %s263, %s264
      %p273 = scmp.eq.s32.totalorder %s49, 0
      %p274 = por %p272, %p273
      %p275 = scmp.ne.s32.totalorder %s263, %s264
      %p276 = scmp.eq.s32.totalorder %s50, 1
      %p277 = por %p275, %p276
      %p279 = scmp.ne.s32.totalorder %s264, %s278
      %p280 = scmp.eq.s32.totalorder %s50, 0
      %p281 = por %p279, %p280
      %s283 = sadd.s32 %s282, 1
      %p286 = scmp.eq.s32.totalorder %s44, 1
      %p287 = scmp.ne.s32.totalorder %s282, %s284
      %p288 = scmp.eq.s32.totalorder %s44, 0
      %p289 = por %p287, %p288
      %p290 = scmp.ne.s32.totalorder %s282, %s284
      %p291 = scmp.eq.s32.totalorder %s49, 1
      %p292 = por %p290, %p291
      %p293 = scmp.ne.s32.totalorder %s284, %s285
      %p294 = scmp.eq.s32.totalorder %s49, 0
      %p295 = por %p293, %p294
      %p296 = scmp.ne.s32.totalorder %s284, %s285
      %p297 = scmp.eq.s32.totalorder %s50, 1
      %p298 = por %p296, %p297
      %p300 = scmp.ne.s32.totalorder %s285, %s299
      %p301 = scmp.eq.s32.totalorder %s50, 0
      %p302 = por %p300, %p301
      %s304 = sadd.s32 %s303, 1
      %p307 = scmp.eq.s32.totalorder %s44, 1
      %p308 = scmp.ne.s32.totalorder %s303, %s305
      %p309 = scmp.eq.s32.totalorder %s44, 0
      %p310 = por %p308, %p309
      %p311 = scmp.ne.s32.totalorder %s303, %s305
      %p312 = scmp.eq.s32.totalorder %s49, 1
      %p313 = por %p311, %p312
      %p314 = scmp.ne.s32.totalorder %s305, %s306
      %p315 = scmp.eq.s32.totalorder %s49, 0
      %p316 = por %p314, %p315
      %p317 = scmp.ne.s32.totalorder %s305, %s306
      %p318 = scmp.eq.s32.totalorder %s50, 1
      %p319 = por %p317, %p318
      %p321 = scmp.ne.s32.totalorder %s306, %s320
      %p322 = scmp.eq.s32.totalorder %s50, 0
      %p323 = por %p321, %p322
      %s325 = sadd.s32 %s324, 1
      %p328 = scmp.eq.s32.totalorder %s44, 1
      %p329 = scmp.ne.s32.totalorder %s324, %s326
      %p330 = scmp.eq.s32.totalorder %s44, 0
      %p331 = por %p329, %p330
      %p332 = scmp.ne.s32.totalorder %s324, %s326
      %p333 = scmp.eq.s32.totalorder %s49, 1
      %p334 = por %p332, %p333
      %p335 = scmp.ne.s32.totalorder %s326, %s327
      %p336 = scmp.eq.s32.totalorder %s49, 0
      %p337 = por %p335, %p336
      %p338 = scmp.ne.s32.totalorder %s326, %s327
      %p339 = scmp.eq.s32.totalorder %s50, 1
      %p340 = por %p338, %p339
      %p342 = scmp.ne.s32.totalorder %s327, %s341
      %p343 = scmp.eq.s32.totalorder %s50, 0
      %p344 = por %p342, %p343
      %s346 = sadd.s32 %s345, 1
      %p349 = scmp.eq.s32.totalorder %s44, 1
      %p350 = scmp.ne.s32.totalorder %s345, %s347
      %p351 = scmp.eq.s32.totalorder %s44, 0
      %p352 = por %p350, %p351
      %p353 = scmp.ne.s32.totalorder %s345, %s347
      %p354 = scmp.eq.s32.totalorder %s49, 1
      %p355 = por %p353, %p354
      %p356 = scmp.ne.s32.totalorder %s347, %s348
      %p357 = scmp.eq.s32.totalorder %s49, 0
      %p358 = por %p356, %p357
      %p359 = scmp.ne.s32.totalorder %s347, %s348
      %p360 = scmp.eq.s32.totalorder %s50, 1
      %p361 = por %p359, %p360
      %p363 = scmp.ne.s32.totalorder %s348, %s362
      %p364 = scmp.eq.s32.totalorder %s50, 0
      %p365 = por %p363, %p364
      %s367 = sadd.s32 %s366, 1
      %p370 = scmp.eq.s32.totalorder %s44, 1
      %p371 = scmp.ne.s32.totalorder %s366, %s368
      %p372 = scmp.eq.s32.totalorder %s44, 0
      %p373 = por %p371, %p372
      %p374 = scmp.ne.s32.totalorder %s366, %s368
      %p375 = scmp.eq.s32.totalorder %s49, 1
      %p376 = por %p374, %p375
      %p377 = scmp.ne.s32.totalorder %s368, %s369
      %p378 = scmp.eq.s32.totalorder %s49, 0
      %p379 = por %p377, %p378
      %p380 = scmp.ne.s32.totalorder %s368, %s369
      %p381 = scmp.eq.s32.totalorder %s50, 1
      %p382 = por %p380, %p381
      %p384 = scmp.ne.s32.totalorder %s369, %s383
      %p385 = scmp.eq.s32.totalorder %s50, 0
      %p386 = por %p384, %p385
      %s388 = sadd.s32 %s387, 1
      %p391 = scmp.eq.s32.totalorder %s44, 1
      %p392 = scmp.ne.s32.totalorder %s387, %s389
      %p393 = scmp.eq.s32.totalorder %s44, 0
      %p394 = por %p392, %p393
      %p395 = scmp.ne.s32.totalorder %s387, %s389
      %p396 = scmp.eq.s32.totalorder %s49, 1
      %p397 = por %p395, %p396
      %p398 = scmp.ne.s32.totalorder %s389, %s390
      %p399 = scmp.eq.s32.totalorder %s49, 0
      %p400 = por %p398, %p399
      %p401 = scmp.ne.s32.totalorder %s389, %s390
      %p402 = scmp.eq.s32.totalorder %s50, 1
      %p403 = por %p401, %p402
      %p405 = scmp.ne.s32.totalorder %s390, %s404
      %p406 = scmp.eq.s32.totalorder %s50, 0
      %p407 = por %p405, %p406
      %s409 = sadd.s32 %s408, 1
      %p412 = scmp.eq.s32.totalorder %s44, 1
      %p413 = scmp.ne.s32.totalorder %s408, %s410
      %p414 = scmp.eq.s32.totalorder %s44, 0
      %p415 = por %p413, %p414
      %p416 = scmp.ne.s32.totalorder %s408, %s410
      %p417 = scmp.eq.s32.totalorder %s49, 1
      %p418 = por %p416, %p417
      %p419 = scmp.ne.s32.totalorder %s410, %s411
      %p420 = scmp.eq.s32.totalorder %s49, 0
      %p421 = por %p419, %p420
      %p422 = scmp.ne.s32.totalorder %s410, %s411
      %p423 = scmp.eq.s32.totalorder %s50, 1
      %p424 = por %p422, %p423
      %p426 = scmp.ne.s32.totalorder %s411, %s425
      %p427 = scmp.eq.s32.totalorder %s50, 0
      %p428 = por %p426, %p427
      %s430 = sadd.s32 %s429, 1
      %p433 = scmp.eq.s32.totalorder %s44, 1
      %p434 = scmp.ne.s32.totalorder %s429, %s431
      %p435 = scmp.eq.s32.totalorder %s44, 0
      %p436 = por %p434, %p435
      %p437 = scmp.ne.s32.totalorder %s429, %s431
      %p438 = scmp.eq.s32.totalorder %s49, 1
      %p439 = por %p437, %p438
      %p440 = scmp.ne.s32.totalorder %s431, %s432
      %p441 = scmp.eq.s32.totalorder %s49, 0
      %p442 = por %p440, %p441
      %p443 = scmp.ne.s32.totalorder %s431, %s432
      %p444 = scmp.eq.s32.totalorder %s50, 1
      %p445 = por %p443, %p444
      %p447 = scmp.ne.s32.totalorder %s432, %s446
      %p448 = scmp.eq.s32.totalorder %s50, 0
      %p449 = por %p447, %p448
      %s450 = ssub.s32 %s44, %s51
      %p451 = scmp.eq.s32.totalorder %s450, 0
      %s453 = sadd.s32 %s452, 1
      %s454 = scalar_select %p451, %s452, %s453
      %p457 = pneg %p451
      %p458 = scmp.eq.s32.totalorder %s44, 1
      %p459 = por %p457, %p458
      %p460 = scmp.ne.s32.totalorder %s452, %s455
      %p461 = scmp.eq.s32.totalorder %s44, 0
      %p462 = por %p460, %p461
      %p463 = scmp.ne.s32.totalorder %s452, %s455
      %p464 = scmp.eq.s32.totalorder %s49, 1
      %p465 = por %p463, %p464
      %p466 = scmp.ne.s32.totalorder %s455, %s456
      %p467 = scmp.eq.s32.totalorder %s49, 0
      %p468 = por %p466, %p467
      %p469 = scmp.ne.s32.totalorder %s455, %s456
      %p470 = scmp.eq.s32.totalorder %s50, 1
      %p471 = por %p469, %p470
      %p473 = scmp.ne.s32.totalorder %s456, %s472
      %p474 = scmp.eq.s32.totalorder %s50, 0
      %p475 = por %p473, %p474
      %s476 = ssub.s32 %s44, %s51
      %p477 = scmp.eq.s32.totalorder %s476, 0
      %s479 = sadd.s32 %s478, 1
      %s480 = scalar_select %p477, %s478, %s479
      %p483 = pneg %p477
      %p484 = scmp.eq.s32.totalorder %s44, 1
      %p485 = por %p483, %p484
      %p486 = scmp.ne.s32.totalorder %s478, %s481
      %p487 = scmp.eq.s32.totalorder %s44, 0
      %p488 = por %p486, %p487
      %p489 = scmp.ne.s32.totalorder %s478, %s481
      %p490 = scmp.eq.s32.totalorder %s49, 1
      %p491 = por %p489, %p490
      %p492 = scmp.ne.s32.totalorder %s481, %s482
      %p493 = scmp.eq.s32.totalorder %s49, 0
      %p494 = por %p492, %p493
      %p495 = scmp.ne.s32.totalorder %s481, %s482
      %p496 = scmp.eq.s32.totalorder %s50, 1
      %p497 = por %p495, %p496
      %p499 = scmp.ne.s32.totalorder %s482, %s498
      %p500 = scmp.eq.s32.totalorder %s50, 0
      %p501 = por %p499, %p500
      %s502 = ssub.s32 %s44, %s51
      %p503 = scmp.eq.s32.totalorder %s502, 0
      %s505 = sadd.s32 %s504, 1
      %s506 = scalar_select %p503, %s504, %s505
      %p509 = pneg %p503
      %p510 = scmp.eq.s32.totalorder %s44, 1
      %p511 = por %p509, %p510
      %p512 = scmp.ne.s32.totalorder %s504, %s507
      %p513 = scmp.eq.s32.totalorder %s44, 0
      %p514 = por %p512, %p513
      %p515 = scmp.ne.s32.totalorder %s504, %s507
      %p516 = scmp.eq.s32.totalorder %s49, 1
      %p517 = por %p515, %p516
      %p518 = scmp.ne.s32.totalorder %s507, %s508
      %p519 = scmp.eq.s32.totalorder %s49, 0
      %p520 = por %p518, %p519
      %p521 = scmp.ne.s32.totalorder %s507, %s508
      %p522 = scmp.eq.s32.totalorder %s50, 1
      %p523 = por %p521, %p522
      %p525 = scmp.ne.s32.totalorder %s508, %s524
      %p526 = scmp.eq.s32.totalorder %s50, 0
      %p527 = por %p525, %p526
      %p528 = scmp.le.s32.totalorder 1, %s44
      %p529 = scmp.lt.s32.totalorder %s44, 3
      %p530 = pnand %p528, %p529
      %p531 = pneg %p530
      // Predicated region
      $region9: #{tpu_custom_call.1} parent=5 // pred_check
        _
      $region10: #{tpu_custom_call.1} parent=5 // pred_check_branch
        %533 = sbr.rel (%p530) target = $region12
      $region11: #{tpu_custom_call.1} parent=5 // pred_region
        %s534 = ssub.s32 %s44, 1
        // Predicated region
        $region13: #{tpu_custom_call.1} parent=11 // pred_check
          %p535 = pneg %p169
        $region14: #{tpu_custom_call.1} parent=11 // pred_check_branch
          %537 = sbr.rel (%p535) target = $region16
        $region15: #{tpu_custom_call.1} parent=11 // pred_region
          _
        $region16: #{tpu_custom_call.1} parent=11 // pred_fallthru
          _
        // Predicated region
        $region17: #{tpu_custom_call.1} parent=11 // pred_check
          %p538 = pneg %p190
        $region18: #{tpu_custom_call.1} parent=11 // pred_check_branch
          %540 = sbr.rel (%p538) target = $region20
        $region19: #{tpu_custom_call.1} parent=11 // pred_region
          %s542 = ssub.s32 96, 96
          %543 = vsyncadd [#allocation9], %s542
          %s545 = sshll.u32 [#allocation10], 4
          %s546 = int_to_ptr.vmem [resolvable:$true] %s545
          %548 = dma.hbm_to_vmem [thread:$0]  %s5, 96, %s546, [#allocation9]
        $region20: #{tpu_custom_call.1} parent=11 // pred_fallthru
          _
        // Predicated region
        $region21: #{tpu_custom_call.1} parent=11 // pred_check
          %p549 = pneg %p211
        $region22: #{tpu_custom_call.1} parent=11 // pred_check_branch
          %551 = sbr.rel (%p549) target = $region24
        $region23: #{tpu_custom_call.1} parent=11 // pred_region
          _
        $region24: #{tpu_custom_call.1} parent=11 // pred_fallthru
          _
        // Predicated region
        $region25: #{tpu_custom_call.1} parent=11 // pred_check
          %p552 = pneg %p232
        $region26: #{tpu_custom_call.1} parent=11 // pred_check_branch
          %554 = sbr.rel (%p552) target = $region28
        $region27: #{tpu_custom_call.1} parent=11 // pred_region
          _
        $region28: #{tpu_custom_call.1} parent=11 // pred_fallthru
          _
        // Predicated region
        $region29: #{tpu_custom_call.1} parent=11 // pred_check
          %p555 = pneg %p253
        $region30: #{tpu_custom_call.1} parent=11 // pred_check_branch
          %557 = sbr.rel (%p555) target = $region32
        $region31: #{tpu_custom_call.1} parent=11 // pred_region
          %s559 = ssub.s32 1024, 1024
          %560 = vsyncadd [#allocation12], %s559
          %s561 = sshll.u32 [#allocation11], 4
          %s562 = int_to_ptr.vmem [resolvable:$true] %s561
          %567 = dma.hbm_to_vmem [thread:$0]  %s8, 1024, %s562, [#allocation12], 128, 128, 8
        $region32: #{tpu_custom_call.1} parent=11 // pred_fallthru
          _
        // Predicated region
        $region33: #{tpu_custom_call.1} parent=11 // pred_check
          %p568 = pneg %p274
        $region34: #{tpu_custom_call.1} parent=11 // pred_check_branch
          %570 = sbr.rel (%p568) target = $region36
        $region35: #{tpu_custom_call.1} parent=11 // pred_region
          %s572 = ssub.s32 32, 32
          %573 = vsyncadd [#allocation12], %s572
          %s575 = sshll.u32 [#allocation13], 4
          %s576 = int_to_ptr.vmem [resolvable:$true] %s575
          %578 = dma.hbm_to_vmem [thread:$0]  %s9, 32, %s576, [#allocation12]
        $region36: #{tpu_custom_call.1} parent=11 // pred_fallthru
          _
        // Predicated region
        $region37: #{tpu_custom_call.1} parent=11 // pred_check
          %p579 = pneg %p295
        $region38: #{tpu_custom_call.1} parent=11 // pred_check_branch
          %581 = sbr.rel (%p579) target = $region40
        $region39: #{tpu_custom_call.1} parent=11 // pred_region
          _
        $region40: #{tpu_custom_call.1} parent=11 // pred_fallthru
          _
        // Predicated region
        $region41: #{tpu_custom_call.1} parent=11 // pred_check
          %p582 = pneg %p316
        $region42: #{tpu_custom_call.1} parent=11 // pred_check_branch
          %584 = sbr.rel (%p582) target = $region44
        $region43: #{tpu_custom_call.1} parent=11 // pred_region
          _
        $region44: #{tpu_custom_call.1} parent=11 // pred_fallthru
          _
        // Predicated region
        $region45: #{tpu_custom_call.1} parent=11 // pred_check
          %p585 = pneg %p337
        $region46: #{tpu_custom_call.1} parent=11 // pred_check_branch
          %587 = sbr.rel (%p585) target = $region48
        $region47: #{tpu_custom_call.1} parent=11 // pred_region
          _
        $region48: #{tpu_custom_call.1} parent=11 // pred_fallthru
          _
        // Predicated region
        $region49: #{tpu_custom_call.1} parent=11 // pred_check
          %p588 = pneg %p358
        $region50: #{tpu_custom_call.1} parent=11 // pred_check_branch
          %590 = sbr.rel (%p588) target = $region52
        $region51: #{tpu_custom_call.1} parent=11 // pred_region
          _
        $region52: #{tpu_custom_call.1} parent=11 // pred_fallthru
          _
        // Predicated region
        $region53: #{tpu_custom_call.1} parent=11 // pred_check
          %p591 = pneg %p379
        $region54: #{tpu_custom_call.1} parent=11 // pred_check_branch
          %593 = sbr.rel (%p591) target = $region56
        $region55: #{tpu_custom_call.1} parent=11 // pred_region
          %s595 = ssub.s32 512, 512
          %596 = vsyncadd [#allocation15], %s595
          %s597 = sshll.u32 [#allocation14], 4
          %s598 = int_to_ptr.vmem [resolvable:$true] %s597
          %603 = dma.hbm_to_vmem [thread:$0]  %s14, 512, %s598, [#allocation15], 64, 64, 4
        $region56: #{tpu_custom_call.1} parent=11 // pred_fallthru
          _
        // Predicated region
        $region57: #{tpu_custom_call.1} parent=11 // pred_check
          %p604 = pneg %p400
        $region58: #{tpu_custom_call.1} parent=11 // pred_check_branch
          %606 = sbr.rel (%p604) target = $region60
        $region59: #{tpu_custom_call.1} parent=11 // pred_region
          _
        $region60: #{tpu_custom_call.1} parent=11 // pred_fallthru
          _
        // Predicated region
        $region61: #{tpu_custom_call.1} parent=11 // pred_check
          %p607 = pneg %p421
        $region62: #{tpu_custom_call.1} parent=11 // pred_check_branch
          %609 = sbr.rel (%p607) target = $region64
        $region63: #{tpu_custom_call.1} parent=11 // pred_region
          _
        $region64: #{tpu_custom_call.1} parent=11 // pred_fallthru
          _
        // Predicated region
        $region65: #{tpu_custom_call.1} parent=11 // pred_check
          %p610 = pneg %p442
        $region66: #{tpu_custom_call.1} parent=11 // pred_check_branch
          %612 = sbr.rel (%p610) target = $region68
        $region67: #{tpu_custom_call.1} parent=11 // pred_region
          _
        $region68: #{tpu_custom_call.1} parent=11 // pred_fallthru
          _
      $region12: #{tpu_custom_call.1} parent=5 // pred_fallthru
        _
      %p613 = scmp.lt.s32.totalorder %s44, 2
      // Predicated region
      $region69: #{tpu_custom_call.1} parent=5 // pred_check
        %p614 = pneg %p613
      $region70: #{tpu_custom_call.1} parent=5 // pred_check_branch
        %616 = sbr.rel (%p614) target = $region72
      $region71: #{tpu_custom_call.1} parent=5 // pred_region
        // Predicated region
        $region73: #{tpu_custom_call.1} parent=71 // pred_check
          %p617 = pneg %p64
        $region74: #{tpu_custom_call.1} parent=71 // pred_check_branch
          %619 = sbr.rel (%p617) target = $region76
        $region75: #{tpu_custom_call.1} parent=71 // pred_region
          %s620 = sand.u32 %s54, 1
          %s621 = scalar_lea.sflag [#allocation3], %s620
          %s622 = sand.u32 %s54, 1
          %s623 = smul.addr %s622, 16
          %s624 = scalar_lea.vmem [#allocation2], %s623
          %s626 = ssub.s32 256, 256
          %627 = vsyncadd %s621, %s626
          %s628 = smul.addr %s44, 2
          %s629 = smul.addr %s628, 128
          %s630 = scalar_lea.hbm %s0, %s629
          %s631 = sshll.u32 %s624, 4
          %s632 = int_to_ptr.vmem [resolvable:$true] %s631
          %637 = dma.hbm_to_vmem [thread:$0]  %s630, 256, %s632, %s621, 128, 128, 8
        $region76: #{tpu_custom_call.1} parent=71 // pred_fallthru
          _
        // Predicated region
        $region77: #{tpu_custom_call.1} parent=71 // pred_check
          %p638 = pneg %p90
        $region78: #{tpu_custom_call.1} parent=71 // pred_check_branch
          %640 = sbr.rel (%p638) target = $region80
        $region79: #{tpu_custom_call.1} parent=71 // pred_region
          %s641 = sand.u32 %s44, 1
          %s642 = scalar_lea.sflag [#allocation6], %s641
          %s643 = sand.u32 %s80, 1
          %s644 = smul.addr %s643, 32
          %s645 = scalar_lea.vmem [#allocation5], %s644
          %s647 = ssub.s32 512, 512
          %648 = vsyncadd %s642, %s647
          %s649 = smul.addr %s44, 4
          %s650 = smul.addr %s649, 128
          %s651 = scalar_lea.hbm %s1, %s650
          %s652 = sshll.u32 %s645, 4
          %s653 = int_to_ptr.vmem [resolvable:$true] %s652
          %658 = dma.hbm_to_vmem [thread:$0]  %s651, 512, %s653, %s642, 128, 128, 8
        $region80: #{tpu_custom_call.1} parent=71 // pred_fallthru
          _
        // Predicated region
        $region81: #{tpu_custom_call.1} parent=71 // pred_check
          %p659 = pneg %p116
        $region82: #{tpu_custom_call.1} parent=71 // pred_check_branch
          %661 = sbr.rel (%p659) target = $region84
        $region83: #{tpu_custom_call.1} parent=71 // pred_region
          %s662 = sand.u32 %s44, 1
          %s663 = scalar_lea.sflag [#allocation6], %s662
          %s664 = sand.u32 %s106, 1
          %s665 = smul.addr %s664, 16
          %s666 = scalar_lea.vmem [#allocation7], %s665
          %s668 = ssub.s32 256, 256
          %669 = vsyncadd %s663, %s668
          %s670 = smul.addr %s44, 2
          %s671 = smul.addr %s670, 128
          %s672 = scalar_lea.hbm %s2, %s671
          %s673 = sshll.u32 %s666, 4
          %s674 = int_to_ptr.vmem [resolvable:$true] %s673
          %679 = dma.hbm_to_vmem [thread:$0]  %s672, 256, %s674, %s663, 128, 128, 8
        $region84: #{tpu_custom_call.1} parent=71 // pred_fallthru
          _
        // Predicated region
        $region85: #{tpu_custom_call.1} parent=71 // pred_check
          %p680 = pneg %p142
        $region86: #{tpu_custom_call.1} parent=71 // pred_check_branch
          %682 = sbr.rel (%p680) target = $region88
        $region87: #{tpu_custom_call.1} parent=71 // pred_region
          %s683 = sand.u32 %s44, 1
          %s684 = scalar_lea.sflag [#allocation9], %s683
          %s685 = sand.u32 %s132, 1
          %s686 = smul.addr %s685, 16
          %s687 = scalar_lea.vmem [#allocation8], %s686
          %s689 = ssub.s32 256, 256
          %690 = vsyncadd %s684, %s689
          %s691 = smul.addr %s44, 2
          %s692 = smul.addr %s691, 128
          %s693 = scalar_lea.hbm %s3, %s692
          %s694 = sshll.u32 %s687, 4
          %s695 = int_to_ptr.vmem [resolvable:$true] %s694
          %700 = dma.hbm_to_vmem [thread:$0]  %s693, 256, %s695, %s684, 128, 128, 8
        $region88: #{tpu_custom_call.1} parent=71 // pred_fallthru
          _
      $region72: #{tpu_custom_call.1} parent=5 // pred_fallthru
        _
      %p701 = scmp.le.s32.totalorder 1, %s44
      %p702 = scmp.lt.s32.totalorder %s44, 3
      %p703 = pnand %p701, %p702
      %p704 = pneg %p703
      // Predicated region
      $region89: #{tpu_custom_call.1} parent=5 // pred_check
        _
      $region90: #{tpu_custom_call.1} parent=5 // pred_check_branch
        %706 = sbr.rel (%p703) target = $region92
      $region91: #{tpu_custom_call.1} parent=5 // pred_region
        %s707 = ssub.s32 %s44, 1
        %s708 = sand.u32 %s57, 1
        %s709 = scalar_lea.sflag [#allocation3], %s708
        %s710 = sand.u32 %s57, 1
        %s711 = smul.addr %s710, 16
        %s712 = scalar_lea.vmem [#allocation2], %s711
        // Predicated region
        $region93: #{tpu_custom_call.1} parent=91 // pred_check
          %p713 = pneg %p70
        $region94: #{tpu_custom_call.1} parent=91 // pred_check_branch
          %715 = sbr.rel (%p713) target = $region96
        $region95: #{tpu_custom_call.1} parent=91 // pred_region
          %716 = dma.done %s709, 256
        $region96: #{tpu_custom_call.1} parent=91 // pred_fallthru
          _
        %s717 = sand.u32 %s49, 1
        %s718 = scalar_lea.sflag [#allocation6], %s717
        %s719 = sand.u32 %s83, 1
        %s720 = smul.addr %s719, 32
        %s721 = scalar_lea.vmem [#allocation5], %s720
        // Predicated region
        $region97: #{tpu_custom_call.1} parent=91 // pred_check
          %p722 = pneg %p96
        $region98: #{tpu_custom_call.1} parent=91 // pred_check_branch
          %724 = sbr.rel (%p722) target = $region100
        $region99: #{tpu_custom_call.1} parent=91 // pred_region
          %725 = dma.done %s718, 512
        $region100: #{tpu_custom_call.1} parent=91 // pred_fallthru
          _
        %s726 = sand.u32 %s49, 1
        %s727 = scalar_lea.sflag [#allocation6], %s726
        %s728 = sand.u32 %s109, 1
        %s729 = smul.addr %s728, 16
        %s730 = scalar_lea.vmem [#allocation7], %s729
        // Predicated region
        $region101: #{tpu_custom_call.1} parent=91 // pred_check
          %p731 = pneg %p122
        $region102: #{tpu_custom_call.1} parent=91 // pred_check_branch
          %733 = sbr.rel (%p731) target = $region104
        $region103: #{tpu_custom_call.1} parent=91 // pred_region
          %734 = dma.done %s727, 256
        $region104: #{tpu_custom_call.1} parent=91 // pred_fallthru
          _
        %s735 = sand.u32 %s49, 1
        %s736 = scalar_lea.sflag [#allocation9], %s735
        %s737 = sand.u32 %s135, 1
        %s738 = smul.addr %s737, 16
        %s739 = scalar_lea.vmem [#allocation8], %s738
        // Predicated region
        $region105: #{tpu_custom_call.1} parent=91 // pred_check
          %p740 = pneg %p148
        $region106: #{tpu_custom_call.1} parent=91 // pred_check_branch
          %742 = sbr.rel (%p740) target = $region108
        $region107: #{tpu_custom_call.1} parent=91 // pred_region
          %743 = dma.done %s736, 256
        $region108: #{tpu_custom_call.1} parent=91 // pred_fallthru
          _
        // Predicated region
        $region109: #{tpu_custom_call.1} parent=91 // pred_check
          %p744 = pneg %p190
        $region110: #{tpu_custom_call.1} parent=91 // pred_check_branch
          %746 = sbr.rel (%p744) target = $region112
        $region111: #{tpu_custom_call.1} parent=91 // pred_region
          %747 = dma.done [#allocation9], 96
        $region112: #{tpu_custom_call.1} parent=91 // pred_fallthru
          _
        // Predicated region
        $region113: #{tpu_custom_call.1} parent=91 // pred_check
          %p748 = pneg %p253
        $region114: #{tpu_custom_call.1} parent=91 // pred_check_branch
          %750 = sbr.rel (%p748) target = $region116
        $region115: #{tpu_custom_call.1} parent=91 // pred_region
          %751 = dma.done [#allocation12], 1024
        $region116: #{tpu_custom_call.1} parent=91 // pred_fallthru
          _
        // Predicated region
        $region117: #{tpu_custom_call.1} parent=91 // pred_check
          %p752 = pneg %p274
        $region118: #{tpu_custom_call.1} parent=91 // pred_check_branch
          %754 = sbr.rel (%p752) target = $region120
        $region119: #{tpu_custom_call.1} parent=91 // pred_region
          %755 = dma.done [#allocation12], 32
        $region120: #{tpu_custom_call.1} parent=91 // pred_fallthru
          _
        // Predicated region
        $region121: #{tpu_custom_call.1} parent=91 // pred_check
          %p756 = pneg %p379
        $region122: #{tpu_custom_call.1} parent=91 // pred_check_branch
          %758 = sbr.rel (%p756) target = $region124
        $region123: #{tpu_custom_call.1} parent=91 // pred_region
          %759 = dma.done [#allocation15], 512
        $region124: #{tpu_custom_call.1} parent=91 // pred_fallthru
          _
        %s760 = sand.u32 %s57, 1
        %s761 = scalar_lea.sflag [#allocation3], %s760
        %s762 = sand.u32 %s57, 1
        %s763 = smul.addr %s762, 16
        %s764 = scalar_lea.vmem [#allocation2], %s763
        %p765 = pneg %p70
        %p766 = pneg %p67
        %s767 = sand.u32 %s49, 1
        %s768 = scalar_lea.sflag [#allocation6], %s767
        %s769 = sand.u32 %s83, 1
        %s770 = smul.addr %s769, 32
        %s771 = scalar_lea.vmem [#allocation5], %s770
        %p772 = pneg %p96
        %p773 = pneg %p93
        %s774 = sand.u32 %s49, 1
        %s775 = scalar_lea.sflag [#allocation6], %s774
        %s776 = sand.u32 %s109, 1
        %s777 = smul.addr %s776, 16
        %s778 = scalar_lea.vmem [#allocation7], %s777
        %p779 = pneg %p122
        %p780 = pneg %p119
        %s781 = sand.u32 %s49, 1
        %s782 = scalar_lea.sflag [#allocation9], %s781
        %s783 = sand.u32 %s135, 1
        %s784 = smul.addr %s783, 16
        %s785 = scalar_lea.vmem [#allocation8], %s784
        %p786 = pneg %p148
        %p787 = pneg %p145
        %p788 = pneg %p169
        %p789 = pneg %p166
        %p790 = pneg %p190
        %p791 = pneg %p187
        %p792 = pneg %p211
        %p793 = pneg %p208
        %p794 = pneg %p232
        %p795 = pneg %p229
        %p796 = pneg %p253
        %p797 = pneg %p250
        %p798 = pneg %p274
        %p799 = pneg %p271
        %p800 = pneg %p295
        %p801 = pneg %p292
        %p802 = pneg %p316
        %p803 = pneg %p313
        %p804 = pneg %p337
        %p805 = pneg %p334
        %p806 = pneg %p358
        %p807 = pneg %p355
        %p808 = pneg %p379
        %p809 = pneg %p376
        %p810 = pneg %p400
        %p811 = pneg %p397
        %p812 = pneg %p421
        %p813 = pneg %p418
        %p814 = pneg %p442
        %p815 = pneg %p439
        %p816 = pneg %p468
        %p817 = pneg %p465
        %s818 = sand.u32 %s455, 1
        %s819 = scalar_lea.sflag [#allocation4], %s818
        %s820 = sand.u32 %s455, 1
        %s821 = smul.addr %s820, 16
        %s822 = scalar_lea.vmem [#allocation16], %s821
        %p823 = pneg %p494
        %p824 = pneg %p491
        %s825 = sand.u32 %s49, 1
        %s826 = scalar_lea.sflag [#allocation18], %s825
        %s827 = sand.u32 %s481, 1
        %s828 = smul.addr %s827, 16
        %s829 = scalar_lea.vmem [#allocation17], %s828
        %p830 = pneg %p520
        %p831 = pneg %p517
        %s832 = sand.u32 %s49, 1
        %s833 = scalar_lea.sflag [#allocation18], %s832
        %s834 = sand.u32 %s507, 1
        %s835 = smul.addr %s834, 16
        %s836 = scalar_lea.vmem [#allocation19], %s835
        %v838 = vld [vmem:[%s712] sm:$0xff]
        %v839 = vld [vmem:[%s712 + $0x8] sm:$0xff]
        %v840 = vld [vmem:[%s721] sm:$0xff]
        %v841 = vld [vmem:[%s721 + $0x8] sm:$0xff]
        %v842 = vld [vmem:[%s721 + $0x10] sm:$0xff]
        %v843 = vld [vmem:[%s721 + $0x18] sm:$0xff]
        %v844 = vld [vmem:[%s730] sm:$0xff]
        %v845 = vld [vmem:[%s730 + $0x8] sm:$0xff]
        %v846 = vld [vmem:[%s739] sm:$0xff]
        %v847 = vld [vmem:[%s739 + $0x8] sm:$0xff]
        %v848 = vld [vmem:[%s4] sm:$0xff]
        %v849 = vld [vmem:[%s4 + $0x8] sm:$0xff]
        %v850 = vld [vmem:[%s4 + $0x10] sm:$0xff]
        %v851 = vld [vmem:[%s4 + $0x18] sm:$0xff]
        %v852 = vld [vmem:[%s4 + $0x20] sm:$0xff]
        %v853 = vld [vmem:[%s4 + $0x28] sm:$0xff]
        %v854 = vld [vmem:[%s4 + $0x30] sm:$0xff]
        %v855 = vld [vmem:[%s4 + $0x38] sm:$0xff]
        %v856 = vld [vmem:[%s4 + $0x40] sm:$0xff]
        %v857 = vld [vmem:[%s4 + $0x48] sm:$0xff]
        %v858 = vld [vmem:[%s4 + $0x50] sm:$0xff]
        %v859 = vld [vmem:[%s4 + $0x58] sm:$0xff]
        %v860 = vld [vmem:[%s4 + $0x60] sm:$0xff]
        %v861 = vld [vmem:[%s4 + $0x68] sm:$0xff]
        %v862 = vld [vmem:[%s4 + $0x70] sm:$0xff]
        %v863 = vld [vmem:[%s4 + $0x78] sm:$0xff]
        %v864 = vld [vmem:[%s4 + $0x80] sm:$0xff]
        %v865 = vld [vmem:[%s4 + $0x88] sm:$0xff]
        %v866 = vld [vmem:[%s4 + $0x90] sm:$0xff]
        %v867 = vld [vmem:[%s4 + $0x98] sm:$0xff]
        %v868 = vld [vmem:[%s4 + $0xa0] sm:$0xff]
        %v869 = vld [vmem:[%s4 + $0xa8] sm:$0xff]
        %v870 = vld [vmem:[%s4 + $0xb0] sm:$0xff]
        %v871 = vld [vmem:[%s4 + $0xb8] sm:$0xff]
        %v872 = vpack.c.bf16 %v839, %v838
        %v873 = vld [vmem:[#allocation10] sm:$0x3f]
        %v875 = vlaneseq
        %v876 = vshrl.u32 %v875, 7
        %v877 = vsub.s32 0, %v876
        %v878 = vrot.slane %v873, %v877
        %v879 = vlaneseq
        %v880 = vshrl.u32 %v879, 7
        %v881 = vsub.s32 1, %v880
        %v882 = vrot.slane %v873, %v881
        %v883 = vlaneseq
        %v884 = vshrl.u32 %v883, 7
        %v885 = vsub.s32 2, %v884
        %v886 = vrot.slane %v873, %v885
        %v887 = vlaneseq
        %v888 = vshrl.u32 %v887, 7
        %v889 = vsub.s32 3, %v888
        %v890 = vrot.slane %v873, %v889
        %v891 = vlaneseq
        %v892 = vshrl.u32 %v891, 7
        %v893 = vsub.s32 4, %v892
        %v894 = vrot.slane %v873, %v893
        %v895 = vlaneseq
        %v896 = vshrl.u32 %v895, 7
        %v897 = vsub.s32 5, %v896
        %v898 = vrot.slane %v873, %v897
        %v929 = vunpack.c.l.b16 %v848
        %v930 = vunpack.c.h.b16 %v848
        %v931 = vunpack.c.l.b16 %v849
        %v932 = vunpack.c.h.b16 %v849
        %v933 = vunpack.c.l.b16 %v850
        %v934 = vunpack.c.h.b16 %v850
        %v935 = vunpack.c.l.b16 %v851
        %v936 = vunpack.c.h.b16 %v851
        %v937 = vunpack.c.l.b16 %v852
        %v938 = vunpack.c.h.b16 %v852
        %v939 = vunpack.c.l.b16 %v853
        %v940 = vunpack.c.h.b16 %v853
        %v941 = vunpack.c.l.b16 %v854
        %v942 = vunpack.c.h.b16 %v854
        %v943 = vunpack.c.l.b16 %v855
        %v944 = vunpack.c.h.b16 %v855
        %v945 = vunpack.c.l.b16 %v856
        %v946 = vunpack.c.h.b16 %v856
        %v947 = vunpack.c.l.b16 %v857
        %v948 = vunpack.c.h.b16 %v857
        %v949 = vunpack.c.l.b16 %v858
        %v950 = vunpack.c.h.b16 %v858
        %v951 = vunpack.c.l.b16 %v859
        %v952 = vunpack.c.h.b16 %v859
        %v953 = vunpack.c.l.b16 %v860
        %v954 = vunpack.c.h.b16 %v860
        %v955 = vunpack.c.l.b16 %v861
        %v956 = vunpack.c.h.b16 %v861
        %v957 = vunpack.c.l.b16 %v862
        %v958 = vunpack.c.h.b16 %v862
        %v959 = vunpack.c.l.b16 %v863
        %v960 = vunpack.c.h.b16 %v863
        %v961 = vunpack.c.l.b16 %v864
        %v962 = vunpack.c.h.b16 %v864
        %v963 = vunpack.c.l.b16 %v865
        %v964 = vunpack.c.h.b16 %v865
        %v965 = vunpack.c.l.b16 %v866
        %v966 = vunpack.c.h.b16 %v866
        %v967 = vunpack.c.l.b16 %v867
        %v968 = vunpack.c.h.b16 %v867
        %v969 = vunpack.c.l.b16 %v868
        %v970 = vunpack.c.h.b16 %v868
        %v971 = vunpack.c.l.b16 %v869
        %v972 = vunpack.c.h.b16 %v869
        %v973 = vunpack.c.l.b16 %v870
        %v974 = vunpack.c.h.b16 %v870
        %v975 = vunpack.c.l.b16 %v871
        %v976 = vunpack.c.h.b16 %v871
        %v977 = vpack.c.b16 %v935, %v929
        %v978 = vpack.c.b16 %v936, %v930
        %v979 = vpack.c.b16 %v937, %v931
        %v980 = vpack.c.b16 %v938, %v932
        %v981 = vpack.c.b16 %v939, %v933
        %v982 = vpack.c.b16 %v940, %v934
        %v983 = vpack.c.b16 %v947, %v941
        %v984 = vpack.c.b16 %v948, %v942
        %v985 = vpack.c.b16 %v949, %v943
        %v986 = vpack.c.b16 %v950, %v944
        %v987 = vpack.c.b16 %v951, %v945
        %v988 = vpack.c.b16 %v952, %v946
        %v989 = vpack.c.b16 %v959, %v953
        %v990 = vpack.c.b16 %v960, %v954
        %v991 = vpack.c.b16 %v961, %v955
        %v992 = vpack.c.b16 %v962, %v956
        %v993 = vpack.c.b16 %v963, %v957
        %v994 = vpack.c.b16 %v964, %v958
        %v995 = vpack.c.b16 %v971, %v965
        %v996 = vpack.c.b16 %v972, %v966
        %v997 = vpack.c.b16 %v973, %v967
        %v998 = vpack.c.b16 %v974, %v968
        %v999 = vpack.c.b16 %v975, %v969
        %v1000 = vpack.c.b16 %v976, %v970
        %vm1025 = vcmask 523264
        %v1027 = vsel %vm1025, %v872, 0
        %1029 = vmatprep.subr.bf16.mxu0 %v978
        %1030 = vmatpush1.bf16.msra.mxu0 %v977
        %1031 = vmatprep.subr.bf16.mxu0 %v984
        %1032 = vmatpush1.bf16.msra.mxu0 %v983
        %1033 = vmatprep.subr.bf16.mxu0 %v990
        %1034 = vmatpush1.bf16.msra.mxu0 %v989
        %1035 = vmatprep.subr.bf16.mxu0 %v996
        %1036 = vmatpush1.bf16.msra.mxu0 %v995
        %1037 = vmatprep.subr.bf16.mxu0 0
        %1038 = vmatpush1.bf16.msra.mxu0 0
        %1039 = vmatprep.subr.bf16.mxu0 0
        %1040 = vmatpush1.bf16.msra.mxu0 0
        %1041 = vmatprep.subr.bf16.mxu0 0
        %1042 = vmatpush1.bf16.msra.mxu0 0
        %1043 = vmatprep.subr.bf16.mxu0 0
        %1044 = vmatpush1.bf16.msra.mxu0 0
        %1045 = vmatprep.subr.bf16.mxu0 0
        %1046 = vmatpush1.bf16.msra.mxu0 0
        %1047 = vmatprep.subr.bf16.mxu0 0
        %1048 = vmatpush1.bf16.msra.mxu0 0
        %1049 = vmatprep.subr.bf16.mxu0 0
        %1050 = vmatpush1.bf16.msra.mxu0 0
        %1051 = vmatprep.subr.bf16.mxu0 0
        %1052 = vmatpush1.bf16.msra.mxu0 0
        %1053 = vmatprep.subr.bf16.mxu0 0
        %1054 = vmatpush1.bf16.msra.mxu0 0
        %1055 = vmatprep.subr.bf16.mxu0 0
        %1056 = vmatpush1.bf16.msra.mxu0 0
        %1057 = vmatprep.subr.bf16.mxu0 0
        %1058 = vmatpush1.bf16.msra.mxu0 0
        %1059 = vmatprep.subr.bf16.mxu0 0
        %1060 = vmatpush1.bf16.msra.mxu0 0
        %1061 = vmatprep.mubr.bf16.mxu0 0
        %1062 = vmatmul.mubr.bf16.gmra.mrb[0].mxu0 %v1027
        %v1063 = vpop.f32.mrb[0].mxu0
        %v1064 = vadd.f32 %v878, %v1063
        %v1065 = vpop.f32.mrb[0].mxu0
        %v1066 = vadd.f32 %v882, %v1065
        %v1067 = vpop.f32.mrb[0].mxu0
        %v1068 = vadd.f32 %v878, %v1067
        %v1069 = vpop.f32.mrb[0].mxu0
        %v1070 = vadd.f32 %v882, %v1069
        %1071 = vdwg.mxu0
        %1072 = vmatprep.subr.bf16.mxu0 %v980
        %1073 = vmatpush1.bf16.msra.mxu0 %v979
        %1074 = vmatprep.subr.bf16.mxu0 %v986
        %1075 = vmatpush1.bf16.msra.mxu0 %v985
        %1076 = vmatprep.subr.bf16.mxu0 %v992
        %1077 = vmatpush1.bf16.msra.mxu0 %v991
        %1078 = vmatprep.subr.bf16.mxu0 %v998
        %1079 = vmatpush1.bf16.msra.mxu0 %v997
        %1080 = vmatprep.subr.bf16.mxu0 0
        %1081 = vmatpush1.bf16.msra.mxu0 0
        %1082 = vmatprep.subr.bf16.mxu0 0
        %1083 = vmatpush1.bf16.msra.mxu0 0
        %1084 = vmatprep.subr.bf16.mxu0 0
        %1085 = vmatpush1.bf16.msra.mxu0 0
        %1086 = vmatprep.subr.bf16.mxu0 0
        %1087 = vmatpush1.bf16.msra.mxu0 0
        %1088 = vmatprep.subr.bf16.mxu0 0
        %1089 = vmatpush1.bf16.msra.mxu0 0
        %1090 = vmatprep.subr.bf16.mxu0 0
        %1091 = vmatpush1.bf16.msra.mxu0 0
        %1092 = vmatprep.subr.bf16.mxu0 0
        %1093 = vmatpush1.bf16.msra.mxu0 0
        %1094 = vmatprep.subr.bf16.mxu0 0
        %1095 = vmatpush1.bf16.msra.mxu0 0
        %1096 = vmatprep.subr.bf16.mxu0 0
        %1097 = vmatpush1.bf16.msra.mxu0 0
        %1098 = vmatprep.subr.bf16.mxu0 0
        %1099 = vmatpush1.bf16.msra.mxu0 0
        %1100 = vmatprep.subr.bf16.mxu0 0
        %1101 = vmatpush1.bf16.msra.mxu0 0
        %1102 = vmatprep.subr.bf16.mxu0 0
        %1103 = vmatpush1.bf16.msra.mxu0 0
        %1104 = vmatprep.mubr.bf16.mxu0 0
        %1105 = vmatmul.mubr.bf16.gmra.mrb[0].mxu0 %v1027
        %v1106 = vpop.f32.mrb[0].mxu0
        %v1107 = vadd.f32 %v886, %v1106
        %v1108 = vpop.f32.mrb[0].mxu0
        %v1109 = vadd.f32 %v890, %v1108
        %v1110 = vpop.f32.mrb[0].mxu0
        %v1111 = vadd.f32 %v886, %v1110
        %v1112 = vpop.f32.mrb[0].mxu0
        %v1113 = vadd.f32 %v890, %v1112
        %1114 = vdwg.mxu0
        %1115 = vmatprep.subr.bf16.mxu0 %v982
        %1116 = vmatpush1.bf16.msra.mxu0 %v981
        %1117 = vmatprep.subr.bf16.mxu0 %v988
        %1118 = vmatpush1.bf16.msra.mxu0 %v987
        %1119 = vmatprep.subr.bf16.mxu0 %v994
        %1120 = vmatpush1.bf16.msra.mxu0 %v993
        %1121 = vmatprep.subr.bf16.mxu0 %v1000
        %1122 = vmatpush1.bf16.msra.mxu0 %v999
        %1123 = vmatprep.subr.bf16.mxu0 0
        %1124 = vmatpush1.bf16.msra.mxu0 0
        %1125 = vmatprep.subr.bf16.mxu0 0
        %1126 = vmatpush1.bf16.msra.mxu0 0
        %1127 = vmatprep.subr.bf16.mxu0 0
        %1128 = vmatpush1.bf16.msra.mxu0 0
        %1129 = vmatprep.subr.bf16.mxu0 0
        %1130 = vmatpush1.bf16.msra.mxu0 0
        %1131 = vmatprep.subr.bf16.mxu0 0
        %1132 = vmatpush1.bf16.msra.mxu0 0
        %1133 = vmatprep.subr.bf16.mxu0 0
        %1134 = vmatpush1.bf16.msra.mxu0 0
        %1135 = vmatprep.subr.bf16.mxu0 0
        %1136 = vmatpush1.bf16.msra.mxu0 0
        %1137 = vmatprep.subr.bf16.mxu0 0
        %1138 = vmatpush1.bf16.msra.mxu0 0
        %1139 = vmatprep.subr.bf16.mxu0 0
        %1140 = vmatpush1.bf16.msra.mxu0 0
        %1141 = vmatprep.subr.bf16.mxu0 0
        %1142 = vmatpush1.bf16.msra.mxu0 0
        %1143 = vmatprep.subr.bf16.mxu0 0
        %1144 = vmatpush1.bf16.msra.mxu0 0
        %1145 = vmatprep.subr.bf16.mxu0 0
        %1146 = vmatpush1.bf16.msra.mxu0 0
        %1147 = vmatprep.mubr.bf16.mxu0 0
        %1148 = vmatmul.mubr.bf16.gmra.mrb[0].mxu0 %v1027
        %v1149 = vpop.f32.mrb[0].mxu0
        %v1150 = vadd.f32 %v894, %v1149
        %v1151 = vpop.f32.mrb[0].mxu0
        %v1152 = vadd.f32 %v898, %v1151
        %v1153 = vpop.f32.mrb[0].mxu0
        %v1154 = vadd.f32 %v894, %v1153
        %v1155 = vpop.f32.mrb[0].mxu0
        %v1156 = vadd.f32 %v898, %v1155
        %1157 = vdwg.mxu0
        %v1158 = vpack.c.bf16 %v1068, %v1064
        %v1159 = vpack.c.bf16 %v1111, %v1107
        %v1161 = vsel %vm1025, %v1158, 0
        %v1164 = vsel %vm1025, %v1159, 0
        %1166 = vmatprep.subr.bf16.mxu0 0
        %1167 = vmatpush1.bf16.xpose.msra.mxu0 %v1164
        %1168 = vmatprep.subr.bf16.mxu0 0
        %1169 = vmatpush1.bf16.xpose.msra.mxu0 0
        %1170 = vmatprep.subr.bf16.mxu0 0
        %1171 = vmatpush1.bf16.xpose.msra.mxu0 0
        %1172 = vmatprep.subr.bf16.mxu0 0
        %1173 = vmatpush1.bf16.xpose.msra.mxu0 0
        %1174 = vmatprep.subr.bf16.mxu0 0
        %1175 = vmatpush1.bf16.xpose.msra.mxu0 0
        %1176 = vmatprep.subr.bf16.mxu0 0
        %1177 = vmatpush1.bf16.xpose.msra.mxu0 0
        %1178 = vmatprep.subr.bf16.mxu0 0
        %1179 = vmatpush1.bf16.xpose.msra.mxu0 0
        %1180 = vmatprep.subr.bf16.mxu0 0
        %1181 = vmatpush1.bf16.xpose.msra.mxu0 0
        %1182 = vmatprep.subr.bf16.mxu0 0
        %1183 = vmatpush1.bf16.xpose.msra.mxu0 0
        %1184 = vmatprep.subr.bf16.mxu0 0
        %1185 = vmatpush1.bf16.xpose.msra.mxu0 0
        %1186 = vmatprep.subr.bf16.mxu0 0
        %1187 = vmatpush1.bf16.xpose.msra.mxu0 0
        %1188 = vmatprep.subr.bf16.mxu0 0
        %1189 = vmatpush1.bf16.xpose.msra.mxu0 0
        %1190 = vmatprep.subr.bf16.mxu0 0
        %1191 = vmatpush1.bf16.xpose.msra.mxu0 0
        %1192 = vmatprep.subr.bf16.mxu0 0
        %1193 = vmatpush1.bf16.xpose.msra.mxu0 0
        %1194 = vmatprep.subr.bf16.mxu0 0
        %1195 = vmatpush1.bf16.xpose.msra.mxu0 0
        %1196 = vmatprep.subr.bf16.mxu0 0
        %1197 = vmatpush1.bf16.xpose.msra.mxu0 0
        %1198 = vmatprep.mubr.bf16.mxu0 0
        %1199 = vmatmul.mubr.bf16.gmra.mrb[0].mxu0 %v1161
        %v1200 = vpop.f32.mrb[0].mxu0
        %v1201 = vadd.f32 0.0, %v1200
        %v1202 = vpop.f32.mrb[0].mxu0
        %v1203 = vpop.f32.mrb[0].mxu0
        %v1204 = vadd.f32 0.0, %v1203
        %v1205 = vpop.f32.mrb[0].mxu0
        %1206 = vdwg.mxu0
        %v1207 = vmul.f32 %v1201, 0.125
        %v1208 = vmul.f32 %v1204, 0.125
        %vm1209 = vcmp.gt.f32.partialorder %v844, 0.5
        %vm1210 = vcmp.gt.f32.partialorder %v845, 0.5
        %v1211 = vsel %vm1209, -1e+09, %v1207
        %v1212 = vsel %vm1210, -1e+09, %v1208
        %vm1213 = vcmask 130048
        %v1214 = vsel %vm1213, %v1211, -inf
        %1215 = vmax.xlane.f32.xlu0 %v1214
        %v1216 = vpop.xlane.xlu0 %1215
        %v1217 = vsel %vm1213, %v1212, -inf
        %1218 = vmax.xlane.f32.xlu0 %v1217
        %v1219 = vpop.xlane.xlu0 %1218
        %v1220 = vsub.f32 %v1211, %v1216
        %v1221 = vsub.f32 %v1212, %v1219
        %v1222 = vmul.f32 %v1220, 1.442695
        %v1223 = vpow.pop %v1222
        %v1224 = vmul.f32 %v1221, 1.442695
        %v1225 = vpow.pop %v1224
        %v1226 = vsel %vm1213, %v1223, 0.0
        %1227 = vadd.xlane.f32.xlu0 %v1226
        %v1228 = vpop.xlane.xlu0 %1227
        %v1229 = vsel %vm1213, %v1225, 0.0
        %1230 = vadd.xlane.f32.xlu0 %v1229
        %v1231 = vpop.xlane.xlu0 %1230
        %v1232 = vrcp.pop %v1228
        %v1233 = vrcp.pop %v1231
        %v1234 = vmul.f32 %v1223, %v1232
        %v1235 = vmul.f32 %v1225, %v1233
        %v1236 = vpack.c.bf16 %v1235, %v1234
        %v1237 = vpack.c.bf16 %v1154, %v1150
        %v1239 = vsel %vm1213, %v1236, 0
        %1241 = vmatprep.subr.bf16.mxu0 0
        %1242 = vmatpush1.bf16.msra.mxu0 %v1237
        %1243 = vmatprep.subr.bf16.mxu0 0
        %1244 = vmatpush1.bf16.msra.mxu0 0
        %1245 = vmatprep.subr.bf16.mxu0 0
        %1246 = vmatpush1.bf16.msra.mxu0 0
        %1247 = vmatprep.subr.bf16.mxu0 0
        %1248 = vmatpush1.bf16.msra.mxu0 0
        %1249 = vmatprep.subr.bf16.mxu0 0
        %1250 = vmatpush1.bf16.msra.mxu0 0
        %1251 = vmatprep.subr.bf16.mxu0 0
        %1252 = vmatpush1.bf16.msra.mxu0 0
        %1253 = vmatprep.subr.bf16.mxu0 0
        %1254 = vmatpush1.bf16.msra.mxu0 0
        %1255 = vmatprep.subr.bf16.mxu0 0
        %1256 = vmatpush1.bf16.msra.mxu0 0
        %1257 = vmatprep.subr.bf16.mxu0 0
        %1258 = vmatpush1.bf16.msra.mxu0 0
        %1259 = vmatprep.subr.bf16.mxu0 0
        %1260 = vmatpush1.bf16.msra.mxu0 0
        %1261 = vmatprep.subr.bf16.mxu0 0
        %1262 = vmatpush1.bf16.msra.mxu0 0
        %1263 = vmatprep.subr.bf16.mxu0 0
        %1264 = vmatpush1.bf16.msra.mxu0 0
        %1265 = vmatprep.subr.bf16.mxu0 0
        %1266 = vmatpush1.bf16.msra.mxu0 0
        %1267 = vmatprep.subr.bf16.mxu0 0
        %1268 = vmatpush1.bf16.msra.mxu0 0
        %1269 = vmatprep.subr.bf16.mxu0 0
        %1270 = vmatpush1.bf16.msra.mxu0 0
        %1271 = vmatprep.subr.bf16.mxu0 0
        %1272 = vmatpush1.bf16.msra.mxu0 0
        %1273 = vmatprep.mubr.bf16.mxu0 0
        %1274 = vmatmul.mubr.bf16.gmra.mrb[0].mxu0 %v1239
        %v1275 = vpop.f32.mrb[0].mxu0
        %v1276 = vadd.f32 0.0, %v1275
        %v1277 = vpop.f32.mrb[0].mxu0
        %v1278 = vpop.f32.mrb[0].mxu0
        %v1279 = vadd.f32 0.0, %v1278
        %v1280 = vpop.f32.mrb[0].mxu0
        %1281 = vdwg.mxu0
        %1283 = vrot.lane.b32.xlu0 %v1158, 64
        %v1284 = vpop.permute.xlu0 %1283
        %1286 = vrot.lane.b32.xlu0 %v1159, 64
        %v1287 = vpop.permute.xlu0 %1286
        %v1289 = vsel %vm1025, %v1284, 0
        %v1292 = vsel %vm1025, %v1287, 0
        %1294 = vmatprep.subr.bf16.mxu0 0
        %1295 = vmatpush1.bf16.xpose.msra.mxu0 %v1292
        %1296 = vmatprep.subr.bf16.mxu0 0
        %1297 = vmatpush1.bf16.xpose.msra.mxu0 0
        %1298 = vmatprep.subr.bf16.mxu0 0
        %1299 = vmatpush1.bf16.xpose.msra.mxu0 0
        %1300 = vmatprep.subr.bf16.mxu0 0
        %1301 = vmatpush1.bf16.xpose.msra.mxu0 0
        %1302 = vmatprep.subr.bf16.mxu0 0
        %1303 = vmatpush1.bf16.xpose.msra.mxu0 0
        %1304 = vmatprep.subr.bf16.mxu0 0
        %1305 = vmatpush1.bf16.xpose.msra.mxu0 0
        %1306 = vmatprep.subr.bf16.mxu0 0
        %1307 = vmatpush1.bf16.xpose.msra.mxu0 0
        %1308 = vmatprep.subr.bf16.mxu0 0
        %1309 = vmatpush1.bf16.xpose.msra.mxu0 0
        %1310 = vmatprep.subr.bf16.mxu0 0
        %1311 = vmatpush1.bf16.xpose.msra.mxu0 0
        %1312 = vmatprep.subr.bf16.mxu0 0
        %1313 = vmatpush1.bf16.xpose.msra.mxu0 0
        %1314 = vmatprep.subr.bf16.mxu0 0
        %1315 = vmatpush1.bf16.xpose.msra.mxu0 0
        %1316 = vmatprep.subr.bf16.mxu0 0
        %1317 = vmatpush1.bf16.xpose.msra.mxu0 0
        %1318 = vmatprep.subr.bf16.mxu0 0
        %1319 = vmatpush1.bf16.xpose.msra.mxu0 0
        %1320 = vmatprep.subr.bf16.mxu0 0
        %1321 = vmatpush1.bf16.xpose.msra.mxu0 0
        %1322 = vmatprep.subr.bf16.mxu0 0
        %1323 = vmatpush1.bf16.xpose.msra.mxu0 0
        %1324 = vmatprep.subr.bf16.mxu0 0
        %1325 = vmatpush1.bf16.xpose.msra.mxu0 0
        %1326 = vmatprep.mubr.bf16.mxu0 0
        %1327 = vmatmul.mubr.bf16.gmra.mrb[0].mxu0 %v1289
        %v1328 = vpop.f32.mrb[0].mxu0
        %v1329 = vadd.f32 0.0, %v1328
        %v1330 = vpop.f32.mrb[0].mxu0
        %v1331 = vpop.f32.mrb[0].mxu0
        %v1332 = vadd.f32 0.0, %v1331
        %v1333 = vpop.f32.mrb[0].mxu0
        %1334 = vdwg.mxu0
        %v1335 = vmul.f32 %v1329, 0.125
        %v1336 = vmul.f32 %v1332, 0.125
        %v1337 = vsel %vm1209, -1e+09, %v1335
        %v1338 = vsel %vm1210, -1e+09, %v1336
        %v1339 = vsel %vm1213, %v1337, -inf
        %1340 = vmax.xlane.f32.xlu0 %v1339
        %v1341 = vpop.xlane.xlu0 %1340
        %v1342 = vsel %vm1213, %v1338, -inf
        %1343 = vmax.xlane.f32.xlu0 %v1342
        %v1344 = vpop.xlane.xlu0 %1343
        %v1345 = vsub.f32 %v1337, %v1341
        %v1346 = vsub.f32 %v1338, %v1344
        %v1347 = vmul.f32 %v1345, 1.442695
        %v1348 = vpow.pop %v1347
        %v1349 = vmul.f32 %v1346, 1.442695
        %v1350 = vpow.pop %v1349
        %v1351 = vsel %vm1213, %v1348, 0.0
        %1352 = vadd.xlane.f32.xlu0 %v1351
        %v1353 = vpop.xlane.xlu0 %1352
        %v1354 = vsel %vm1213, %v1350, 0.0
        %1355 = vadd.xlane.f32.xlu0 %v1354
        %v1356 = vpop.xlane.xlu0 %1355
        %v1357 = vrcp.pop %v1353
        %v1358 = vrcp.pop %v1356
        %v1359 = vmul.f32 %v1348, %v1357
        %v1360 = vmul.f32 %v1350, %v1358
        %v1361 = vpack.c.bf16 %v1360, %v1359
        %1363 = vrot.lane.b32.xlu0 %v1237, 64
        %v1364 = vpop.permute.xlu0 %1363
        %v1367 = vsel %vm1213, %v1361, 0
        %1369 = vmatprep.subr.bf16.mxu0 0
        %1370 = vmatpush1.bf16.msra.mxu0 %v1364
        %1371 = vmatprep.subr.bf16.mxu0 0
        %1372 = vmatpush1.bf16.msra.mxu0 0
        %1373 = vmatprep.subr.bf16.mxu0 0
        %1374 = vmatpush1.bf16.msra.mxu0 0
        %1375 = vmatprep.subr.bf16.mxu0 0
        %1376 = vmatpush1.bf16.msra.mxu0 0
        %1377 = vmatprep.subr.bf16.mxu0 0
        %1378 = vmatpush1.bf16.msra.mxu0 0
        %1379 = vmatprep.subr.bf16.mxu0 0
        %1380 = vmatpush1.bf16.msra.mxu0 0
        %1381 = vmatprep.subr.bf16.mxu0 0
        %1382 = vmatpush1.bf16.msra.mxu0 0
        %1383 = vmatprep.subr.bf16.mxu0 0
        %1384 = vmatpush1.bf16.msra.mxu0 0
        %1385 = vmatprep.subr.bf16.mxu0 0
        %1386 = vmatpush1.bf16.msra.mxu0 0
        %1387 = vmatprep.subr.bf16.mxu0 0
        %1388 = vmatpush1.bf16.msra.mxu0 0
        %1389 = vmatprep.subr.bf16.mxu0 0
        %1390 = vmatpush1.bf16.msra.mxu0 0
        %1391 = vmatprep.subr.bf16.mxu0 0
        %1392 = vmatpush1.bf16.msra.mxu0 0
        %1393 = vmatprep.subr.bf16.mxu0 0
        %1394 = vmatpush1.bf16.msra.mxu0 0
        %1395 = vmatprep.subr.bf16.mxu0 0
        %1396 = vmatpush1.bf16.msra.mxu0 0
        %1397 = vmatprep.subr.bf16.mxu0 0
        %1398 = vmatpush1.bf16.msra.mxu0 0
        %1399 = vmatprep.subr.bf16.mxu0 0
        %1400 = vmatpush1.bf16.msra.mxu0 0
        %1401 = vmatprep.mubr.bf16.mxu0 0
        %1402 = vmatmul.mubr.bf16.gmra.mrb[0].mxu0 %v1367
        %v1403 = vpop.f32.mrb[0].mxu0
        %v1404 = vadd.f32 0.0, %v1403
        %v1405 = vpop.f32.mrb[0].mxu0
        %v1406 = vpop.f32.mrb[0].mxu0
        %v1407 = vadd.f32 0.0, %v1406
        %v1408 = vpop.f32.mrb[0].mxu0
        %1409 = vdwg.mxu0
        %v1410 = vpack.c.bf16 %v1070, %v1066
        %v1411 = vpack.c.bf16 %v1113, %v1109
        %v1413 = vsel %vm1025, %v1410, 0
        %v1416 = vsel %vm1025, %v1411, 0
        %1418 = vmatprep.subr.bf16.mxu0 0
        %1419 = vmatpush1.bf16.xpose.msra.mxu0 %v1416
        %1420 = vmatprep.subr.bf16.mxu0 0
        %1421 = vmatpush1.bf16.xpose.msra.mxu0 0
        %1422 = vmatprep.subr.bf16.mxu0 0
        %1423 = vmatpush1.bf16.xpose.msra.mxu0 0
        %1424 = vmatprep.subr.bf16.mxu0 0
        %1425 = vmatpush1.bf16.xpose.msra.mxu0 0
        %1426 = vmatprep.subr.bf16.mxu0 0
        %1427 = vmatpush1.bf16.xpose.msra.mxu0 0
        %1428 = vmatprep.subr.bf16.mxu0 0
        %1429 = vmatpush1.bf16.xpose.msra.mxu0 0
        %1430 = vmatprep.subr.bf16.mxu0 0
        %1431 = vmatpush1.bf16.xpose.msra.mxu0 0
        %1432 = vmatprep.subr.bf16.mxu0 0
        %1433 = vmatpush1.bf16.xpose.msra.mxu0 0
        %1434 = vmatprep.subr.bf16.mxu0 0
        %1435 = vmatpush1.bf16.xpose.msra.mxu0 0
        %1436 = vmatprep.subr.bf16.mxu0 0
        %1437 = vmatpush1.bf16.xpose.msra.mxu0 0
        %1438 = vmatprep.subr.bf16.mxu0 0
        %1439 = vmatpush1.bf16.xpose.msra.mxu0 0
        %1440 = vmatprep.subr.bf16.mxu0 0
        %1441 = vmatpush1.bf16.xpose.msra.mxu0 0
        %1442 = vmatprep.subr.bf16.mxu0 0
        %1443 = vmatpush1.bf16.xpose.msra.mxu0 0
        %1444 = vmatprep.subr.bf16.mxu0 0
        %1445 = vmatpush1.bf16.xpose.msra.mxu0 0
        %1446 = vmatprep.subr.bf16.mxu0 0
        %1447 = vmatpush1.bf16.xpose.msra.mxu0 0
        %1448 = vmatprep.subr.bf16.mxu0 0
        %1449 = vmatpush1.bf16.xpose.msra.mxu0 0
        %1450 = vmatprep.mubr.bf16.mxu0 0
        %1451 = vmatmul.mubr.bf16.gmra.mrb[0].mxu0 %v1413
        %v1452 = vpop.f32.mrb[0].mxu0
        %v1453 = vadd.f32 0.0, %v1452
        %v1454 = vpop.f32.mrb[0].mxu0
        %v1455 = vpop.f32.mrb[0].mxu0
        %v1456 = vadd.f32 0.0, %v1455
        %v1457 = vpop.f32.mrb[0].mxu0
        %1458 = vdwg.mxu0
        %v1459 = vmul.f32 %v1453, 0.125
        %v1460 = vmul.f32 %v1456, 0.125
        %v1461 = vsel %vm1209, -1e+09, %v1459
        %v1462 = vsel %vm1210, -1e+09, %v1460
        %v1463 = vsel %vm1213, %v1461, -inf
        %1464 = vmax.xlane.f32.xlu0 %v1463
        %v1465 = vpop.xlane.xlu0 %1464
        %v1466 = vsel %vm1213, %v1462, -inf
        %1467 = vmax.xlane.f32.xlu0 %v1466
        %v1468 = vpop.xlane.xlu0 %1467
        %v1469 = vsub.f32 %v1461, %v1465
        %v1470 = vsub.f32 %v1462, %v1468
        %v1471 = vmul.f32 %v1469, 1.442695
        %v1472 = vpow.pop %v1471
        %v1473 = vmul.f32 %v1470, 1.442695
        %v1474 = vpow.pop %v1473
        %v1475 = vsel %vm1213, %v1472, 0.0
        %1476 = vadd.xlane.f32.xlu0 %v1475
        %v1477 = vpop.xlane.xlu0 %1476
        %v1478 = vsel %vm1213, %v1474, 0.0
        %1479 = vadd.xlane.f32.xlu0 %v1478
        %v1480 = vpop.xlane.xlu0 %1479
        %v1481 = vrcp.pop %v1477
        %v1482 = vrcp.pop %v1480
        %v1483 = vmul.f32 %v1472, %v1481
        %v1484 = vmul.f32 %v1474, %v1482
        %v1485 = vpack.c.bf16 %v1484, %v1483
        %v1486 = vpack.c.bf16 %v1156, %v1152
        %v1488 = vsel %vm1213, %v1485, 0
        %1490 = vmatprep.subr.bf16.mxu0 0
        %1491 = vmatpush1.bf16.msra.mxu0 %v1486
        %1492 = vmatprep.subr.bf16.mxu0 0
        %1493 = vmatpush1.bf16.msra.mxu0 0
        %1494 = vmatprep.subr.bf16.mxu0 0
        %1495 = vmatpush1.bf16.msra.mxu0 0
        %1496 = vmatprep.subr.bf16.mxu0 0
        %1497 = vmatpush1.bf16.msra.mxu0 0
        %1498 = vmatprep.subr.bf16.mxu0 0
        %1499 = vmatpush1.bf16.msra.mxu0 0
        %1500 = vmatprep.subr.bf16.mxu0 0
        %1501 = vmatpush1.bf16.msra.mxu0 0
        %1502 = vmatprep.subr.bf16.mxu0 0
        %1503 = vmatpush1.bf16.msra.mxu0 0
        %1504 = vmatprep.subr.bf16.mxu0 0
        %1505 = vmatpush1.bf16.msra.mxu0 0
        %1506 = vmatprep.subr.bf16.mxu0 0
        %1507 = vmatpush1.bf16.msra.mxu0 0
        %1508 = vmatprep.subr.bf16.mxu0 0
        %1509 = vmatpush1.bf16.msra.mxu0 0
        %1510 = vmatprep.subr.bf16.mxu0 0
        %1511 = vmatpush1.bf16.msra.mxu0 0
        %1512 = vmatprep.subr.bf16.mxu0 0
        %1513 = vmatpush1.bf16.msra.mxu0 0
        %1514 = vmatprep.subr.bf16.mxu0 0
        %1515 = vmatpush1.bf16.msra.mxu0 0
        %1516 = vmatprep.subr.bf16.mxu0 0
        %1517 = vmatpush1.bf16.msra.mxu0 0
        %1518 = vmatprep.subr.bf16.mxu0 0
        %1519 = vmatpush1.bf16.msra.mxu0 0
        %1520 = vmatprep.subr.bf16.mxu0 0
        %1521 = vmatpush1.bf16.msra.mxu0 0
        %1522 = vmatprep.mubr.bf16.mxu0 0
        %1523 = vmatmul.mubr.bf16.gmra.mrb[0].mxu0 %v1488
        %v1524 = vpop.f32.mrb[0].mxu0
        %v1525 = vadd.f32 0.0, %v1524
        %v1526 = vpop.f32.mrb[0].mxu0
        %v1527 = vpop.f32.mrb[0].mxu0
        %v1528 = vadd.f32 0.0, %v1527
        %v1529 = vpop.f32.mrb[0].mxu0
        %1530 = vdwg.mxu0
        %1532 = vrot.lane.b32.xlu0 %v1410, 64
        %v1533 = vpop.permute.xlu0 %1532
        %1535 = vrot.lane.b32.xlu0 %v1411, 64
        %v1536 = vpop.permute.xlu0 %1535
        %v1538 = vsel %vm1025, %v1533, 0
        %v1541 = vsel %vm1025, %v1536, 0
        %1543 = vmatprep.subr.bf16.mxu0 0
        %1544 = vmatpush1.bf16.xpose.msra.mxu0 %v1541
        %1545 = vmatprep.subr.bf16.mxu0 0
        %1546 = vmatpush1.bf16.xpose.msra.mxu0 0
        %1547 = vmatprep.subr.bf16.mxu0 0
        %1548 = vmatpush1.bf16.xpose.msra.mxu0 0
        %1549 = vmatprep.subr.bf16.mxu0 0
        %1550 = vmatpush1.bf16.xpose.msra.mxu0 0
        %1551 = vmatprep.subr.bf16.mxu0 0
        %1552 = vmatpush1.bf16.xpose.msra.mxu0 0
        %1553 = vmatprep.subr.bf16.mxu0 0
        %1554 = vmatpush1.bf16.xpose.msra.mxu0 0
        %1555 = vmatprep.subr.bf16.mxu0 0
        %1556 = vmatpush1.bf16.xpose.msra.mxu0 0
        %1557 = vmatprep.subr.bf16.mxu0 0
        %1558 = vmatpush1.bf16.xpose.msra.mxu0 0
        %1559 = vmatprep.subr.bf16.mxu0 0
        %1560 = vmatpush1.bf16.xpose.msra.mxu0 0
        %1561 = vmatprep.subr.bf16.mxu0 0
        %1562 = vmatpush1.bf16.xpose.msra.mxu0 0
        %1563 = vmatprep.subr.bf16.mxu0 0
        %1564 = vmatpush1.bf16.xpose.msra.mxu0 0
        %1565 = vmatprep.subr.bf16.mxu0 0
        %1566 = vmatpush1.bf16.xpose.msra.mxu0 0
        %1567 = vmatprep.subr.bf16.mxu0 0
        %1568 = vmatpush1.bf16.xpose.msra.mxu0 0
        %1569 = vmatprep.subr.bf16.mxu0 0
        %1570 = vmatpush1.bf16.xpose.msra.mxu0 0
        %1571 = vmatprep.subr.bf16.mxu0 0
        %1572 = vmatpush1.bf16.xpose.msra.mxu0 0
        %1573 = vmatprep.subr.bf16.mxu0 0
        %1574 = vmatpush1.bf16.xpose.msra.mxu0 0
        %1575 = vmatprep.mubr.bf16.mxu0 0
        %1576 = vmatmul.mubr.bf16.gmra.mrb[0].mxu0 %v1538
        %v1577 = vpop.f32.mrb[0].mxu0
        %v1578 = vadd.f32 0.0, %v1577
        %v1579 = vpop.f32.mrb[0].mxu0
        %v1580 = vpop.f32.mrb[0].mxu0
        %v1581 = vadd.f32 0.0, %v1580
        %v1582 = vpop.f32.mrb[0].mxu0
        %1583 = vdwg.mxu0
        %v1584 = vmul.f32 %v1578, 0.125
        %v1585 = vmul.f32 %v1581, 0.125
        %v1586 = vsel %vm1209, -1e+09, %v1584
        %v1587 = vsel %vm1210, -1e+09, %v1585
        %v1588 = vsel %vm1213, %v1586, -inf
        %1589 = vmax.xlane.f32.xlu0 %v1588
        %v1590 = vpop.xlane.xlu0 %1589
        %v1591 = vsel %vm1213, %v1587, -inf
        %1592 = vmax.xlane.f32.xlu0 %v1591
        %v1593 = vpop.xlane.xlu0 %1592
        %v1594 = vsub.f32 %v1586, %v1590
        %v1595 = vsub.f32 %v1587, %v1593
        %v1596 = vmul.f32 %v1594, 1.442695
        %v1597 = vpow.pop %v1596
        %v1598 = vmul.f32 %v1595, 1.442695
        %v1599 = vpow.pop %v1598
        %v1600 = vsel %vm1213, %v1597, 0.0
        %1601 = vadd.xlane.f32.xlu0 %v1600
        %v1602 = vpop.xlane.xlu0 %1601
        %v1603 = vsel %vm1213, %v1599, 0.0
        %1604 = vadd.xlane.f32.xlu0 %v1603
        %v1605 = vpop.xlane.xlu0 %1604
        %v1606 = vrcp.pop %v1602
        %v1607 = vrcp.pop %v1605
        %v1608 = vmul.f32 %v1597, %v1606
        %v1609 = vmul.f32 %v1599, %v1607
        %v1610 = vpack.c.bf16 %v1609, %v1608
        %1612 = vrot.lane.b32.xlu0 %v1486, 64
        %v1613 = vpop.permute.xlu0 %1612
        %v1616 = vsel %vm1213, %v1610, 0
        %1618 = vmatprep.subr.bf16.mxu0 0
        %1619 = vmatpush1.bf16.msra.mxu0 %v1613
        %1620 = vmatprep.subr.bf16.mxu0 0
        %1621 = vmatpush1.bf16.msra.mxu0 0
        %1622 = vmatprep.subr.bf16.mxu0 0
        %1623 = vmatpush1.bf16.msra.mxu0 0
        %1624 = vmatprep.subr.bf16.mxu0 0
        %1625 = vmatpush1.bf16.msra.mxu0 0
        %1626 = vmatprep.subr.bf16.mxu0 0
        %1627 = vmatpush1.bf16.msra.mxu0 0
        %1628 = vmatprep.subr.bf16.mxu0 0
        %1629 = vmatpush1.bf16.msra.mxu0 0
        %1630 = vmatprep.subr.bf16.mxu0 0
        %1631 = vmatpush1.bf16.msra.mxu0 0
        %1632 = vmatprep.subr.bf16.mxu0 0
        %1633 = vmatpush1.bf16.msra.mxu0 0
        %1634 = vmatprep.subr.bf16.mxu0 0
        %1635 = vmatpush1.bf16.msra.mxu0 0
        %1636 = vmatprep.subr.bf16.mxu0 0
        %1637 = vmatpush1.bf16.msra.mxu0 0
        %1638 = vmatprep.subr.bf16.mxu0 0
        %1639 = vmatpush1.bf16.msra.mxu0 0
        %1640 = vmatprep.subr.bf16.mxu0 0
        %1641 = vmatpush1.bf16.msra.mxu0 0
        %1642 = vmatprep.subr.bf16.mxu0 0
        %1643 = vmatpush1.bf16.msra.mxu0 0
        %1644 = vmatprep.subr.bf16.mxu0 0
        %1645 = vmatpush1.bf16.msra.mxu0 0
        %1646 = vmatprep.subr.bf16.mxu0 0
        %1647 = vmatpush1.bf16.msra.mxu0 0
        %1648 = vmatprep.subr.bf16.mxu0 0
        %1649 = vmatpush1.bf16.msra.mxu0 0
        %1650 = vmatprep.mubr.bf16.mxu0 0
        %1651 = vmatmul.mubr.bf16.gmra.mrb[0].mxu0 %v1616
        %v1652 = vpop.f32.mrb[0].mxu0
        %v1653 = vadd.f32 0.0, %v1652
        %v1654 = vpop.f32.mrb[0].mxu0
        %v1655 = vpop.f32.mrb[0].mxu0
        %v1656 = vadd.f32 0.0, %v1655
        %v1657 = vpop.f32.mrb[0].mxu0
        %1658 = vdwg.mxu0
        %1661 = vrot.lane.b32.xlu0 %v1404, 64
        %v1662 = vpop.permute.xlu0 %1661
        %1663 = vrot.lane.b32.xlu0 %v1407, 64
        %v1664 = vpop.permute.xlu0 %1663
        %1669 = vrot.lane.b32.xlu0 %v1653, 64
        %v1670 = vpop.permute.xlu0 %1669
        %1671 = vrot.lane.b32.xlu0 %v1656, 64
        %v1672 = vpop.permute.xlu0 %1671
        %v1675 = vsel %vm1025, %v1276, %v1662
        %v1676 = vsel %vm1025, %v1279, %v1664
        %v1677 = vsel %vm1025, %v1525, %v1670
        %v1678 = vsel %vm1025, %v1528, %v1672
        %1681 = vrot.lane.b32.xlu0 %v1359, 16
        %v1682 = vpop.permute.xlu0 %1681
        %1683 = vrot.lane.b32.xlu0 %v1360, 16
        %v1684 = vpop.permute.xlu0 %1683
        %1689 = vrot.lane.b32.xlu0 %v1483, 32
        %v1690 = vpop.permute.xlu0 %1689
        %1691 = vrot.lane.b32.xlu0 %v1484, 32
        %v1692 = vpop.permute.xlu0 %1691
        %1697 = vrot.lane.b32.xlu0 %v1608, 48
        %v1698 = vpop.permute.xlu0 %1697
        %1699 = vrot.lane.b32.xlu0 %v1609, 48
        %v1700 = vpop.permute.xlu0 %1699
        %v1703 = vsel %vm1213, %v1234, %v1682
        %v1704 = vsel %vm1213, %v1235, %v1684
        %vm1705 = vcmask 261120
        %v1706 = vsel %vm1705, %v1703, %v1690
        %v1707 = vsel %vm1705, %v1704, %v1692
        %vm1708 = vcmask 392192
        %v1709 = vsel %vm1708, %v1706, %v1698
        %v1710 = vsel %vm1708, %v1707, %v1700
        %v1711 = vld [vmem:[%s6] sm:$0xf]
        %v1712 = vld [vmem:[%s6 + $0x4] sm:$0xf]
        %v1713 = vld [vmem:[%s6 + $0x8] sm:$0xf]
        %v1714 = vld [vmem:[%s6 + $0xc] sm:$0xf]
        %v1715 = vld [vmem:[%s6 + $0x10] sm:$0xf]
        %v1716 = vld [vmem:[%s6 + $0x14] sm:$0xf]
        %v1717 = vld [vmem:[%s6 + $0x18] sm:$0xf]
        %v1718 = vld [vmem:[%s6 + $0x1c] sm:$0xf]
        %v1719 = vld [vmem:[%s6 + $0x20] sm:$0xf]
        %v1720 = vld [vmem:[%s6 + $0x24] sm:$0xf]
        %v1721 = vld [vmem:[%s6 + $0x28] sm:$0xf]
        %v1722 = vld [vmem:[%s6 + $0x2c] sm:$0xf]
        %v1723 = vld [vmem:[%s6 + $0x30] sm:$0xf]
        %v1724 = vld [vmem:[%s6 + $0x34] sm:$0xf]
        %v1725 = vld [vmem:[%s6 + $0x38] sm:$0xf]
        %v1726 = vld [vmem:[%s6 + $0x3c] sm:$0xf]
        %v1727 = vld [vmem:[%s6 + $0x40] sm:$0xf]
        %v1728 = vld [vmem:[%s6 + $0x44] sm:$0xf]
        %v1729 = vld [vmem:[%s6 + $0x48] sm:$0xf]
        %v1730 = vld [vmem:[%s6 + $0x4c] sm:$0xf]
        %v1731 = vld [vmem:[%s6 + $0x50] sm:$0xf]
        %v1732 = vld [vmem:[%s6 + $0x54] sm:$0xf]
        %v1733 = vld [vmem:[%s6 + $0x58] sm:$0xf]
        %v1734 = vld [vmem:[%s6 + $0x5c] sm:$0xf]
        %v1735 = vld [vmem:[%s6 + $0x60] sm:$0xf]
        %v1736 = vld [vmem:[%s6 + $0x64] sm:$0xf]
        %v1737 = vld [vmem:[%s6 + $0x68] sm:$0xf]
        %v1738 = vld [vmem:[%s6 + $0x6c] sm:$0xf]
        %v1739 = vld [vmem:[%s6 + $0x70] sm:$0xf]
        %v1740 = vld [vmem:[%s6 + $0x74] sm:$0xf]
        %v1741 = vld [vmem:[%s6 + $0x78] sm:$0xf]
        %v1742 = vld [vmem:[%s6 + $0x7c] sm:$0xf]
        %v1743 = vpack.c.bf16 %v1676, %v1675
        %v1744 = vpack.c.bf16 %v1678, %v1677
        %v1745 = vld [vmem:[%s7] sm:$0x1]
        %v1747 = vlaneseq
        %v1748 = vshrl.u32 %v1747, 7
        %v1749 = vsub.s32 0, %v1748
        %v1750 = vrot.slane %v1745, %v1749
        %v1784 = vunpack.c.l.b16 %v1711
        %v1785 = vunpack.c.l.b16 %v1712
        %v1786 = vunpack.c.l.b16 %v1713
        %v1787 = vunpack.c.l.b16 %v1714
        %v1788 = vunpack.c.l.b16 %v1715
        %v1789 = vunpack.c.l.b16 %v1716
        %v1790 = vunpack.c.l.b16 %v1717
        %v1791 = vunpack.c.l.b16 %v1718
        %v1792 = vunpack.c.l.b16 %v1719
        %v1793 = vunpack.c.l.b16 %v1720
        %v1794 = vunpack.c.l.b16 %v1721
        %v1795 = vunpack.c.l.b16 %v1722
        %v1796 = vunpack.c.l.b16 %v1723
        %v1797 = vunpack.c.l.b16 %v1724
        %v1798 = vunpack.c.l.b16 %v1725
        %v1799 = vunpack.c.l.b16 %v1726
        %v1800 = vunpack.c.l.b16 %v1727
        %v1801 = vunpack.c.l.b16 %v1728
        %v1802 = vunpack.c.l.b16 %v1729
        %v1803 = vunpack.c.l.b16 %v1730
        %v1804 = vunpack.c.l.b16 %v1731
        %v1805 = vunpack.c.l.b16 %v1732
        %v1806 = vunpack.c.l.b16 %v1733
        %v1807 = vunpack.c.l.b16 %v1734
        %v1808 = vunpack.c.l.b16 %v1735
        %v1809 = vunpack.c.l.b16 %v1736
        %v1810 = vunpack.c.l.b16 %v1737
        %v1811 = vunpack.c.l.b16 %v1738
        %v1812 = vunpack.c.l.b16 %v1739
        %v1813 = vunpack.c.l.b16 %v1740
        %v1814 = vunpack.c.l.b16 %v1741
        %v1815 = vunpack.c.l.b16 %v1742
        %v1816 = vpack.c.b16 %v1785, %v1784
        %v1817 = vpack.c.b16 %v1787, %v1786
        %v1818 = vpack.c.b16 %v1789, %v1788
        %v1819 = vpack.c.b16 %v1791, %v1790
        %v1820 = vpack.c.b16 %v1793, %v1792
        %v1821 = vpack.c.b16 %v1795, %v1794
        %v1822 = vpack.c.b16 %v1797, %v1796
        %v1823 = vpack.c.b16 %v1799, %v1798
        %v1824 = vpack.c.b16 %v1801, %v1800
        %v1825 = vpack.c.b16 %v1803, %v1802
        %v1826 = vpack.c.b16 %v1805, %v1804
        %v1827 = vpack.c.b16 %v1807, %v1806
        %v1828 = vpack.c.b16 %v1809, %v1808
        %v1829 = vpack.c.b16 %v1811, %v1810
        %v1830 = vpack.c.b16 %v1813, %v1812
        %v1831 = vpack.c.b16 %v1815, %v1814
        %1848 = vmatprep.subr.bf16.mxu0 0
        %1849 = vmatpush1.bf16.msra.mxu0 %v1816
        %1850 = vmatprep.subr.bf16.mxu0 0
        %1851 = vmatpush1.bf16.msra.mxu0 %v1817
        %1852 = vmatprep.subr.bf16.mxu0 0
        %1853 = vmatpush1.bf16.msra.mxu0 %v1818
        %1854 = vmatprep.subr.bf16.mxu0 0
        %1855 = vmatpush1.bf16.msra.mxu0 %v1819
        %1856 = vmatprep.subr.bf16.mxu0 0
        %1857 = vmatpush1.bf16.msra.mxu0 %v1820
        %1858 = vmatprep.subr.bf16.mxu0 0
        %1859 = vmatpush1.bf16.msra.mxu0 %v1821
        %1860 = vmatprep.subr.bf16.mxu0 0
        %1861 = vmatpush1.bf16.msra.mxu0 %v1822
        %1862 = vmatprep.subr.bf16.mxu0 0
        %1863 = vmatpush1.bf16.msra.mxu0 %v1823
        %1864 = vmatprep.subr.bf16.mxu0 0
        %1865 = vmatpush1.bf16.msra.mxu0 %v1824
        %1866 = vmatprep.subr.bf16.mxu0 0
        %1867 = vmatpush1.bf16.msra.mxu0 %v1825
        %1868 = vmatprep.subr.bf16.mxu0 0
        %1869 = vmatpush1.bf16.msra.mxu0 %v1826
        %1870 = vmatprep.subr.bf16.mxu0 0
        %1871 = vmatpush1.bf16.msra.mxu0 %v1827
        %1872 = vmatprep.subr.bf16.mxu0 0
        %1873 = vmatpush1.bf16.msra.mxu0 %v1828
        %1874 = vmatprep.subr.bf16.mxu0 0
        %1875 = vmatpush1.bf16.msra.mxu0 %v1829
        %1876 = vmatprep.subr.bf16.mxu0 0
        %1877 = vmatpush1.bf16.msra.mxu0 %v1830
        %1878 = vmatprep.subr.bf16.mxu0 0
        %1879 = vmatpush1.bf16.msra.mxu0 %v1831
        %1880 = vmatprep.mubr.bf16.mxu0 %v1744
        %1881 = vmatmul.mubr.bf16.gmra.mrb[0].mxu0 %v1743
        %v1882 = vpop.f32.mrb[0].mxu0
        %v1883 = vadd.f32 %v1750, %v1882
        %v1884 = vpop.f32.mrb[0].mxu0
        %v1885 = vpop.f32.mrb[0].mxu0
        %v1886 = vadd.f32 %v1750, %v1885
        %v1887 = vpop.f32.mrb[0].mxu0
        %1888 = vdwg.mxu0
        %v1889 = vadd.f32 %v1883, %v838
        %v1890 = vadd.f32 %v1886, %v839
        %v1891 = vsel %vm1025, %v1889, 0.0
        %1892 = vadd.xlane.f32.xlu0 %v1891
        %v1893 = vpop.xlane.xlu0 %1892
        %v1894 = vsel %vm1025, %v1890, 0.0
        %1895 = vadd.xlane.f32.xlu0 %v1894
        %v1896 = vpop.xlane.xlu0 %1895
        %v1897 = vrcp.pop 64.0
        %v1898 = vmul.f32 %v1893, %v1897
        %v1899 = vmul.f32 %v1896, %v1897
        %v1900 = vsub.f32 %v1889, %v1898
        %v1901 = vsub.f32 %v1890, %v1899
        %v1902 = vmul.f32 %v1900, %v1900
        %v1903 = vmul.f32 %v1901, %v1901
        %v1904 = vsel %vm1025, %v1902, 0.0
        %1905 = vadd.xlane.f32.xlu0 %v1904
        %v1906 = vpop.xlane.xlu0 %1905
        %v1907 = vsel %vm1025, %v1903, 0.0
        %1908 = vadd.xlane.f32.xlu0 %v1907
        %v1909 = vpop.xlane.xlu0 %1908
        %v1910 = vmul.f32 %v1906, %v1897
        %v1911 = vmul.f32 %v1909, %v1897
        %v1912 = vadd.f32 %v1910, 1e-05
        %v1913 = vadd.f32 %v1911, 1e-05
        %v1914 = vrsqrt.pop %v1912
        %v1915 = vrsqrt.pop %v1913
        %v1916 = vmul.f32 %v1900, %v1914
        %v1917 = vmul.f32 %v1901, %v1915
        %v1918 = vld [vmem:[#allocation11] sm:$0xff]
        %v1919 = vld [vmem:[#allocation11 + $0x8] sm:$0xff]
        %v1920 = vld [vmem:[#allocation11 + $0x10] sm:$0xff]
        %v1921 = vld [vmem:[#allocation11 + $0x18] sm:$0xff]
        %v1922 = vld [vmem:[#allocation11 + $0x20] sm:$0xff]
        %v1923 = vld [vmem:[#allocation11 + $0x28] sm:$0xff]
        %v1924 = vld [vmem:[#allocation11 + $0x30] sm:$0xff]
        %v1925 = vld [vmem:[#allocation11 + $0x38] sm:$0xff]
        %v1926 = vpack.c.bf16 %v1917, %v1916
        %v1927 = vld [vmem:[#allocation13] sm:$0x3]
        %v1929 = vlaneseq
        %v1930 = vshrl.u32 %v1929, 7
        %v1931 = vsub.s32 0, %v1930
        %v1932 = vrot.slane %v1927, %v1931
        %v1933 = vlaneseq
        %v1934 = vshrl.u32 %v1933, 7
        %v1935 = vsub.s32 1, %v1934
        %v1936 = vrot.slane %v1927, %v1935
        %v1947 = vunpack.c.l.b16 %v1918
        %v1948 = vunpack.c.h.b16 %v1918
        %v1949 = vunpack.c.l.b16 %v1919
        %v1950 = vunpack.c.h.b16 %v1919
        %v1951 = vunpack.c.l.b16 %v1920
        %v1952 = vunpack.c.h.b16 %v1920
        %v1953 = vunpack.c.l.b16 %v1921
        %v1954 = vunpack.c.h.b16 %v1921
        %v1955 = vunpack.c.l.b16 %v1922
        %v1956 = vunpack.c.h.b16 %v1922
        %v1957 = vunpack.c.l.b16 %v1923
        %v1958 = vunpack.c.h.b16 %v1923
        %v1959 = vunpack.c.l.b16 %v1924
        %v1960 = vunpack.c.h.b16 %v1924
        %v1961 = vunpack.c.l.b16 %v1925
        %v1962 = vunpack.c.h.b16 %v1925
        %v1963 = vpack.c.b16 %v1949, %v1947
        %v1964 = vpack.c.b16 %v1950, %v1948
        %v1965 = vpack.c.b16 %v1953, %v1951
        %v1966 = vpack.c.b16 %v1954, %v1952
        %v1967 = vpack.c.b16 %v1957, %v1955
        %v1968 = vpack.c.b16 %v1958, %v1956
        %v1969 = vpack.c.b16 %v1961, %v1959
        %v1970 = vpack.c.b16 %v1962, %v1960
        %v1980 = vsel %vm1025, %v1926, 0
        %1982 = vmatprep.subr.bf16.mxu0 %v1964
        %1983 = vmatpush1.bf16.msra.mxu0 %v1963
        %1984 = vmatprep.subr.bf16.mxu0 %v1966
        %1985 = vmatpush1.bf16.msra.mxu0 %v1965
        %1986 = vmatprep.subr.bf16.mxu0 %v1968
        %1987 = vmatpush1.bf16.msra.mxu0 %v1967
        %1988 = vmatprep.subr.bf16.mxu0 %v1970
        %1989 = vmatpush1.bf16.msra.mxu0 %v1969
        %1990 = vmatprep.subr.bf16.mxu0 0
        %1991 = vmatpush1.bf16.msra.mxu0 0
        %1992 = vmatprep.subr.bf16.mxu0 0
        %1993 = vmatpush1.bf16.msra.mxu0 0
        %1994 = vmatprep.subr.bf16.mxu0 0
        %1995 = vmatpush1.bf16.msra.mxu0 0
        %1996 = vmatprep.subr.bf16.mxu0 0
        %1997 = vmatpush1.bf16.msra.mxu0 0
        %1998 = vmatprep.subr.bf16.mxu0 0
        %1999 = vmatpush1.bf16.msra.mxu0 0
        %2000 = vmatprep.subr.bf16.mxu0 0
        %2001 = vmatpush1.bf16.msra.mxu0 0
        %2002 = vmatprep.subr.bf16.mxu0 0
        %2003 = vmatpush1.bf16.msra.mxu0 0
        %2004 = vmatprep.subr.bf16.mxu0 0
        %2005 = vmatpush1.bf16.msra.mxu0 0
        %2006 = vmatprep.subr.bf16.mxu0 0
        %2007 = vmatpush1.bf16.msra.mxu0 0
        %2008 = vmatprep.subr.bf16.mxu0 0
        %2009 = vmatpush1.bf16.msra.mxu0 0
        %2010 = vmatprep.subr.bf16.mxu0 0
        %2011 = vmatpush1.bf16.msra.mxu0 0
        %2012 = vmatprep.subr.bf16.mxu0 0
        %2013 = vmatpush1.bf16.msra.mxu0 0
        %2014 = vmatprep.mubr.bf16.mxu0 0
        %2015 = vmatmul.mubr.bf16.gmra.mrb[0].mxu0 %v1980
        %v2016 = vpop.f32.mrb[0].mxu0
        %v2017 = vadd.f32 %v1932, %v2016
        %v2018 = vpop.f32.mrb[0].mxu0
        %v2019 = vadd.f32 %v1936, %v2018
        %v2020 = vpop.f32.mrb[0].mxu0
        %v2021 = vadd.f32 %v1932, %v2020
        %v2022 = vpop.f32.mrb[0].mxu0
        %v2023 = vadd.f32 %v1936, %v2022
        %2024 = vdwg.mxu0
        %v2025 = vld [vmem:[%s10] sm:$0xff]
        %v2026 = vld [vmem:[%s10 + $0x8] sm:$0xff]
        %v2027 = vld [vmem:[%s10 + $0x10] sm:$0xff]
        %v2028 = vld [vmem:[%s10 + $0x18] sm:$0xff]
        %v2029 = vld [vmem:[%s10 + $0x20] sm:$0xff]
        %v2030 = vld [vmem:[%s10 + $0x28] sm:$0xff]
        %v2031 = vld [vmem:[%s10 + $0x30] sm:$0xff]
        %v2032 = vld [vmem:[%s10 + $0x38] sm:$0xff]
        %v2033 = vld [vmem:[%s10 + $0x40] sm:$0xff]
        %v2034 = vld [vmem:[%s10 + $0x48] sm:$0xff]
        %v2035 = vld [vmem:[%s10 + $0x50] sm:$0xff]
        %v2036 = vld [vmem:[%s10 + $0x58] sm:$0xff]
        %v2037 = vld [vmem:[%s10 + $0x60] sm:$0xff]
        %v2038 = vld [vmem:[%s10 + $0x68] sm:$0xff]
        %v2039 = vld [vmem:[%s10 + $0x70] sm:$0xff]
        %v2040 = vld [vmem:[%s10 + $0x78] sm:$0xff]
        %v2041 = vld [vmem:[%s10 + $0x80] sm:$0xff]
        %v2042 = vld [vmem:[%s10 + $0x88] sm:$0xff]
        %v2043 = vld [vmem:[%s10 + $0x90] sm:$0xff]
        %v2044 = vld [vmem:[%s10 + $0x98] sm:$0xff]
        %v2045 = vld [vmem:[%s10 + $0xa0] sm:$0xff]
        %v2046 = vld [vmem:[%s10 + $0xa8] sm:$0xff]
        %v2047 = vld [vmem:[%s10 + $0xb0] sm:$0xff]
        %v2048 = vld [vmem:[%s10 + $0xb8] sm:$0xff]
        %v2049 = vld [vmem:[%s10 + $0xc0] sm:$0xff]
        %v2050 = vld [vmem:[%s10 + $0xc8] sm:$0xff]
        %v2051 = vld [vmem:[%s10 + $0xd0] sm:$0xff]
        %v2052 = vld [vmem:[%s10 + $0xd8] sm:$0xff]
        %v2053 = vld [vmem:[%s10 + $0xe0] sm:$0xff]
        %v2054 = vld [vmem:[%s10 + $0xe8] sm:$0xff]
        %v2055 = vld [vmem:[%s10 + $0xf0] sm:$0xff]
        %v2056 = vld [vmem:[%s10 + $0xf8] sm:$0xff]
        %v2057 = vpack.c.bf16 %v841, %v840
        %v2058 = vpack.c.bf16 %v843, %v842
        %v2059 = vld [vmem:[%s11] sm:$0xf]
        %v2061 = vlaneseq
        %v2062 = vshrl.u32 %v2061, 7
        %v2063 = vsub.s32 0, %v2062
        %v2064 = vrot.slane %v2059, %v2063
        %v2065 = vlaneseq
        %v2066 = vshrl.u32 %v2065, 7
        %v2067 = vsub.s32 1, %v2066
        %v2068 = vrot.slane %v2059, %v2067
        %v2069 = vlaneseq
        %v2070 = vshrl.u32 %v2069, 7
        %v2071 = vsub.s32 2, %v2070
        %v2072 = vrot.slane %v2059, %v2071
        %v2073 = vlaneseq
        %v2074 = vshrl.u32 %v2073, 7
        %v2075 = vsub.s32 3, %v2074
        %v2076 = vrot.slane %v2059, %v2075
        %v2113 = vunpack.c.l.b16 %v2025
        %v2114 = vunpack.c.h.b16 %v2025
        %v2115 = vunpack.c.l.b16 %v2026
        %v2116 = vunpack.c.h.b16 %v2026
        %v2117 = vunpack.c.l.b16 %v2027
        %v2118 = vunpack.c.h.b16 %v2027
        %v2119 = vunpack.c.l.b16 %v2028
        %v2120 = vunpack.c.h.b16 %v2028
        %v2121 = vunpack.c.l.b16 %v2029
        %v2122 = vunpack.c.h.b16 %v2029
        %v2123 = vunpack.c.l.b16 %v2030
        %v2124 = vunpack.c.h.b16 %v2030
        %v2125 = vunpack.c.l.b16 %v2031
        %v2126 = vunpack.c.h.b16 %v2031
        %v2127 = vunpack.c.l.b16 %v2032
        %v2128 = vunpack.c.h.b16 %v2032
        %v2129 = vunpack.c.l.b16 %v2033
        %v2130 = vunpack.c.h.b16 %v2033
        %v2131 = vunpack.c.l.b16 %v2034
        %v2132 = vunpack.c.h.b16 %v2034
        %v2133 = vunpack.c.l.b16 %v2035
        %v2134 = vunpack.c.h.b16 %v2035
        %v2135 = vunpack.c.l.b16 %v2036
        %v2136 = vunpack.c.h.b16 %v2036
        %v2137 = vunpack.c.l.b16 %v2037
        %v2138 = vunpack.c.h.b16 %v2037
        %v2139 = vunpack.c.l.b16 %v2038
        %v2140 = vunpack.c.h.b16 %v2038
        %v2141 = vunpack.c.l.b16 %v2039
        %v2142 = vunpack.c.h.b16 %v2039
        %v2143 = vunpack.c.l.b16 %v2040
        %v2144 = vunpack.c.h.b16 %v2040
        %v2145 = vunpack.c.l.b16 %v2041
        %v2146 = vunpack.c.h.b16 %v2041
        %v2147 = vunpack.c.l.b16 %v2042
        %v2148 = vunpack.c.h.b16 %v2042
        %v2149 = vunpack.c.l.b16 %v2043
        %v2150 = vunpack.c.h.b16 %v2043
        %v2151 = vunpack.c.l.b16 %v2044
        %v2152 = vunpack.c.h.b16 %v2044
        %v2153 = vunpack.c.l.b16 %v2045
        %v2154 = vunpack.c.h.b16 %v2045
        %v2155 = vunpack.c.l.b16 %v2046
        %v2156 = vunpack.c.h.b16 %v2046
        %v2157 = vunpack.c.l.b16 %v2047
        %v2158 = vunpack.c.h.b16 %v2047
        %v2159 = vunpack.c.l.b16 %v2048
        %v2160 = vunpack.c.h.b16 %v2048
        %v2161 = vunpack.c.l.b16 %v2049
        %v2162 = vunpack.c.h.b16 %v2049
        %v2163 = vunpack.c.l.b16 %v2050
        %v2164 = vunpack.c.h.b16 %v2050
        %v2165 = vunpack.c.l.b16 %v2051
        %v2166 = vunpack.c.h.b16 %v2051
        %v2167 = vunpack.c.l.b16 %v2052
        %v2168 = vunpack.c.h.b16 %v2052
        %v2169 = vunpack.c.l.b16 %v2053
        %v2170 = vunpack.c.h.b16 %v2053
        %v2171 = vunpack.c.l.b16 %v2054
        %v2172 = vunpack.c.h.b16 %v2054
        %v2173 = vunpack.c.l.b16 %v2055
        %v2174 = vunpack.c.h.b16 %v2055
        %v2175 = vunpack.c.l.b16 %v2056
        %v2176 = vunpack.c.h.b16 %v2056
        %v2177 = vpack.c.b16 %v2117, %v2113
        %v2178 = vpack.c.b16 %v2118, %v2114
        %v2179 = vpack.c.b16 %v2119, %v2115
        %v2180 = vpack.c.b16 %v2120, %v2116
        %v2181 = vpack.c.b16 %v2125, %v2121
        %v2182 = vpack.c.b16 %v2126, %v2122
        %v2183 = vpack.c.b16 %v2127, %v2123
        %v2184 = vpack.c.b16 %v2128, %v2124
        %v2185 = vpack.c.b16 %v2133, %v2129
        %v2186 = vpack.c.b16 %v2134, %v2130
        %v2187 = vpack.c.b16 %v2135, %v2131
        %v2188 = vpack.c.b16 %v2136, %v2132
        %v2189 = vpack.c.b16 %v2141, %v2137
        %v2190 = vpack.c.b16 %v2142, %v2138
        %v2191 = vpack.c.b16 %v2143, %v2139
        %v2192 = vpack.c.b16 %v2144, %v2140
        %v2193 = vpack.c.b16 %v2149, %v2145
        %v2194 = vpack.c.b16 %v2150, %v2146
        %v2195 = vpack.c.b16 %v2151, %v2147
        %v2196 = vpack.c.b16 %v2152, %v2148
        %v2197 = vpack.c.b16 %v2157, %v2153
        %v2198 = vpack.c.b16 %v2158, %v2154
        %v2199 = vpack.c.b16 %v2159, %v2155
        %v2200 = vpack.c.b16 %v2160, %v2156
        %v2201 = vpack.c.b16 %v2165, %v2161
        %v2202 = vpack.c.b16 %v2166, %v2162
        %v2203 = vpack.c.b16 %v2167, %v2163
        %v2204 = vpack.c.b16 %v2168, %v2164
        %v2205 = vpack.c.b16 %v2173, %v2169
        %v2206 = vpack.c.b16 %v2174, %v2170
        %v2207 = vpack.c.b16 %v2175, %v2171
        %v2208 = vpack.c.b16 %v2176, %v2172
        %2241 = vmatprep.subr.bf16.mxu0 %v2178
        %2242 = vmatpush1.bf16.msra.mxu0 %v2177
        %2243 = vmatprep.subr.bf16.mxu0 %v2182
        %2244 = vmatpush1.bf16.msra.mxu0 %v2181
        %2245 = vmatprep.subr.bf16.mxu0 %v2186
        %2246 = vmatpush1.bf16.msra.mxu0 %v2185
        %2247 = vmatprep.subr.bf16.mxu0 %v2190
        %2248 = vmatpush1.bf16.msra.mxu0 %v2189
        %2249 = vmatprep.subr.bf16.mxu0 %v2194
        %2250 = vmatpush1.bf16.msra.mxu0 %v2193
        %2251 = vmatprep.subr.bf16.mxu0 %v2198
        %2252 = vmatpush1.bf16.msra.mxu0 %v2197
        %2253 = vmatprep.subr.bf16.mxu0 %v2202
        %2254 = vmatpush1.bf16.msra.mxu0 %v2201
        %2255 = vmatprep.subr.bf16.mxu0 %v2206
        %2256 = vmatpush1.bf16.msra.mxu0 %v2205
        %2257 = vmatprep.subr.bf16.mxu0 0
        %2258 = vmatpush1.bf16.msra.mxu0 0
        %2259 = vmatprep.subr.bf16.mxu0 0
        %2260 = vmatpush1.bf16.msra.mxu0 0
        %2261 = vmatprep.subr.bf16.mxu0 0
        %2262 = vmatpush1.bf16.msra.mxu0 0
        %2263 = vmatprep.subr.bf16.mxu0 0
        %2264 = vmatpush1.bf16.msra.mxu0 0
        %2265 = vmatprep.subr.bf16.mxu0 0
        %2266 = vmatpush1.bf16.msra.mxu0 0
        %2267 = vmatprep.subr.bf16.mxu0 0
        %2268 = vmatpush1.bf16.msra.mxu0 0
        %2269 = vmatprep.subr.bf16.mxu0 0
        %2270 = vmatpush1.bf16.msra.mxu0 0
        %2271 = vmatprep.subr.bf16.mxu0 0
        %2272 = vmatpush1.bf16.msra.mxu0 0
        %2273 = vmatprep.mubr.bf16.mxu0 0
        %2274 = vmatmul.mubr.bf16.gmra.mrb[0].mxu0 %v2057
        %v2275 = vpop.f32.mrb[0].mxu0
        %v2276 = vadd.f32 %v2064, %v2275
        %v2277 = vpop.f32.mrb[0].mxu0
        %v2278 = vadd.f32 %v2068, %v2277
        %v2279 = vpop.f32.mrb[0].mxu0
        %v2280 = vadd.f32 %v2064, %v2279
        %v2281 = vpop.f32.mrb[0].mxu0
        %v2282 = vadd.f32 %v2068, %v2281
        %2283 = vmatprep.mubr.bf16.mxu0 0
        %2284 = vmatmul.mubr.bf16.gmra.mrb[0].mxu0 %v2058
        %v2285 = vpop.f32.mrb[0].mxu0
        %v2286 = vadd.f32 %v2064, %v2285
        %v2287 = vpop.f32.mrb[0].mxu0
        %v2288 = vadd.f32 %v2068, %v2287
        %v2289 = vpop.f32.mrb[0].mxu0
        %v2290 = vadd.f32 %v2064, %v2289
        %v2291 = vpop.f32.mrb[0].mxu0
        %v2292 = vadd.f32 %v2068, %v2291
        %2293 = vdwg.mxu0
        %2294 = vmatprep.subr.bf16.mxu0 %v2180
        %2295 = vmatpush1.bf16.msra.mxu0 %v2179
        %2296 = vmatprep.subr.bf16.mxu0 %v2184
        %2297 = vmatpush1.bf16.msra.mxu0 %v2183
        %2298 = vmatprep.subr.bf16.mxu0 %v2188
        %2299 = vmatpush1.bf16.msra.mxu0 %v2187
        %2300 = vmatprep.subr.bf16.mxu0 %v2192
        %2301 = vmatpush1.bf16.msra.mxu0 %v2191
        %2302 = vmatprep.subr.bf16.mxu0 %v2196
        %2303 = vmatpush1.bf16.msra.mxu0 %v2195
        %2304 = vmatprep.subr.bf16.mxu0 %v2200
        %2305 = vmatpush1.bf16.msra.mxu0 %v2199
        %2306 = vmatprep.subr.bf16.mxu0 %v2204
        %2307 = vmatpush1.bf16.msra.mxu0 %v2203
        %2308 = vmatprep.subr.bf16.mxu0 %v2208
        %2309 = vmatpush1.bf16.msra.mxu0 %v2207
        %2310 = vmatprep.subr.bf16.mxu0 0
        %2311 = vmatpush1.bf16.msra.mxu0 0
        %2312 = vmatprep.subr.bf16.mxu0 0
        %2313 = vmatpush1.bf16.msra.mxu0 0
        %2314 = vmatprep.subr.bf16.mxu0 0
        %2315 = vmatpush1.bf16.msra.mxu0 0
        %2316 = vmatprep.subr.bf16.mxu0 0
        %2317 = vmatpush1.bf16.msra.mxu0 0
        %2318 = vmatprep.subr.bf16.mxu0 0
        %2319 = vmatpush1.bf16.msra.mxu0 0
        %2320 = vmatprep.subr.bf16.mxu0 0
        %2321 = vmatpush1.bf16.msra.mxu0 0
        %2322 = vmatprep.subr.bf16.mxu0 0
        %2323 = vmatpush1.bf16.msra.mxu0 0
        %2324 = vmatprep.subr.bf16.mxu0 0
        %2325 = vmatpush1.bf16.msra.mxu0 0
        %2326 = vmatprep.mubr.bf16.mxu0 0
        %2327 = vmatmul.mubr.bf16.gmra.mrb[0].mxu0 %v2057
        %v2328 = vpop.f32.mrb[0].mxu0
        %v2329 = vadd.f32 %v2072, %v2328
        %v2330 = vpop.f32.mrb[0].mxu0
        %v2331 = vadd.f32 %v2076, %v2330
        %v2332 = vpop.f32.mrb[0].mxu0
        %v2333 = vadd.f32 %v2072, %v2332
        %v2334 = vpop.f32.mrb[0].mxu0
        %v2335 = vadd.f32 %v2076, %v2334
        %2336 = vmatprep.mubr.bf16.mxu0 0
        %2337 = vmatmul.mubr.bf16.gmra.mrb[0].mxu0 %v2058
        %v2338 = vpop.f32.mrb[0].mxu0
        %v2339 = vadd.f32 %v2072, %v2338
        %v2340 = vpop.f32.mrb[0].mxu0
        %v2341 = vadd.f32 %v2076, %v2340
        %v2342 = vpop.f32.mrb[0].mxu0
        %v2343 = vadd.f32 %v2072, %v2342
        %v2344 = vpop.f32.mrb[0].mxu0
        %v2345 = vadd.f32 %v2076, %v2344
        %2346 = vdwg.mxu0
        %v2347 = vpack.c.bf16 %v2021, %v2017
        %v2348 = vpack.c.bf16 %v2280, %v2276
        %v2349 = vpack.c.bf16 %v2290, %v2286
        %v2351 = vsel %vm1025, %v2347, 0
        %v2354 = vsel %vm1025, %v2348, 0
        %v2357 = vsel %vm1025, %v2349, 0
        %2359 = vmatprep.subr.bf16.mxu0 0
        %2360 = vmatpush1.bf16.xpose.msra.mxu0 %v2354
        %2361 = vmatprep.subr.bf16.mxu0 0
        %2362 = vmatpush1.bf16.xpose.msra.mxu0 %v2357
        %2363 = vmatprep.subr.bf16.mxu0 0
        %2364 = vmatpush1.bf16.xpose.msra.mxu0 0
        %2365 = vmatprep.subr.bf16.mxu0 0
        %2366 = vmatpush1.bf16.xpose.msra.mxu0 0
        %2367 = vmatprep.subr.bf16.mxu0 0
        %2368 = vmatpush1.bf16.xpose.msra.mxu0 0
        %2369 = vmatprep.subr.bf16.mxu0 0
        %2370 = vmatpush1.bf16.xpose.msra.mxu0 0
        %2371 = vmatprep.subr.bf16.mxu0 0
        %2372 = vmatpush1.bf16.xpose.msra.mxu0 0
        %2373 = vmatprep.subr.bf16.mxu0 0
        %2374 = vmatpush1.bf16.xpose.msra.mxu0 0
        %2375 = vmatprep.subr.bf16.mxu0 0
        %2376 = vmatpush1.bf16.xpose.msra.mxu0 0
        %2377 = vmatprep.subr.bf16.mxu0 0
        %2378 = vmatpush1.bf16.xpose.msra.mxu0 0
        %2379 = vmatprep.subr.bf16.mxu0 0
        %2380 = vmatpush1.bf16.xpose.msra.mxu0 0
        %2381 = vmatprep.subr.bf16.mxu0 0
        %2382 = vmatpush1.bf16.xpose.msra.mxu0 0
        %2383 = vmatprep.subr.bf16.mxu0 0
        %2384 = vmatpush1.bf16.xpose.msra.mxu0 0
        %2385 = vmatprep.subr.bf16.mxu0 0
        %2386 = vmatpush1.bf16.xpose.msra.mxu0 0
        %2387 = vmatprep.subr.bf16.mxu0 0
        %2388 = vmatpush1.bf16.xpose.msra.mxu0 0
        %2389 = vmatprep.subr.bf16.mxu0 0
        %2390 = vmatpush1.bf16.xpose.msra.mxu0 0
        %2391 = vmatprep.mubr.bf16.mxu0 0
        %2392 = vmatmul.mubr.bf16.gmra.mrb[0].mxu0 %v2351
        %v2393 = vpop.f32.mrb[0].mxu0
        %v2394 = vadd.f32 0.0, %v2393
        %v2395 = vpop.f32.mrb[0].mxu0
        %v2396 = vpop.f32.mrb[0].mxu0
        %v2397 = vadd.f32 0.0, %v2396
        %v2398 = vpop.f32.mrb[0].mxu0
        %2399 = vdwg.mxu0
        %v2400 = vmul.f32 %v2394, 0.125
        %v2401 = vmul.f32 %v2397, 0.125
        %vm2402 = vcmp.gt.f32.partialorder %v846, 0.5
        %vm2403 = vcmp.gt.f32.partialorder %v847, 0.5
        %v2404 = vsel %vm2402, -1e+09, %v2400
        %v2405 = vsel %vm2403, -1e+09, %v2401
        %v2406 = vsel %vm1705, %v2404, -inf
        %2407 = vmax.xlane.f32.xlu0 %v2406
        %v2408 = vpop.xlane.xlu0 %2407
        %v2409 = vsel %vm1705, %v2405, -inf
        %2410 = vmax.xlane.f32.xlu0 %v2409
        %v2411 = vpop.xlane.xlu0 %2410
        %v2412 = vsub.f32 %v2404, %v2408
        %v2413 = vsub.f32 %v2405, %v2411
        %v2414 = vmul.f32 %v2412, 1.442695
        %v2415 = vpow.pop %v2414
        %v2416 = vmul.f32 %v2413, 1.442695
        %v2417 = vpow.pop %v2416
        %v2418 = vsel %vm1705, %v2415, 0.0
        %2419 = vadd.xlane.f32.xlu0 %v2418
        %v2420 = vpop.xlane.xlu0 %2419
        %v2421 = vsel %vm1705, %v2417, 0.0
        %2422 = vadd.xlane.f32.xlu0 %v2421
        %v2423 = vpop.xlane.xlu0 %2422
        %v2424 = vrcp.pop %v2420
        %v2425 = vrcp.pop %v2423
        %v2426 = vmul.f32 %v2415, %v2424
        %v2427 = vmul.f32 %v2417, %v2425
        %v2428 = vpack.c.bf16 %v2427, %v2426
        %v2429 = vpack.c.bf16 %v2333, %v2329
        %v2430 = vpack.c.bf16 %v2343, %v2339
        %v2432 = vsel %vm1705, %v2428, 0
        %2434 = vmatprep.subr.bf16.mxu0 0
        %2435 = vmatpush1.bf16.msra.mxu0 %v2429
        %2436 = vmatprep.subr.bf16.mxu0 0
        %2437 = vmatpush1.bf16.msra.mxu0 %v2430
        %2438 = vmatprep.subr.bf16.mxu0 0
        %2439 = vmatpush1.bf16.msra.mxu0 0
        %2440 = vmatprep.subr.bf16.mxu0 0
        %2441 = vmatpush1.bf16.msra.mxu0 0
        %2442 = vmatprep.subr.bf16.mxu0 0
        %2443 = vmatpush1.bf16.msra.mxu0 0
        %2444 = vmatprep.subr.bf16.mxu0 0
        %2445 = vmatpush1.bf16.msra.mxu0 0
        %2446 = vmatprep.subr.bf16.mxu0 0
        %2447 = vmatpush1.bf16.msra.mxu0 0
        %2448 = vmatprep.subr.bf16.mxu0 0
        %2449 = vmatpush1.bf16.msra.mxu0 0
        %2450 = vmatprep.subr.bf16.mxu0 0
        %2451 = vmatpush1.bf16.msra.mxu0 0
        %2452 = vmatprep.subr.bf16.mxu0 0
        %2453 = vmatpush1.bf16.msra.mxu0 0
        %2454 = vmatprep.subr.bf16.mxu0 0
        %2455 = vmatpush1.bf16.msra.mxu0 0
        %2456 = vmatprep.subr.bf16.mxu0 0
        %2457 = vmatpush1.bf16.msra.mxu0 0
        %2458 = vmatprep.subr.bf16.mxu0 0
        %2459 = vmatpush1.bf16.msra.mxu0 0
        %2460 = vmatprep.subr.bf16.mxu0 0
        %2461 = vmatpush1.bf16.msra.mxu0 0
        %2462 = vmatprep.subr.bf16.mxu0 0
        %2463 = vmatpush1.bf16.msra.mxu0 0
        %2464 = vmatprep.subr.bf16.mxu0 0
        %2465 = vmatpush1.bf16.msra.mxu0 0
        %2466 = vmatprep.mubr.bf16.mxu0 0
        %2467 = vmatmul.mubr.bf16.gmra.mrb[0].mxu0 %v2432
        %v2468 = vpop.f32.mrb[0].mxu0
        %v2469 = vadd.f32 0.0, %v2468
        %v2470 = vpop.f32.mrb[0].mxu0
        %v2471 = vpop.f32.mrb[0].mxu0
        %v2472 = vadd.f32 0.0, %v2471
        %v2473 = vpop.f32.mrb[0].mxu0
        %2474 = vdwg.mxu0
        %2476 = vrot.lane.b32.xlu0 %v2347, 64
        %v2477 = vpop.permute.xlu0 %2476
        %2480 = vrot.lane.b32.xlu0 %v2348, 64
        %v2481 = vpop.permute.xlu0 %2480
        %2482 = vrot.lane.b32.xlu0 %v2349, 64
        %v2483 = vpop.permute.xlu0 %2482
        %v2485 = vsel %vm1025, %v2477, 0
        %v2488 = vsel %vm1025, %v2481, 0
        %v2491 = vsel %vm1025, %v2483, 0
        %2493 = vmatprep.subr.bf16.mxu0 0
        %2494 = vmatpush1.bf16.xpose.msra.mxu0 %v2488
        %2495 = vmatprep.subr.bf16.mxu0 0
        %2496 = vmatpush1.bf16.xpose.msra.mxu0 %v2491
        %2497 = vmatprep.subr.bf16.mxu0 0
        %2498 = vmatpush1.bf16.xpose.msra.mxu0 0
        %2499 = vmatprep.subr.bf16.mxu0 0
        %2500 = vmatpush1.bf16.xpose.msra.mxu0 0
        %2501 = vmatprep.subr.bf16.mxu0 0
        %2502 = vmatpush1.bf16.xpose.msra.mxu0 0
        %2503 = vmatprep.subr.bf16.mxu0 0
        %2504 = vmatpush1.bf16.xpose.msra.mxu0 0
        %2505 = vmatprep.subr.bf16.mxu0 0
        %2506 = vmatpush1.bf16.xpose.msra.mxu0 0
        %2507 = vmatprep.subr.bf16.mxu0 0
        %2508 = vmatpush1.bf16.xpose.msra.mxu0 0
        %2509 = vmatprep.subr.bf16.mxu0 0
        %2510 = vmatpush1.bf16.xpose.msra.mxu0 0
        %2511 = vmatprep.subr.bf16.mxu0 0
        %2512 = vmatpush1.bf16.xpose.msra.mxu0 0
        %2513 = vmatprep.subr.bf16.mxu0 0
        %2514 = vmatpush1.bf16.xpose.msra.mxu0 0
        %2515 = vmatprep.subr.bf16.mxu0 0
        %2516 = vmatpush1.bf16.xpose.msra.mxu0 0
        %2517 = vmatprep.subr.bf16.mxu0 0
        %2518 = vmatpush1.bf16.xpose.msra.mxu0 0
        %2519 = vmatprep.subr.bf16.mxu0 0
        %2520 = vmatpush1.bf16.xpose.msra.mxu0 0
        %2521 = vmatprep.subr.bf16.mxu0 0
        %2522 = vmatpush1.bf16.xpose.msra.mxu0 0
        %2523 = vmatprep.subr.bf16.mxu0 0
        %2524 = vmatpush1.bf16.xpose.msra.mxu0 0
        %2525 = vmatprep.mubr.bf16.mxu0 0
        %2526 = vmatmul.mubr.bf16.gmra.mrb[0].mxu0 %v2485
        %v2527 = vpop.f32.mrb[0].mxu0
        %v2528 = vadd.f32 0.0, %v2527
        %v2529 = vpop.f32.mrb[0].mxu0
        %v2530 = vpop.f32.mrb[0].mxu0
        %v2531 = vadd.f32 0.0, %v2530
        %v2532 = vpop.f32.mrb[0].mxu0
        %2533 = vdwg.mxu0
        %v2534 = vmul.f32 %v2528, 0.125
        %v2535 = vmul.f32 %v2531, 0.125
        %v2536 = vsel %vm2402, -1e+09, %v2534
        %v2537 = vsel %vm2403, -1e+09, %v2535
        %v2538 = vsel %vm1705, %v2536, -inf
        %2539 = vmax.xlane.f32.xlu0 %v2538
        %v2540 = vpop.xlane.xlu0 %2539
        %v2541 = vsel %vm1705, %v2537, -inf
        %2542 = vmax.xlane.f32.xlu0 %v2541
        %v2543 = vpop.xlane.xlu0 %2542
        %v2544 = vsub.f32 %v2536, %v2540
        %v2545 = vsub.f32 %v2537, %v2543
        %v2546 = vmul.f32 %v2544, 1.442695
        %v2547 = vpow.pop %v2546
        %v2548 = vmul.f32 %v2545, 1.442695
        %v2549 = vpow.pop %v2548
        %v2550 = vsel %vm1705, %v2547, 0.0
        %2551 = vadd.xlane.f32.xlu0 %v2550
        %v2552 = vpop.xlane.xlu0 %2551
        %v2553 = vsel %vm1705, %v2549, 0.0
        %2554 = vadd.xlane.f32.xlu0 %v2553
        %v2555 = vpop.xlane.xlu0 %2554
        %v2556 = vrcp.pop %v2552
        %v2557 = vrcp.pop %v2555
        %v2558 = vmul.f32 %v2547, %v2556
        %v2559 = vmul.f32 %v2549, %v2557
        %v2560 = vpack.c.bf16 %v2559, %v2558
        %2563 = vrot.lane.b32.xlu0 %v2429, 64
        %v2564 = vpop.permute.xlu0 %2563
        %2565 = vrot.lane.b32.xlu0 %v2430, 64
        %v2566 = vpop.permute.xlu0 %2565
        %v2570 = vsel %vm1705, %v2560, 0
        %2572 = vmatprep.subr.bf16.mxu0 0
        %2573 = vmatpush1.bf16.msra.mxu0 %v2564
        %2574 = vmatprep.subr.bf16.mxu0 0
        %2575 = vmatpush1.bf16.msra.mxu0 %v2566
        %2576 = vmatprep.subr.bf16.mxu0 0
        %2577 = vmatpush1.bf16.msra.mxu0 0
        %2578 = vmatprep.subr.bf16.mxu0 0
        %2579 = vmatpush1.bf16.msra.mxu0 0
        %2580 = vmatprep.subr.bf16.mxu0 0
        %2581 = vmatpush1.bf16.msra.mxu0 0
        %2582 = vmatprep.subr.bf16.mxu0 0
        %2583 = vmatpush1.bf16.msra.mxu0 0
        %2584 = vmatprep.subr.bf16.mxu0 0
        %2585 = vmatpush1.bf16.msra.mxu0 0
        %2586 = vmatprep.subr.bf16.mxu0 0
        %2587 = vmatpush1.bf16.msra.mxu0 0
        %2588 = vmatprep.subr.bf16.mxu0 0
        %2589 = vmatpush1.bf16.msra.mxu0 0
        %2590 = vmatprep.subr.bf16.mxu0 0
        %2591 = vmatpush1.bf16.msra.mxu0 0
        %2592 = vmatprep.subr.bf16.mxu0 0
        %2593 = vmatpush1.bf16.msra.mxu0 0
        %2594 = vmatprep.subr.bf16.mxu0 0
        %2595 = vmatpush1.bf16.msra.mxu0 0
        %2596 = vmatprep.subr.bf16.mxu0 0
        %2597 = vmatpush1.bf16.msra.mxu0 0
        %2598 = vmatprep.subr.bf16.mxu0 0
        %2599 = vmatpush1.bf16.msra.mxu0 0
        %2600 = vmatprep.subr.bf16.mxu0 0
        %2601 = vmatpush1.bf16.msra.mxu0 0
        %2602 = vmatprep.subr.bf16.mxu0 0
        %2603 = vmatpush1.bf16.msra.mxu0 0
        %2604 = vmatprep.mubr.bf16.mxu0 0
        %2605 = vmatmul.mubr.bf16.gmra.mrb[0].mxu0 %v2570
        %v2606 = vpop.f32.mrb[0].mxu0
        %v2607 = vadd.f32 0.0, %v2606
        %v2608 = vpop.f32.mrb[0].mxu0
        %v2609 = vpop.f32.mrb[0].mxu0
        %v2610 = vadd.f32 0.0, %v2609
        %v2611 = vpop.f32.mrb[0].mxu0
        %2612 = vdwg.mxu0
        %v2613 = vpack.c.bf16 %v2023, %v2019
        %v2614 = vpack.c.bf16 %v2282, %v2278
        %v2615 = vpack.c.bf16 %v2292, %v2288
        %v2617 = vsel %vm1025, %v2613, 0
        %v2620 = vsel %vm1025, %v2614, 0
        %v2623 = vsel %vm1025, %v2615, 0
        %2625 = vmatprep.subr.bf16.mxu0 0
        %2626 = vmatpush1.bf16.xpose.msra.mxu0 %v2620
        %2627 = vmatprep.subr.bf16.mxu0 0
        %2628 = vmatpush1.bf16.xpose.msra.mxu0 %v2623
        %2629 = vmatprep.subr.bf16.mxu0 0
        %2630 = vmatpush1.bf16.xpose.msra.mxu0 0
        %2631 = vmatprep.subr.bf16.mxu0 0
        %2632 = vmatpush1.bf16.xpose.msra.mxu0 0
        %2633 = vmatprep.subr.bf16.mxu0 0
        %2634 = vmatpush1.bf16.xpose.msra.mxu0 0
        %2635 = vmatprep.subr.bf16.mxu0 0
        %2636 = vmatpush1.bf16.xpose.msra.mxu0 0
        %2637 = vmatprep.subr.bf16.mxu0 0
        %2638 = vmatpush1.bf16.xpose.msra.mxu0 0
        %2639 = vmatprep.subr.bf16.mxu0 0
        %2640 = vmatpush1.bf16.xpose.msra.mxu0 0
        %2641 = vmatprep.subr.bf16.mxu0 0
        %2642 = vmatpush1.bf16.xpose.msra.mxu0 0
        %2643 = vmatprep.subr.bf16.mxu0 0
        %2644 = vmatpush1.bf16.xpose.msra.mxu0 0
        %2645 = vmatprep.subr.bf16.mxu0 0
        %2646 = vmatpush1.bf16.xpose.msra.mxu0 0
        %2647 = vmatprep.subr.bf16.mxu0 0
        %2648 = vmatpush1.bf16.xpose.msra.mxu0 0
        %2649 = vmatprep.subr.bf16.mxu0 0
        %2650 = vmatpush1.bf16.xpose.msra.mxu0 0
        %2651 = vmatprep.subr.bf16.mxu0 0
        %2652 = vmatpush1.bf16.xpose.msra.mxu0 0
        %2653 = vmatprep.subr.bf16.mxu0 0
        %2654 = vmatpush1.bf16.xpose.msra.mxu0 0
        %2655 = vmatprep.subr.bf16.mxu0 0
        %2656 = vmatpush1.bf16.xpose.msra.mxu0 0
        %2657 = vmatprep.mubr.bf16.mxu0 0
        %2658 = vmatmul.mubr.bf16.gmra.mrb[0].mxu0 %v2617
        %v2659 = vpop.f32.mrb[0].mxu0
        %v2660 = vadd.f32 0.0, %v2659
        %v2661 = vpop.f32.mrb[0].mxu0
        %v2662 = vpop.f32.mrb[0].mxu0
        %v2663 = vadd.f32 0.0, %v2662
        %v2664 = vpop.f32.mrb[0].mxu0
        %2665 = vdwg.mxu0
        %v2666 = vmul.f32 %v2660, 0.125
        %v2667 = vmul.f32 %v2663, 0.125
        %v2668 = vsel %vm2402, -1e+09, %v2666
        %v2669 = vsel %vm2403, -1e+09, %v2667
        %v2670 = vsel %vm1705, %v2668, -inf
        %2671 = vmax.xlane.f32.xlu0 %v2670
        %v2672 = vpop.xlane.xlu0 %2671
        %v2673 = vsel %vm1705, %v2669, -inf
        %2674 = vmax.xlane.f32.xlu0 %v2673
        %v2675 = vpop.xlane.xlu0 %2674
        %v2676 = vsub.f32 %v2668, %v2672
        %v2677 = vsub.f32 %v2669, %v2675
        %v2678 = vmul.f32 %v2676, 1.442695
        %v2679 = vpow.pop %v2678
        %v2680 = vmul.f32 %v2677, 1.442695
        %v2681 = vpow.pop %v2680
        %v2682 = vsel %vm1705, %v2679, 0.0
        %2683 = vadd.xlane.f32.xlu0 %v2682
        %v2684 = vpop.xlane.xlu0 %2683
        %v2685 = vsel %vm1705, %v2681, 0.0
        %2686 = vadd.xlane.f32.xlu0 %v2685
        %v2687 = vpop.xlane.xlu0 %2686
        %v2688 = vrcp.pop %v2684
        %v2689 = vrcp.pop %v2687
        %v2690 = vmul.f32 %v2679, %v2688
        %v2691 = vmul.f32 %v2681, %v2689
        %v2692 = vpack.c.bf16 %v2691, %v2690
        %v2693 = vpack.c.bf16 %v2335, %v2331
        %v2694 = vpack.c.bf16 %v2345, %v2341
        %v2696 = vsel %vm1705, %v2692, 0
        %2698 = vmatprep.subr.bf16.mxu0 0
        %2699 = vmatpush1.bf16.msra.mxu0 %v2693
        %2700 = vmatprep.subr.bf16.mxu0 0
        %2701 = vmatpush1.bf16.msra.mxu0 %v2694
        %2702 = vmatprep.subr.bf16.mxu0 0
        %2703 = vmatpush1.bf16.msra.mxu0 0
        %2704 = vmatprep.subr.bf16.mxu0 0
        %2705 = vmatpush1.bf16.msra.mxu0 0
        %2706 = vmatprep.subr.bf16.mxu0 0
        %2707 = vmatpush1.bf16.msra.mxu0 0
        %2708 = vmatprep.subr.bf16.mxu0 0
        %2709 = vmatpush1.bf16.msra.mxu0 0
        %2710 = vmatprep.subr.bf16.mxu0 0
        %2711 = vmatpush1.bf16.msra.mxu0 0
        %2712 = vmatprep.subr.bf16.mxu0 0
        %2713 = vmatpush1.bf16.msra.mxu0 0
        %2714 = vmatprep.subr.bf16.mxu0 0
        %2715 = vmatpush1.bf16.msra.mxu0 0
        %2716 = vmatprep.subr.bf16.mxu0 0
        %2717 = vmatpush1.bf16.msra.mxu0 0
        %2718 = vmatprep.subr.bf16.mxu0 0
        %2719 = vmatpush1.bf16.msra.mxu0 0
        %2720 = vmatprep.subr.bf16.mxu0 0
        %2721 = vmatpush1.bf16.msra.mxu0 0
        %2722 = vmatprep.subr.bf16.mxu0 0
        %2723 = vmatpush1.bf16.msra.mxu0 0
        %2724 = vmatprep.subr.bf16.mxu0 0
        %2725 = vmatpush1.bf16.msra.mxu0 0
        %2726 = vmatprep.subr.bf16.mxu0 0
        %2727 = vmatpush1.bf16.msra.mxu0 0
        %2728 = vmatprep.subr.bf16.mxu0 0
        %2729 = vmatpush1.bf16.msra.mxu0 0
        %2730 = vmatprep.mubr.bf16.mxu0 0
        %2731 = vmatmul.mubr.bf16.gmra.mrb[0].mxu0 %v2696
        %v2732 = vpop.f32.mrb[0].mxu0
        %v2733 = vadd.f32 0.0, %v2732
        %v2734 = vpop.f32.mrb[0].mxu0
        %v2735 = vpop.f32.mrb[0].mxu0
        %v2736 = vadd.f32 0.0, %v2735
        %v2737 = vpop.f32.mrb[0].mxu0
        %2738 = vdwg.mxu0
        %2740 = vrot.lane.b32.xlu0 %v2613, 64
        %v2741 = vpop.permute.xlu0 %2740
        %2744 = vrot.lane.b32.xlu0 %v2614, 64
        %v2745 = vpop.permute.xlu0 %2744
        %2746 = vrot.lane.b32.xlu0 %v2615, 64
        %v2747 = vpop.permute.xlu0 %2746
        %v2749 = vsel %vm1025, %v2741, 0
        %v2752 = vsel %vm1025, %v2745, 0
        %v2755 = vsel %vm1025, %v2747, 0
        %2757 = vmatprep.subr.bf16.mxu0 0
        %2758 = vmatpush1.bf16.xpose.msra.mxu0 %v2752
        %2759 = vmatprep.subr.bf16.mxu0 0
        %2760 = vmatpush1.bf16.xpose.msra.mxu0 %v2755
        %2761 = vmatprep.subr.bf16.mxu0 0
        %2762 = vmatpush1.bf16.xpose.msra.mxu0 0
        %2763 = vmatprep.subr.bf16.mxu0 0
        %2764 = vmatpush1.bf16.xpose.msra.mxu0 0
        %2765 = vmatprep.subr.bf16.mxu0 0
        %2766 = vmatpush1.bf16.xpose.msra.mxu0 0
        %2767 = vmatprep.subr.bf16.mxu0 0
        %2768 = vmatpush1.bf16.xpose.msra.mxu0 0
        %2769 = vmatprep.subr.bf16.mxu0 0
        %2770 = vmatpush1.bf16.xpose.msra.mxu0 0
        %2771 = vmatprep.subr.bf16.mxu0 0
        %2772 = vmatpush1.bf16.xpose.msra.mxu0 0
        %2773 = vmatprep.subr.bf16.mxu0 0
        %2774 = vmatpush1.bf16.xpose.msra.mxu0 0
        %2775 = vmatprep.subr.bf16.mxu0 0
        %2776 = vmatpush1.bf16.xpose.msra.mxu0 0
        %2777 = vmatprep.subr.bf16.mxu0 0
        %2778 = vmatpush1.bf16.xpose.msra.mxu0 0
        %2779 = vmatprep.subr.bf16.mxu0 0
        %2780 = vmatpush1.bf16.xpose.msra.mxu0 0
        %2781 = vmatprep.subr.bf16.mxu0 0
        %2782 = vmatpush1.bf16.xpose.msra.mxu0 0
        %2783 = vmatprep.subr.bf16.mxu0 0
        %2784 = vmatpush1.bf16.xpose.msra.mxu0 0
        %2785 = vmatprep.subr.bf16.mxu0 0
        %2786 = vmatpush1.bf16.xpose.msra.mxu0 0
        %2787 = vmatprep.subr.bf16.mxu0 0
        %2788 = vmatpush1.bf16.xpose.msra.mxu0 0
        %2789 = vmatprep.mubr.bf16.mxu0 0
        %2790 = vmatmul.mubr.bf16.gmra.mrb[0].mxu0 %v2749
        %v2791 = vpop.f32.mrb[0].mxu0
        %v2792 = vadd.f32 0.0, %v2791
        %v2793 = vpop.f32.mrb[0].mxu0
        %v2794 = vpop.f32.mrb[0].mxu0
        %v2795 = vadd.f32 0.0, %v2794
        %v2796 = vpop.f32.mrb[0].mxu0
        %2797 = vdwg.mxu0
        %v2798 = vmul.f32 %v2792, 0.125
        %v2799 = vmul.f32 %v2795, 0.125
        %v2800 = vsel %vm2402, -1e+09, %v2798
        %v2801 = vsel %vm2403, -1e+09, %v2799
        %v2802 = vsel %vm1705, %v2800, -inf
        %2803 = vmax.xlane.f32.xlu0 %v2802
        %v2804 = vpop.xlane.xlu0 %2803
        %v2805 = vsel %vm1705, %v2801, -inf
        %2806 = vmax.xlane.f32.xlu0 %v2805
        %v2807 = vpop.xlane.xlu0 %2806
        %v2808 = vsub.f32 %v2800, %v2804
        %v2809 = vsub.f32 %v2801, %v2807
        %v2810 = vmul.f32 %v2808, 1.442695
        %v2811 = vpow.pop %v2810
        %v2812 = vmul.f32 %v2809, 1.442695
        %v2813 = vpow.pop %v2812
        %v2814 = vsel %vm1705, %v2811, 0.0
        %2815 = vadd.xlane.f32.xlu0 %v2814
        %v2816 = vpop.xlane.xlu0 %2815
        %v2817 = vsel %vm1705, %v2813, 0.0
        %2818 = vadd.xlane.f32.xlu0 %v2817
        %v2819 = vpop.xlane.xlu0 %2818
        %v2820 = vrcp.pop %v2816
        %v2821 = vrcp.pop %v2819
        %v2822 = vmul.f32 %v2811, %v2820
        %v2823 = vmul.f32 %v2813, %v2821
        %v2824 = vpack.c.bf16 %v2823, %v2822
        %2827 = vrot.lane.b32.xlu0 %v2693, 64
        %v2828 = vpop.permute.xlu0 %2827
        %2829 = vrot.lane.b32.xlu0 %v2694, 64
        %v2830 = vpop.permute.xlu0 %2829
        %v2834 = vsel %vm1705, %v2824, 0
        %2836 = vmatprep.subr.bf16.mxu0 0
        %2837 = vmatpush1.bf16.msra.mxu0 %v2828
        %2838 = vmatprep.subr.bf16.mxu0 0
        %2839 = vmatpush1.bf16.msra.mxu0 %v2830
        %2840 = vmatprep.subr.bf16.mxu0 0
        %2841 = vmatpush1.bf16.msra.mxu0 0
        %2842 = vmatprep.subr.bf16.mxu0 0
        %2843 = vmatpush1.bf16.msra.mxu0 0
        %2844 = vmatprep.subr.bf16.mxu0 0
        %2845 = vmatpush1.bf16.msra.mxu0 0
        %2846 = vmatprep.subr.bf16.mxu0 0
        %2847 = vmatpush1.bf16.msra.mxu0 0
        %2848 = vmatprep.subr.bf16.mxu0 0
        %2849 = vmatpush1.bf16.msra.mxu0 0
        %2850 = vmatprep.subr.bf16.mxu0 0
        %2851 = vmatpush1.bf16.msra.mxu0 0
        %2852 = vmatprep.subr.bf16.mxu0 0
        %2853 = vmatpush1.bf16.msra.mxu0 0
        %2854 = vmatprep.subr.bf16.mxu0 0
        %2855 = vmatpush1.bf16.msra.mxu0 0
        %2856 = vmatprep.subr.bf16.mxu0 0
        %2857 = vmatpush1.bf16.msra.mxu0 0
        %2858 = vmatprep.subr.bf16.mxu0 0
        %2859 = vmatpush1.bf16.msra.mxu0 0
        %2860 = vmatprep.subr.bf16.mxu0 0
        %2861 = vmatpush1.bf16.msra.mxu0 0
        %2862 = vmatprep.subr.bf16.mxu0 0
        %2863 = vmatpush1.bf16.msra.mxu0 0
        %2864 = vmatprep.subr.bf16.mxu0 0
        %2865 = vmatpush1.bf16.msra.mxu0 0
        %2866 = vmatprep.subr.bf16.mxu0 0
        %2867 = vmatpush1.bf16.msra.mxu0 0
        %2868 = vmatprep.mubr.bf16.mxu0 0
        %2869 = vmatmul.mubr.bf16.gmra.mrb[0].mxu0 %v2834
        %v2870 = vpop.f32.mrb[0].mxu0
        %v2871 = vadd.f32 0.0, %v2870
        %v2872 = vpop.f32.mrb[0].mxu0
        %v2873 = vpop.f32.mrb[0].mxu0
        %v2874 = vadd.f32 0.0, %v2873
        %v2875 = vpop.f32.mrb[0].mxu0
        %2876 = vdwg.mxu0
        %2879 = vrot.lane.b32.xlu0 %v2607, 64
        %v2880 = vpop.permute.xlu0 %2879
        %2881 = vrot.lane.b32.xlu0 %v2610, 64
        %v2882 = vpop.permute.xlu0 %2881
        %2887 = vrot.lane.b32.xlu0 %v2871, 64
        %v2888 = vpop.permute.xlu0 %2887
        %2889 = vrot.lane.b32.xlu0 %v2874, 64
        %v2890 = vpop.permute.xlu0 %2889
        %v2893 = vsel %vm1025, %v2469, %v2880
        %v2894 = vsel %vm1025, %v2472, %v2882
        %v2895 = vsel %vm1025, %v2733, %v2888
        %v2896 = vsel %vm1025, %v2736, %v2890
        %2899 = vrot.lane.b32.xlu0 %v2558, 32
        %v2900 = vpop.permute.xlu0 %2899
        %2901 = vrot.lane.b32.xlu0 %v2559, 32
        %v2902 = vpop.permute.xlu0 %2901
        %2907 = vrot.lane.b32.xlu0 %v2690, 64
        %v2908 = vpop.permute.xlu0 %2907
        %2909 = vrot.lane.b32.xlu0 %v2691, 64
        %v2910 = vpop.permute.xlu0 %2909
        %2915 = vrot.lane.b32.xlu0 %v2822, 96
        %v2916 = vpop.permute.xlu0 %2915
        %2917 = vrot.lane.b32.xlu0 %v2823, 96
        %v2918 = vpop.permute.xlu0 %2917
        %v2921 = vsel %vm1705, %v2426, %v2900
        %v2922 = vsel %vm1705, %v2427, %v2902
        %v2923 = vsel %vm1025, %v2921, %v2908
        %v2924 = vsel %vm1025, %v2922, %v2910
        %vm2925 = vcmask 785408
        %v2926 = vsel %vm2925, %v2923, %v2916
        %v2927 = vsel %vm2925, %v2924, %v2918
        %v2928 = vld [vmem:[%s12] sm:$0xf]
        %v2929 = vld [vmem:[%s12 + $0x4] sm:$0xf]
        %v2930 = vld [vmem:[%s12 + $0x8] sm:$0xf]
        %v2931 = vld [vmem:[%s12 + $0xc] sm:$0xf]
        %v2932 = vld [vmem:[%s12 + $0x10] sm:$0xf]
        %v2933 = vld [vmem:[%s12 + $0x14] sm:$0xf]
        %v2934 = vld [vmem:[%s12 + $0x18] sm:$0xf]
        %v2935 = vld [vmem:[%s12 + $0x1c] sm:$0xf]
        %v2936 = vld [vmem:[%s12 + $0x20] sm:$0xf]
        %v2937 = vld [vmem:[%s12 + $0x24] sm:$0xf]
        %v2938 = vld [vmem:[%s12 + $0x28] sm:$0xf]
        %v2939 = vld [vmem:[%s12 + $0x2c] sm:$0xf]
        %v2940 = vld [vmem:[%s12 + $0x30] sm:$0xf]
        %v2941 = vld [vmem:[%s12 + $0x34] sm:$0xf]
        %v2942 = vld [vmem:[%s12 + $0x38] sm:$0xf]
        %v2943 = vld [vmem:[%s12 + $0x3c] sm:$0xf]
        %v2944 = vld [vmem:[%s12 + $0x40] sm:$0xf]
        %v2945 = vld [vmem:[%s12 + $0x44] sm:$0xf]
        %v2946 = vld [vmem:[%s12 + $0x48] sm:$0xf]
        %v2947 = vld [vmem:[%s12 + $0x4c] sm:$0xf]
        %v2948 = vld [vmem:[%s12 + $0x50] sm:$0xf]
        %v2949 = vld [vmem:[%s12 + $0x54] sm:$0xf]
        %v2950 = vld [vmem:[%s12 + $0x58] sm:$0xf]
        %v2951 = vld [vmem:[%s12 + $0x5c] sm:$0xf]
        %v2952 = vld [vmem:[%s12 + $0x60] sm:$0xf]
        %v2953 = vld [vmem:[%s12 + $0x64] sm:$0xf]
        %v2954 = vld [vmem:[%s12 + $0x68] sm:$0xf]
        %v2955 = vld [vmem:[%s12 + $0x6c] sm:$0xf]
        %v2956 = vld [vmem:[%s12 + $0x70] sm:$0xf]
        %v2957 = vld [vmem:[%s12 + $0x74] sm:$0xf]
        %v2958 = vld [vmem:[%s12 + $0x78] sm:$0xf]
        %v2959 = vld [vmem:[%s12 + $0x7c] sm:$0xf]
        %v2960 = vpack.c.bf16 %v2894, %v2893
        %v2961 = vpack.c.bf16 %v2896, %v2895
        %v2962 = vld [vmem:[%s13] sm:$0x1]
        %v2964 = vlaneseq
        %v2965 = vshrl.u32 %v2964, 7
        %v2966 = vsub.s32 0, %v2965
        %v2967 = vrot.slane %v2962, %v2966
        %v3001 = vunpack.c.l.b16 %v2928
        %v3002 = vunpack.c.l.b16 %v2929
        %v3003 = vunpack.c.l.b16 %v2930
        %v3004 = vunpack.c.l.b16 %v2931
        %v3005 = vunpack.c.l.b16 %v2932
        %v3006 = vunpack.c.l.b16 %v2933
        %v3007 = vunpack.c.l.b16 %v2934
        %v3008 = vunpack.c.l.b16 %v2935
        %v3009 = vunpack.c.l.b16 %v2936
        %v3010 = vunpack.c.l.b16 %v2937
        %v3011 = vunpack.c.l.b16 %v2938
        %v3012 = vunpack.c.l.b16 %v2939
        %v3013 = vunpack.c.l.b16 %v2940
        %v3014 = vunpack.c.l.b16 %v2941
        %v3015 = vunpack.c.l.b16 %v2942
        %v3016 = vunpack.c.l.b16 %v2943
        %v3017 = vunpack.c.l.b16 %v2944
        %v3018 = vunpack.c.l.b16 %v2945
        %v3019 = vunpack.c.l.b16 %v2946
        %v3020 = vunpack.c.l.b16 %v2947
        %v3021 = vunpack.c.l.b16 %v2948
        %v3022 = vunpack.c.l.b16 %v2949
        %v3023 = vunpack.c.l.b16 %v2950
        %v3024 = vunpack.c.l.b16 %v2951
        %v3025 = vunpack.c.l.b16 %v2952
        %v3026 = vunpack.c.l.b16 %v2953
        %v3027 = vunpack.c.l.b16 %v2954
        %v3028 = vunpack.c.l.b16 %v2955
        %v3029 = vunpack.c.l.b16 %v2956
        %v3030 = vunpack.c.l.b16 %v2957
        %v3031 = vunpack.c.l.b16 %v2958
        %v3032 = vunpack.c.l.b16 %v2959
        %v3033 = vpack.c.b16 %v3002, %v3001
        %v3034 = vpack.c.b16 %v3004, %v3003
        %v3035 = vpack.c.b16 %v3006, %v3005
        %v3036 = vpack.c.b16 %v3008, %v3007
        %v3037 = vpack.c.b16 %v3010, %v3009
        %v3038 = vpack.c.b16 %v3012, %v3011
        %v3039 = vpack.c.b16 %v3014, %v3013
        %v3040 = vpack.c.b16 %v3016, %v3015
        %v3041 = vpack.c.b16 %v3018, %v3017
        %v3042 = vpack.c.b16 %v3020, %v3019
        %v3043 = vpack.c.b16 %v3022, %v3021
        %v3044 = vpack.c.b16 %v3024, %v3023
        %v3045 = vpack.c.b16 %v3026, %v3025
        %v3046 = vpack.c.b16 %v3028, %v3027
        %v3047 = vpack.c.b16 %v3030, %v3029
        %v3048 = vpack.c.b16 %v3032, %v3031
        %3065 = vmatprep.subr.bf16.mxu0 0
        %3066 = vmatpush1.bf16.msra.mxu0 %v3033
        %3067 = vmatprep.subr.bf16.mxu0 0
        %3068 = vmatpush1.bf16.msra.mxu0 %v3034
        %3069 = vmatprep.subr.bf16.mxu0 0
        %3070 = vmatpush1.bf16.msra.mxu0 %v3035
        %3071 = vmatprep.subr.bf16.mxu0 0
        %3072 = vmatpush1.bf16.msra.mxu0 %v3036
        %3073 = vmatprep.subr.bf16.mxu0 0
        %3074 = vmatpush1.bf16.msra.mxu0 %v3037
        %3075 = vmatprep.subr.bf16.mxu0 0
        %3076 = vmatpush1.bf16.msra.mxu0 %v3038
        %3077 = vmatprep.subr.bf16.mxu0 0
        %3078 = vmatpush1.bf16.msra.mxu0 %v3039
        %3079 = vmatprep.subr.bf16.mxu0 0
        %3080 = vmatpush1.bf16.msra.mxu0 %v3040
        %3081 = vmatprep.subr.bf16.mxu0 0
        %3082 = vmatpush1.bf16.msra.mxu0 %v3041
        %3083 = vmatprep.subr.bf16.mxu0 0
        %3084 = vmatpush1.bf16.msra.mxu0 %v3042
        %3085 = vmatprep.subr.bf16.mxu0 0
        %3086 = vmatpush1.bf16.msra.mxu0 %v3043
        %3087 = vmatprep.subr.bf16.mxu0 0
        %3088 = vmatpush1.bf16.msra.mxu0 %v3044
        %3089 = vmatprep.subr.bf16.mxu0 0
        %3090 = vmatpush1.bf16.msra.mxu0 %v3045
        %3091 = vmatprep.subr.bf16.mxu0 0
        %3092 = vmatpush1.bf16.msra.mxu0 %v3046
        %3093 = vmatprep.subr.bf16.mxu0 0
        %3094 = vmatpush1.bf16.msra.mxu0 %v3047
        %3095 = vmatprep.subr.bf16.mxu0 0
        %3096 = vmatpush1.bf16.msra.mxu0 %v3048
        %3097 = vmatprep.mubr.bf16.mxu0 %v2961
        %3098 = vmatmul.mubr.bf16.gmra.mrb[0].mxu0 %v2960
        %v3099 = vpop.f32.mrb[0].mxu0
        %v3100 = vadd.f32 %v2967, %v3099
        %v3101 = vpop.f32.mrb[0].mxu0
        %v3102 = vpop.f32.mrb[0].mxu0
        %v3103 = vadd.f32 %v2967, %v3102
        %v3104 = vpop.f32.mrb[0].mxu0
        %3105 = vdwg.mxu0
        %v3106 = vadd.f32 %v3100, %v1916
        %v3107 = vadd.f32 %v3103, %v1917
        %v3108 = vsel %vm1025, %v3106, 0.0
        %3109 = vadd.xlane.f32.xlu0 %v3108
        %v3110 = vpop.xlane.xlu0 %3109
        %v3111 = vsel %vm1025, %v3107, 0.0
        %3112 = vadd.xlane.f32.xlu0 %v3111
        %v3113 = vpop.xlane.xlu0 %3112
        %v3114 = vmul.f32 %v3110, %v1897
        %v3115 = vmul.f32 %v3113, %v1897
        %v3116 = vsub.f32 %v3106, %v3114
        %v3117 = vsub.f32 %v3107, %v3115
        %v3118 = vmul.f32 %v3116, %v3116
        %v3119 = vmul.f32 %v3117, %v3117
        %v3120 = vsel %vm1025, %v3118, 0.0
        %3121 = vadd.xlane.f32.xlu0 %v3120
        %v3122 = vpop.xlane.xlu0 %3121
        %v3123 = vsel %vm1025, %v3119, 0.0
        %3124 = vadd.xlane.f32.xlu0 %v3123
        %v3125 = vpop.xlane.xlu0 %3124
        %v3126 = vmul.f32 %v3122, %v1897
        %v3127 = vmul.f32 %v3125, %v1897
        %v3128 = vadd.f32 %v3126, 1e-05
        %v3129 = vadd.f32 %v3127, 1e-05
        %v3130 = vrsqrt.pop %v3128
        %v3131 = vrsqrt.pop %v3129
        %v3132 = vmul.f32 %v3116, %v3130
        %v3133 = vmul.f32 %v3117, %v3131
        %v3134 = vld [vmem:[#allocation14] sm:$0xf]
        %v3135 = vld [vmem:[#allocation14 + $0x4] sm:$0xf]
        %v3136 = vld [vmem:[#allocation14 + $0x8] sm:$0xf]
        %v3137 = vld [vmem:[#allocation14 + $0xc] sm:$0xf]
        %v3138 = vld [vmem:[#allocation14 + $0x10] sm:$0xf]
        %v3139 = vld [vmem:[#allocation14 + $0x14] sm:$0xf]
        %v3140 = vld [vmem:[#allocation14 + $0x18] sm:$0xf]
        %v3141 = vld [vmem:[#allocation14 + $0x1c] sm:$0xf]
        %v3142 = vpack.c.bf16 %v3133, %v3132
        %v3143 = vld [vmem:[%s15] sm:$0x1]
        %v3145 = vlaneseq
        %v3146 = vshrl.u32 %v3145, 7
        %v3147 = vsub.s32 0, %v3146
        %v3148 = vrot.slane %v3143, %v3147
        %v3158 = vunpack.c.l.b16 %v3134
        %v3159 = vunpack.c.l.b16 %v3135
        %v3160 = vunpack.c.l.b16 %v3136
        %v3161 = vunpack.c.l.b16 %v3137
        %v3162 = vunpack.c.l.b16 %v3138
        %v3163 = vunpack.c.l.b16 %v3139
        %v3164 = vunpack.c.l.b16 %v3140
        %v3165 = vunpack.c.l.b16 %v3141
        %v3166 = vpack.c.b16 %v3159, %v3158
        %v3167 = vpack.c.b16 %v3161, %v3160
        %v3168 = vpack.c.b16 %v3163, %v3162
        %v3169 = vpack.c.b16 %v3165, %v3164
        %v3175 = vsel %vm1025, %v3142, 0
        %3177 = vmatprep.subr.bf16.mxu0 0
        %3178 = vmatpush1.bf16.msra.mxu0 %v3166
        %3179 = vmatprep.subr.bf16.mxu0 0
        %3180 = vmatpush1.bf16.msra.mxu0 %v3167
        %3181 = vmatprep.subr.bf16.mxu0 0
        %3182 = vmatpush1.bf16.msra.mxu0 %v3168
        %3183 = vmatprep.subr.bf16.mxu0 0
        %3184 = vmatpush1.bf16.msra.mxu0 %v3169
        %3185 = vmatprep.subr.bf16.mxu0 0
        %3186 = vmatpush1.bf16.msra.mxu0 0
        %3187 = vmatprep.subr.bf16.mxu0 0
        %3188 = vmatpush1.bf16.msra.mxu0 0
        %3189 = vmatprep.subr.bf16.mxu0 0
        %3190 = vmatpush1.bf16.msra.mxu0 0
        %3191 = vmatprep.subr.bf16.mxu0 0
        %3192 = vmatpush1.bf16.msra.mxu0 0
        %3193 = vmatprep.subr.bf16.mxu0 0
        %3194 = vmatpush1.bf16.msra.mxu0 0
        %3195 = vmatprep.subr.bf16.mxu0 0
        %3196 = vmatpush1.bf16.msra.mxu0 0
        %3197 = vmatprep.subr.bf16.mxu0 0
        %3198 = vmatpush1.bf16.msra.mxu0 0
        %3199 = vmatprep.subr.bf16.mxu0 0
        %3200 = vmatpush1.bf16.msra.mxu0 0
        %3201 = vmatprep.subr.bf16.mxu0 0
        %3202 = vmatpush1.bf16.msra.mxu0 0
        %3203 = vmatprep.subr.bf16.mxu0 0
        %3204 = vmatpush1.bf16.msra.mxu0 0
        %3205 = vmatprep.subr.bf16.mxu0 0
        %3206 = vmatpush1.bf16.msra.mxu0 0
        %3207 = vmatprep.subr.bf16.mxu0 0
        %3208 = vmatpush1.bf16.msra.mxu0 0
        %3209 = vmatprep.mubr.bf16.mxu0 0
        %3210 = vmatmul.mubr.bf16.gmra.mrb[0].mxu0 %v3175
        %v3211 = vpop.f32.mrb[0].mxu0
        %v3212 = vadd.f32 %v3148, %v3211
        %v3213 = vpop.f32.mrb[0].mxu0
        %v3214 = vpop.f32.mrb[0].mxu0
        %v3215 = vadd.f32 %v3148, %v3214
        %v3216 = vpop.f32.mrb[0].mxu0
        %3217 = vdwg.mxu0
        %v3218 = vmax.f32 %v3212, 0.0
        %v3219 = vmax.f32 %v3215, 0.0
        %v3220 = vld [vmem:[%s16] sm:$0xf]
        %v3221 = vld [vmem:[%s16 + $0x4] sm:$0xf]
        %v3222 = vld [vmem:[%s16 + $0x8] sm:$0xf]
        %v3223 = vld [vmem:[%s16 + $0xc] sm:$0xf]
        %v3224 = vld [vmem:[%s16 + $0x10] sm:$0xf]
        %v3225 = vld [vmem:[%s16 + $0x14] sm:$0xf]
        %v3226 = vld [vmem:[%s16 + $0x18] sm:$0xf]
        %v3227 = vld [vmem:[%s16 + $0x1c] sm:$0xf]
        %v3228 = vld [vmem:[%s16 + $0x20] sm:$0xf]
        %v3229 = vld [vmem:[%s16 + $0x24] sm:$0xf]
        %v3230 = vld [vmem:[%s16 + $0x28] sm:$0xf]
        %v3231 = vld [vmem:[%s16 + $0x2c] sm:$0xf]
        %v3232 = vld [vmem:[%s16 + $0x30] sm:$0xf]
        %v3233 = vld [vmem:[%s16 + $0x34] sm:$0xf]
        %v3234 = vld [vmem:[%s16 + $0x38] sm:$0xf]
        %v3235 = vld [vmem:[%s16 + $0x3c] sm:$0xf]
        %v3236 = vpack.c.bf16 %v3219, %v3218
        %v3237 = vld [vmem:[%s17] sm:$0x1]
        %v3239 = vlaneseq
        %v3240 = vshrl.u32 %v3239, 7
        %v3241 = vsub.s32 0, %v3240
        %v3242 = vrot.slane %v3237, %v3241
        %v3260 = vunpack.c.l.b16 %v3220
        %v3261 = vunpack.c.l.b16 %v3221
        %v3262 = vunpack.c.l.b16 %v3222
        %v3263 = vunpack.c.l.b16 %v3223
        %v3264 = vunpack.c.l.b16 %v3224
        %v3265 = vunpack.c.l.b16 %v3225
        %v3266 = vunpack.c.l.b16 %v3226
        %v3267 = vunpack.c.l.b16 %v3227
        %v3268 = vunpack.c.l.b16 %v3228
        %v3269 = vunpack.c.l.b16 %v3229
        %v3270 = vunpack.c.l.b16 %v3230
        %v3271 = vunpack.c.l.b16 %v3231
        %v3272 = vunpack.c.l.b16 %v3232
        %v3273 = vunpack.c.l.b16 %v3233
        %v3274 = vunpack.c.l.b16 %v3234
        %v3275 = vunpack.c.l.b16 %v3235
        %v3276 = vpack.c.b16 %v3261, %v3260
        %v3277 = vpack.c.b16 %v3263, %v3262
        %v3278 = vpack.c.b16 %v3265, %v3264
        %v3279 = vpack.c.b16 %v3267, %v3266
        %v3280 = vpack.c.b16 %v3269, %v3268
        %v3281 = vpack.c.b16 %v3271, %v3270
        %v3282 = vpack.c.b16 %v3273, %v3272
        %v3283 = vpack.c.b16 %v3275, %v3274
        %3292 = vmatprep.subr.bf16.mxu0 0
        %3293 = vmatpush1.bf16.msra.mxu0 %v3276
        %3294 = vmatprep.subr.bf16.mxu0 0
        %3295 = vmatpush1.bf16.msra.mxu0 %v3277
        %3296 = vmatprep.subr.bf16.mxu0 0
        %3297 = vmatpush1.bf16.msra.mxu0 %v3278
        %3298 = vmatprep.subr.bf16.mxu0 0
        %3299 = vmatpush1.bf16.msra.mxu0 %v3279
        %3300 = vmatprep.subr.bf16.mxu0 0
        %3301 = vmatpush1.bf16.msra.mxu0 %v3280
        %3302 = vmatprep.subr.bf16.mxu0 0
        %3303 = vmatpush1.bf16.msra.mxu0 %v3281
        %3304 = vmatprep.subr.bf16.mxu0 0
        %3305 = vmatpush1.bf16.msra.mxu0 %v3282
        %3306 = vmatprep.subr.bf16.mxu0 0
        %3307 = vmatpush1.bf16.msra.mxu0 %v3283
        %3308 = vmatprep.subr.bf16.mxu0 0
        %3309 = vmatpush1.bf16.msra.mxu0 0
        %3310 = vmatprep.subr.bf16.mxu0 0
        %3311 = vmatpush1.bf16.msra.mxu0 0
        %3312 = vmatprep.subr.bf16.mxu0 0
        %3313 = vmatpush1.bf16.msra.mxu0 0
        %3314 = vmatprep.subr.bf16.mxu0 0
        %3315 = vmatpush1.bf16.msra.mxu0 0
        %3316 = vmatprep.subr.bf16.mxu0 0
        %3317 = vmatpush1.bf16.msra.mxu0 0
        %3318 = vmatprep.subr.bf16.mxu0 0
        %3319 = vmatpush1.bf16.msra.mxu0 0
        %3320 = vmatprep.subr.bf16.mxu0 0
        %3321 = vmatpush1.bf16.msra.mxu0 0
        %3322 = vmatprep.subr.bf16.mxu0 0
        %3323 = vmatpush1.bf16.msra.mxu0 0
        %3324 = vmatprep.mubr.bf16.mxu0 0
        %3325 = vmatmul.mubr.bf16.gmra.mrb[0].mxu0 %v3236
        %v3326 = vpop.f32.mrb[0].mxu0
        %v3327 = vadd.f32 %v3242, %v3326
        %v3328 = vpop.f32.mrb[0].mxu0
        %v3329 = vpop.f32.mrb[0].mxu0
        %v3330 = vadd.f32 %v3242, %v3329
        %v3331 = vpop.f32.mrb[0].mxu0
        %3332 = vdwg.mxu0
        %v3333 = vadd.f32 %v3327, %v3132
        %v3334 = vadd.f32 %v3330, %v3133
        %v3335 = vsel %vm1025, %v3333, 0.0
        %3336 = vadd.xlane.f32.xlu0 %v3335
        %v3337 = vpop.xlane.xlu0 %3336
        %v3338 = vsel %vm1025, %v3334, 0.0
        %3339 = vadd.xlane.f32.xlu0 %v3338
        %v3340 = vpop.xlane.xlu0 %3339
        %v3341 = vmul.f32 %v3337, %v1897
        %v3342 = vmul.f32 %v3340, %v1897
        %v3343 = vsub.f32 %v3333, %v3341
        %v3344 = vsub.f32 %v3334, %v3342
        %v3345 = vmul.f32 %v3343, %v3343
        %v3346 = vmul.f32 %v3344, %v3344
        %v3347 = vsel %vm1025, %v3345, 0.0
        %3348 = vadd.xlane.f32.xlu0 %v3347
        %v3349 = vpop.xlane.xlu0 %3348
        %v3350 = vsel %vm1025, %v3346, 0.0
        %3351 = vadd.xlane.f32.xlu0 %v3350
        %v3352 = vpop.xlane.xlu0 %3351
        %v3353 = vmul.f32 %v3349, %v1897
        %v3354 = vmul.f32 %v3352, %v1897
        %v3355 = vadd.f32 %v3353, 1e-05
        %v3356 = vadd.f32 %v3354, 1e-05
        %v3357 = vrsqrt.pop %v3355
        %v3358 = vrsqrt.pop %v3356
        %v3359 = vmul.f32 %v3343, %v3357
        %v3360 = vmul.f32 %v3344, %v3358
        %3361 = vst.msk [vmem:[%s822] sm:$0xff] %vm1025, %v3359
        %3362 = vst.msk [vmem:[%s822 + $0x8] sm:$0xff] %vm1025, %v3360
        %3363 = vst.msk [vmem:[%s829] sm:$0xff] %vm1025, %v1709
        %3364 = vst.msk [vmem:[%s829 + $0x8] sm:$0xff] %vm1025, %v1710
        %3365 = vst [vmem:[%s836] sm:$0xff] %v2926
        %3366 = vst [vmem:[%s836 + $0x8] sm:$0xff] %v2927
        %s3367 = sand.u32 %s455, 1
        %s3368 = scalar_lea.sflag [#allocation4], %s3367
        %s3369 = sand.u32 %s455, 1
        %s3370 = smul.addr %s3369, 16
        %s3371 = scalar_lea.vmem [#allocation16], %s3370
        %s3372 = sand.u32 %s49, 1
        %s3373 = scalar_lea.sflag [#allocation18], %s3372
        %s3374 = sand.u32 %s481, 1
        %s3375 = smul.addr %s3374, 16
        %s3376 = scalar_lea.vmem [#allocation17], %s3375
        %s3377 = sand.u32 %s49, 1
        %s3378 = scalar_lea.sflag [#allocation18], %s3377
        %s3379 = sand.u32 %s507, 1
        %s3380 = smul.addr %s3379, 16
        %s3381 = scalar_lea.vmem [#allocation19], %s3380
        // Predicated region
        $region125: #{tpu_custom_call.1} parent=91 // pred_check
          %p3382 = pneg %p465
        $region126: #{tpu_custom_call.1} parent=91 // pred_check_branch
          %3384 = sbr.rel (%p3382) target = $region128
        $region127: #{tpu_custom_call.1} parent=91 // pred_region
          %s3386 = ssub.s32 256, 256
          %3387 = vsyncadd %s3368, %s3386
          %s3388 = smul.addr %s49, 2
          %s3389 = smul.addr %s3388, 128
          %s3390 = scalar_lea.hbm %s18, %s3389
          %s3391 = sshll.u32 %s3371, 4
          %s3392 = int_to_ptr.vmem [resolvable:$true] %s3391
          %3397 = dma.vmem_to_hbm [thread:$0]  %s3392, 256, %s3390, %s3368, 128, 128, 8
        $region128: #{tpu_custom_call.1} parent=91 // pred_fallthru
          _
        // Predicated region
        $region129: #{tpu_custom_call.1} parent=91 // pred_check
          %p3398 = pneg %p491
        $region130: #{tpu_custom_call.1} parent=91 // pred_check_branch
          %3400 = sbr.rel (%p3398) target = $region132
        $region131: #{tpu_custom_call.1} parent=91 // pred_region
          %s3402 = ssub.s32 256, 256
          %3403 = vsyncadd %s3373, %s3402
          %s3404 = smul.addr %s49, 2
          %s3405 = smul.addr %s3404, 128
          %s3406 = scalar_lea.hbm %s19, %s3405
          %s3407 = sshll.u32 %s3376, 4
          %s3408 = int_to_ptr.vmem [resolvable:$true] %s3407
          %3413 = dma.vmem_to_hbm [thread:$0]  %s3408, 256, %s3406, %s3373, 128, 128, 8
        $region132: #{tpu_custom_call.1} parent=91 // pred_fallthru
          _
        // Predicated region
        $region133: #{tpu_custom_call.1} parent=91 // pred_check
          %p3414 = pneg %p517
        $region134: #{tpu_custom_call.1} parent=91 // pred_check_branch
          %3416 = sbr.rel (%p3414) target = $region136
        $region135: #{tpu_custom_call.1} parent=91 // pred_region
          %s3418 = ssub.s32 256, 256
          %3419 = vsyncadd %s3378, %s3418
          %s3420 = smul.addr %s49, 2
          %s3421 = smul.addr %s3420, 128
          %s3422 = scalar_lea.hbm %s20, %s3421
          %s3423 = sshll.u32 %s3381, 4
          %s3424 = int_to_ptr.vmem [resolvable:$true] %s3423
          %3429 = dma.vmem_to_hbm [thread:$0]  %s3424, 256, %s3422, %s3378, 128, 128, 8
        $region136: #{tpu_custom_call.1} parent=91 // pred_fallthru
          _
      $region92: #{tpu_custom_call.1} parent=5 // pred_fallthru
        _
      %p3430 = scmp.le.s32.totalorder 2, %s44
      // Predicated region
      $region137: #{tpu_custom_call.1} parent=5 // pred_check
        %p3431 = pneg %p3430
      $region138: #{tpu_custom_call.1} parent=5 // pred_check_branch
        %3433 = sbr.rel (%p3431) target = $region140
      $region139: #{tpu_custom_call.1} parent=5 // pred_region
        %s3434 = ssub.s32 %s44, 2
        // Predicated region
        $region141: #{tpu_custom_call.1} parent=139 // pred_check
          %p3435 = pneg %p471
        $region142: #{tpu_custom_call.1} parent=139 // pred_check_branch
          %3437 = sbr.rel (%p3435) target = $region144
        $region143: #{tpu_custom_call.1} parent=139 // pred_region
          %s3438 = sand.u32 %s456, 1
          %s3439 = scalar_lea.sflag [#allocation4], %s3438
          %s3440 = sand.u32 %s456, 1
          %s3441 = smul.addr %s3440, 16
          %s3442 = scalar_lea.vmem [#allocation16], %s3441
          %3443 = dma.done %s3439, 256
        $region144: #{tpu_custom_call.1} parent=139 // pred_fallthru
          _
        // Predicated region
        $region145: #{tpu_custom_call.1} parent=139 // pred_check
          %p3444 = pneg %p497
        $region146: #{tpu_custom_call.1} parent=139 // pred_check_branch
          %3446 = sbr.rel (%p3444) target = $region148
        $region147: #{tpu_custom_call.1} parent=139 // pred_region
          %s3447 = sand.u32 %s50, 1
          %s3448 = scalar_lea.sflag [#allocation18], %s3447
          %s3449 = sand.u32 %s482, 1
          %s3450 = smul.addr %s3449, 16
          %s3451 = scalar_lea.vmem [#allocation17], %s3450
          %3452 = dma.done %s3448, 256
        $region148: #{tpu_custom_call.1} parent=139 // pred_fallthru
          _
        // Predicated region
        $region149: #{tpu_custom_call.1} parent=139 // pred_check
          %p3453 = pneg %p523
        $region150: #{tpu_custom_call.1} parent=139 // pred_check_branch
          %3455 = sbr.rel (%p3453) target = $region152
        $region151: #{tpu_custom_call.1} parent=139 // pred_region
          %s3456 = sand.u32 %s50, 1
          %s3457 = scalar_lea.sflag [#allocation18], %s3456
          %s3458 = sand.u32 %s508, 1
          %s3459 = smul.addr %s3458, 16
          %s3460 = scalar_lea.vmem [#allocation19], %s3459
          %3461 = dma.done %s3457, 256
        $region152: #{tpu_custom_call.1} parent=139 // pred_fallthru
          _
      $region140: #{tpu_custom_call.1} parent=5 // pred_fallthru
        _
    $region6: #{tpu_custom_call.1} parent=1 // loop_footer
      %s48 = sadd.s32 1, %s44
    $region7: #{tpu_custom_call.1} parent=1 // loop_footer_branch
      %43 = sbr.rel target = $region3
    $region8: #{tpu_custom_call.1} parent=1 // loop_exit
      _
    %3462 = vsyncpa [#allocation3], 1
    %s3463 = scalar_lea.sflag [#allocation3], 1
    %3464 = vsyncpa %s3463, 1
    %3465 = vsyncpa [#allocation6], 1
    %s3466 = scalar_lea.sflag [#allocation6], 1
    %3467 = vsyncpa %s3466, 1
    %3468 = vsyncpa [#allocation9], 1
    %s3469 = scalar_lea.sflag [#allocation9], 1
    %3470 = vsyncpa %s3469, 1
    %3471 = vsyncpa [#allocation12], 1
    %3472 = vsyncpa [#allocation15], 1
    %3473 = vsyncpa [#allocation4], 1
    %s3474 = scalar_lea.sflag [#allocation4], 1
    %3475 = vsyncpa %s3474, 1
    %3476 = vsyncpa [#allocation18], 1
    %s3477 = scalar_lea.sflag [#allocation18], 1
    %3478 = vsyncpa %s3477, 1

</llo_original>
